<compile_context>
chip_gen: v6e
topology: v6e:2x2x1
jax: 0.10.0
libtpu: 0.0.40
codegen_flags: <defaults>
</compile_context>

<pallas_src>
import math

import numpy as np

import jax
import jax.numpy as jnp
from jax.experimental import pallas as pl
from jax.experimental.pallas import tpu as pltpu


# ----------------------------- static planning -----------------------------

def _hidden_sizes(num_layers, in_size, out_size):
    sx = (out_size[0] / in_size[0]) ** (1.0 / (num_layers - 1))
    sy = (out_size[1] / in_size[1]) ** (1.0 / (num_layers - 1))
    return [(int(math.ceil(sx ** n * in_size[0])),
             int(math.ceil(sy ** n * in_size[1])))
            for n in range(1, num_layers - 1)] + [tuple(out_size)]


def _layer_plan(num_layers, in_size, out_size):
    """Spatial size of every conv + source size of every upsample."""
    hid = _hidden_sizes(num_layers, in_size, out_size)
    conv_sizes = hid + [hid[-1]]              # num_layers convs in total
    up_src = [tuple(in_size)] + hid[:-1]      # sources of the num_layers-1 upsamples
    has_up = [True] * (num_layers - 1) + [False]
    return conv_sizes, up_src, has_up


def _nearest_matrix(src_hw, dst_hw):
    """Constant 0/1 matrix U so that (A_src @ U) == nearest-upsample(A_src)."""
    sh, sw = src_hw
    dh, dw = dst_hw
    iy = np.floor(np.arange(dh) * (sh / dh)).astype(np.int64)
    ix = np.floor(np.arange(dw) * (sw / dw)).astype(np.int64)
    u = np.zeros((sh * sw, dh * dw), np.float32)
    for y in range(dh):
        for x in range(dw):
            u[iy[y] * sw + ix[x], y * dw + x] = 1.0
    return u


def _col_masks(hw_shape, rows):
    """(2, rows, H*W) 0/1 masks killing taps that wrap across image columns.

    Pre-broadcast over the sublane dim on the host so the in-kernel multiply is
    a plain vreg op (no broadcast_in_dim inside the layer loop).
    """
    h, w = hw_shape
    col = np.arange(h * w) % w
    m = np.ones((2, 1, h * w), np.float32)
    m[0, 0, col == 0] = 0.0          # output col 0 has no left neighbour
    m[1, 0, col == w - 1] = 0.0      # output col w-1 has no right neighbour
    return np.broadcast_to(m, (2, rows, h * w)).copy()


# ------------------------------ fused kernel -------------------------------

def _make_fused_kernel(cfg):
    CP = cfg["c_pad"]                 # padded channel count (8)
    COP = cfg["cout_pad"]             # padded output channel count (8)
    Nb = cfg["nb"]                    # images per grid step
    R = Nb * CP                       # activation rows = (image, channel)
    conv_sizes = cfg["conv_sizes"]
    has_up = cfg["has_up"]
    n_conv = len(conv_sizes)
    n_up = sum(has_up)
    w_max = max(w for _, w in conv_sizes)
    off = w_max + 1                   # flat zero-pad on each side of the image
    bf16 = jnp.bfloat16

    def kernel(*args):
        scale_ref, x_ref, wlin_ref, blin_ref = args[:4]
        rest = args[4:]
        u_refs = rest[:n_up]
        m_refs = rest[n_up:n_up + n_conv]
        (w_ref, b_ref, s_ref, t_ref, wout_ref, bout_ref,
         o_ref, apad_ref) = rest[n_up + n_conv:]

        # ---- Linear + bias + ReLU (Dropout(0.1) == identity at inference) ---
        # The Unflatten is folded into this matmul (host expands x with a
        # channel-selector Kronecker factor), so the result is already the
        # channel-major (Nb*CP, ih*iw) image: no reshape / per-channel scatter.
        a = jnp.dot(x_ref[0].astype(bf16), wlin_ref[...],
                    preferred_element_type=jnp.float32)
        a = jnp.maximum(a + blin_ref[...], 0.0)                    # (R, P0)

        # ---- zero the flat-padded scratch ONCE per grid step ----------------
        # (hoisted out of the layer loop: conv sizes are non-decreasing, so
        #  each layer's image write covers everything later taps can read,
        #  except the pad strips which stay zero forever.)
        apad_ref[...] = jnp.zeros_like(apad_ref)

        u_i = 0
        for li, (lh, lw) in enumerate(conv_sizes):
            hw = lh * lw
            if has_up[li]:
                # nearest-neighbour Upsample == matmul with a 0/1 selector
                a = jnp.dot(a.astype(bf16), u_refs[u_i][...],
                            preferred_element_type=jnp.float32)    # (R, hw)
                u_i += 1

            # flat zero-padded copy of the image (realises Conv2d padding=1)
            apad_ref[:, off:off + hw] = a

            mask_l = m_refs[li][0]     # kills wrapped left-neighbour taps
            mask_r = m_refs[li][1]     # kills wrapped right-neighbour taps

            # ---- Conv3x3 as 9 accumulating (R,R) x (R,hw) MXU matmuls -------
            # (no im2col patch matrix -> no (9*C, hw) stores + reloads; the
            #  weights are block-diagonal over the Nb images of this step)
            y = None
            for ky in range(3):
                for kx in range(3):
                    s = (ky - 1) * lw + (kx - 1)
                    tap = apad_ref[:, off + s:off + s + hw]        # (R, hw)
                    if kx == 0:
                        tap = tap * mask_l
                    elif kx == 2:
                        tap = tap * mask_r
                    d = jnp.dot(w_ref[li * 9 + ky * 3 + kx],
                                tap.astype(bf16),
                                preferred_element_type=jnp.float32)
                    y = d if y is None else y + d

            y = jnp.maximum(y + b_ref[li], 0.0)
            # TODO(synk): Dropout2d(0.1) is a train-time op -> identity here.
            if li < n_conv - 1:
                a = y * s_ref[li] + t_ref[li]      # BatchNorm2d (eval, folded)
            else:
                a = y      # the last BatchNorm is folded into the 1x1 conv

        # ---- Conv1x1 (+ folded last BN), then * scale_out -------------------
        y = jnp.dot(wout_ref[...], a.astype(bf16),
                    preferred_element_type=jnp.float32)            # (Nb*COP, hw)
        y = (y + bout_ref[...]) * scale_ref[0, 0]
        for b in range(Nb):                        # aligned 8-row stores
            o_ref[b] = y[b * COP:(b + 1) * COP, :].astype(o_ref.dtype)

    return kernel


# ------------------------------ host wrappers ------------------------------

def conv_model_forward(params, x, scale_out=1.0, images_per_step=None):
    N, latent = x.shape
    Cc = params["num_channels"]
    CoutF = params["num_output_channels"]
    num_layers = params["num_layers"]
    ih, iw = params["in_size"]
    conv_sizes, up_src, has_up = _layer_plan(num_layers, params["in_size"],
                                             params["out_size"])
    n_conv = len(conv_sizes)
    n_up = sum(has_up)

    CP = ((Cc + 7) // 8) * 8            # channel dim padded to a sublane tile
    COP = ((CoutF + 7) // 8) * 8
    P0 = ih * iw
    oh, ow = conv_sizes[-1]
    hw_out = oh * ow
    hw_list = [h * w for h, w in conv_sizes]
    hw_max = max(hw_list)
    w_max = max(w for _, w in conv_sizes)
    pad_w = hw_max + 2 * (w_max + 1)

    # "zero the padded scratch once per step" relies on this invariant.
    assert all(hw_list[i] <= hw_list[i + 1] for i in range(n_conv - 1)), \
        "conv spatial sizes must be non-decreasing across layers"

    # ---- batching: Nb images per grid step, >= 2 steps for v7x megacore -----
    if images_per_step is None:
        images_per_step = max(1, min(-(-N // 2), 8))
    Nb = int(images_per_step)
    steps = -(-N // Nb)
    N_pad = steps * Nb
    R = Nb * CP

    f32, bf16 = jnp.float32, jnp.bfloat16
    eye_nb = jnp.eye(Nb, dtype=f32)

    # ---- Linear with the Unflatten folded in ---------------------------------
    # x_exp[(b,c),(c',k)] = x[b,k] * delta(c,c')  =>  x_exp @ w_lin2 is the
    # channel-major (image*channel, ih*iw) activation (padded channels -> 0).
    x_pad = jnp.zeros((N_pad, latent), f32).at[:N].set(x.astype(f32))
    x_exp = jnp.einsum("bk,cd->bcdk", x_pad, jnp.eye(CP, dtype=f32))
    x_exp = x_exp.reshape(steps, R, CP * latent)
    w_lin = params["w_lin"].reshape(latent, Cc, P0)
    w_lin = jnp.pad(w_lin, ((0, 0), (0, CP - Cc), (0, 0)))
    w_lin2 = jnp.transpose(w_lin, (1, 0, 2)).reshape(CP * latent, P0).astype(bf16)
    b_lin = jnp.pad(params["b_lin"].reshape(Cc, P0), ((0, CP - Cc), (0, 0)))
    b_lin2 = jnp.tile(b_lin, (Nb, 1))                                 # (R, P0)

    # ---- constant upsample selectors + conv boundary masks -------------------
    u_mats = [jnp.asarray(_nearest_matrix(up_src[i], conv_sizes[i]), bf16)
              for i in range(n_up)]
    masks = [jnp.asarray(_col_masks(conv_sizes[l], R)) for l in range(n_conv)]

    # ---- 3x3 convs: per-tap (CP,CP) blocks, block-diagonal over Nb images ----
    cw = jnp.pad(params["conv_w"],
                 ((0, 0), (0, CP - Cc), (0, CP - Cc), (0, 0), (0, 0)))
    cw = jnp.transpose(cw, (0, 3, 4, 1, 2)).reshape(n_conv * 9, CP, CP)
    w_conv = jnp.einsum("tij,ab->taibj", cw, eye_nb).reshape(
        n_conv * 9, R, R).astype(bf16)

    def tile_rows(v):          # (n, Cc) -> (n, R, 1) with rows = (image, chan)
        v = jnp.pad(v, ((0, 0), (0, CP - Cc)))
        return jnp.tile(v, (1, Nb)).reshape(v.shape[0], R, 1)

    b_conv = tile_rows(params["conv_b"])                     # (n_conv, R, 1)
    bn_s = tile_rows(params["bn_scale"][:n_conv - 1])        # (n_conv-1, R, 1)
    bn_t = tile_rows(params["bn_shift"][:n_conv - 1])

    # ---- fold the last BatchNorm into the 1x1 conv (exact: no padding) -------
    s_last = params["bn_scale"][n_conv - 1]
    t_last = params["bn_shift"][n_conv - 1]
    w_out = params["w_out"] * s_last[None, :]
    b_out = params["b_out"] + params["w_out"] @ t_last
    w_out_p = jnp.pad(w_out, ((0, COP - CoutF), (0, CP - Cc)))
    w_out_bd = jnp.einsum("ij,ab->aibj", w_out_p, eye_nb).reshape(
        Nb * COP, R).astype(bf16)
    b_out_t = jnp.tile(jnp.pad(b_out, (0, COP - CoutF)), Nb).reshape(Nb * COP, 1)

    scale = jnp.full((1, 1), scale_out, f32)

    kernel = _make_fused_kernel(dict(
        c_pad=CP, cout_pad=COP, nb=Nb,
        conv_sizes=conv_sizes, has_up=has_up))

    inv2 = lambda n: (0, 0)
    inv3 = lambda n: (0, 0, 0)
    # Grid-invariant operands use constant index maps, so the Pallas pipeline
    # does not re-DMA them between consecutive grid steps.
    in_specs = (
        [pl.BlockSpec(memory_space=pltpu.MemorySpace.SMEM),            # scale
         pl.BlockSpec((1, R, CP * latent), lambda n: (n, 0, 0)),       # x_exp
         pl.BlockSpec((CP * latent, P0), inv2),                        # w_lin2
         pl.BlockSpec((R, P0), inv2)]                                  # b_lin2
        + [pl.BlockSpec(u.shape, inv2) for u in u_mats]                # upsample
        + [pl.BlockSpec(m.shape, inv3) for m in masks]                 # col masks
        + [pl.BlockSpec((n_conv * 9, R, R), inv3),                     # conv taps
           pl.BlockSpec((n_conv, R, 1), inv3),                         # conv bias
           pl.BlockSpec((n_conv - 1, R, 1), inv3),                     # bn scale
           pl.BlockSpec((n_conv - 1, R, 1), inv3),                     # bn shift
           pl.BlockSpec((Nb * COP, R), inv2),                          # 1x1 (BN folded)
           pl.BlockSpec((Nb * COP, 1), inv2)]                          # 1x1 bias
    )

    out = pl.pallas_call(
        kernel,
        out_shape=jax.ShapeDtypeStruct((N_pad, COP, hw_out), jnp.float32),
        grid=(steps,),
        in_specs=in_specs,
        out_specs=pl.BlockSpec((Nb, COP, hw_out), lambda n: (n, 0, 0)),
        scratch_shapes=[pltpu.VMEM((R, pad_w), jnp.float32)],   # padded image
        compiler_params=pltpu.CompilerParams(
            dimension_semantics=("parallel",)),
    )(scale, x_exp, w_lin2, b_lin2, *u_mats, *masks,
      w_conv, b_conv, bn_s, bn_t, w_out_bd, b_out_t)

    return out[:N, :CoutF].reshape(N, CoutF, oh, ow)          # NCHW, like PyTorch


def conv_model_reference(params, x, scale_out=1.0):
    """Pure-JAX (XLA, f32) reference with identical eval-mode semantics."""
    N = x.shape[0]
    Cc = params["num_channels"]
    ih, iw = params["in_size"]
    num_layers = params["num_layers"]
    conv_sizes, _, has_up = _layer_plan(num_layers, params["in_size"],
                                        params["out_size"])
    h = jnp.maximum(x @ params["w_lin"] + params["b_lin"], 0.0)
    a = h.reshape(N, Cc, ih, iw)
    for l, (lh, lw) in enumerate(conv_sizes):
        if has_up[l]:
            sh, sw = a.shape[2], a.shape[3]
            iy = jnp.asarray(np.floor(np.arange(lh) * (sh / lh)).astype(np.int32))
            ix = jnp.asarray(np.floor(np.arange(lw) * (sw / lw)).astype(np.int32))
            a = jnp.take(jnp.take(a, iy, axis=2), ix, axis=3)
        a = jax.lax.conv_general_dilated(
            a, params["conv_w"][l], (1, 1), "SAME",
            dimension_numbers=("NCHW", "OIHW", "NCHW"))
        a = jnp.maximum(a + params["conv_b"][l][None, :, None, None], 0.0)
        a = (a * params["bn_scale"][l][None, :, None, None]
             + params["bn_shift"][l][None, :, None, None])
    y = jnp.einsum("oc,nchw->nohw", params["w_out"], a)
    y = y + params["b_out"][None, :, None, None]
    return y * scale_out


def init_conv_model_params(key, latent_dim, num_layers, num_channels,
                           num_output_channels, out_size, in_size):
    # The PyTorch module only type-checks if num_channels == 5 (the Unflatten
    # produces 5 channels that feed the first Conv2d(num_channels, ...)).
    assert num_channels == 5, "num_channels must be 5 (Unflatten gives 5 channels)"
    assert num_layers >= 2
    eps = 1e-5
    n_conv = num_layers
    Cc = num_channels
    feat = Cc * in_size[0] * in_size[1]
    ks = iter(jax.random.split(key, 4 + 6 * n_conv))

    conv_w, conv_b, bn_s, bn_t = [], [], [], []
    for _ in range(n_conv):
        conv_w.append(0.2 * jax.random.normal(next(ks), (Cc, Cc, 3, 3), jnp.float32))
        conv_b.append(0.1 * jax.random.normal(next(ks), (Cc,), jnp.float32))
        gamma = 1.0 + 0.1 * jax.random.normal(next(ks), (Cc,), jnp.float32)
        beta = 0.1 * jax.random.normal(next(ks), (Cc,), jnp.float32)
        rmean = 0.1 * jax.random.normal(next(ks), (Cc,), jnp.float32)
        rvar = jax.random.uniform(next(ks), (Cc,), jnp.float32, 0.5, 1.5)
        sc = gamma / jnp.sqrt(rvar + eps)
        bn_s.append(sc)
        bn_t.append(beta - rmean * sc)

    return {
        "num_layers": num_layers,
        "num_channels": Cc,
        "num_output_channels": num_output_channels,
        "in_size": tuple(in_size),
        "out_size": tuple(out_size),
        "w_lin": 0.2 * jax.random.normal(next(ks), (latent_dim, feat), jnp.float32),
        "b_lin": 0.1 * jax.random.normal(next(ks), (feat,), jnp.float32),
        # conv weights kept in the PyTorch Conv2d layout (Cout, Cin, kh, kw);
        # conv_model_forward repacks them into per-tap block-diagonal form.
        "conv_w": jnp.stack(conv_w),
        "conv_b": jnp.stack(conv_b),
        "bn_scale": jnp.stack(bn_s),
        "bn_shift": jnp.stack(bn_t),
        "w_out": 0.2 * jax.random.normal(
            next(ks), (num_output_channels, Cc), jnp.float32),
        "b_out": 0.1 * jax.random.normal(
            next(ks), (num_output_channels,), jnp.float32),
    }


if __name__ == "__main__":
    latent_dim = 8
    num_layers = 3
    num_channels = 5          # fixed by the module's Unflatten(1, (5, ih, iw))
    num_output_channels = 3
    in_size = (4, 4)
    out_size = (16, 16)
    batch = 2

    key = jax.random.PRNGKey(0)
    pkey, xkey = jax.random.split(key)
    params = init_conv_model_params(pkey, latent_dim, num_layers, num_channels,
                                    num_output_channels, out_size, in_size)
    x = jax.random.normal(xkey, (batch, latent_dim), jnp.float32)

    out = jax.block_until_ready(conv_model_forward(params, x, scale_out=2.0))
    assert out.shape == (batch, num_output_channels, out_size[0], out_size[1]), out.shape
    assert bool(jnp.all(jnp.isfinite(out)))

    ref = jax.block_until_ready(conv_model_reference(params, x, scale_out=2.0))
    # MXU operands are bf16 (f32 accumulation) per the perf guidance, while the
    # reference is pure f32 XLA; typical |err| ~ 5e-3, so compare at 3e-2.
    err = float(jnp.max(jnp.abs(out - ref)))
    assert bool(jnp.allclose(out, ref, rtol=3e-2, atol=3e-2)), (
        "max abs err = %f" % err)

    print("KERNEL_OK")
</pallas_src>

<mosaic_0001>
module attributes {stable_mosaic.version = 11 : i64} {
  func.func @kernel(%arg0: i32, %arg1: memref<1x1xf32, #tpu.memory_space<smem>>, %arg2: memref<1x8x64xf32, #tpu.memory_space<vmem>>, %arg3: memref<64x16xbf16, #tpu.memory_space<vmem>>, %arg4: memref<8x16xf32, #tpu.memory_space<vmem>>, %arg5: memref<16x64xbf16, #tpu.memory_space<vmem>>, %arg6: memref<64x256xbf16, #tpu.memory_space<vmem>>, %arg7: memref<2x8x64xf32, #tpu.memory_space<vmem>>, %arg8: memref<2x8x256xf32, #tpu.memory_space<vmem>>, %arg9: memref<2x8x256xf32, #tpu.memory_space<vmem>>, %arg10: memref<27x8x8xbf16, #tpu.memory_space<vmem>>, %arg11: memref<3x8x1xf32, #tpu.memory_space<vmem>>, %arg12: memref<2x8x1xf32, #tpu.memory_space<vmem>>, %arg13: memref<2x8x1xf32, #tpu.memory_space<vmem>>, %arg14: memref<8x8xbf16, #tpu.memory_space<vmem>>, %arg15: memref<8x1xf32, #tpu.memory_space<vmem>>, %arg16: memref<1x8x256xf32, #tpu.memory_space<vmem>>, %arg17: memref<8x290xf32, #tpu.memory_space<vmem>>) attributes {dimension_semantics = [#tpu.dimension_semantics<parallel>], iteration_bounds = array<i64: 2>, scalar_prefetch = 0 : i64, scratch_operands = 1 : i64, tpu.core_type = #tpu.core_type<tc>, window_params = [{transform_indices = @transform_0, window_bounds = array<i64: 1, 1>}, {transform_indices = @transform_1, window_bounds = array<i64: 1, 8, 64>}, {pipeline_mode = #tpu.pipeline_mode<synchronous>, transform_indices = @transform_2, window_bounds = array<i64: 64, 16>}, {pipeline_mode = #tpu.pipeline_mode<synchronous>, transform_indices = @transform_3, window_bounds = array<i64: 8, 16>}, {pipeline_mode = #tpu.pipeline_mode<synchronous>, transform_indices = @transform_4, window_bounds = array<i64: 16, 64>}, {pipeline_mode = #tpu.pipeline_mode<synchronous>, transform_indices = @transform_5, window_bounds = array<i64: 64, 256>}, {pipeline_mode = #tpu.pipeline_mode<synchronous>, transform_indices = @transform_6, window_bounds = array<i64: 2, 8, 64>}, {pipeline_mode = #tpu.pipeline_mode<synchronous>, transform_indices = @transform_7, window_bounds = array<i64: 2, 8, 256>}, {pipeline_mode = #tpu.pipeline_mode<synchronous>, transform_indices = @transform_8, window_bounds = array<i64: 2, 8, 256>}, {pipeline_mode = #tpu.pipeline_mode<synchronous>, transform_indices = @transform_9, window_bounds = array<i64: 27, 8, 8>}, {pipeline_mode = #tpu.pipeline_mode<synchronous>, transform_indices = @transform_10, window_bounds = array<i64: 3, 8, 1>}, {pipeline_mode = #tpu.pipeline_mode<synchronous>, transform_indices = @transform_11, window_bounds = array<i64: 2, 8, 1>}, {pipeline_mode = #tpu.pipeline_mode<synchronous>, transform_indices = @transform_12, window_bounds = array<i64: 2, 8, 1>}, {pipeline_mode = #tpu.pipeline_mode<synchronous>, transform_indices = @transform_13, window_bounds = array<i64: 8, 8>}, {pipeline_mode = #tpu.pipeline_mode<synchronous>, transform_indices = @transform_14, window_bounds = array<i64: 8, 1>}, {transform_indices = @transform_15, window_bounds = array<i64: 1, 8, 256>}]} {
    %c0 = arith.constant 0 : index
    %c0_0 = arith.constant 0 : index
    %c0_1 = arith.constant 0 : index
    %0 = vector.load %arg2[%c0, %c0_0, %c0_1] : memref<1x8x64xf32, #tpu.memory_space<vmem>>, vector<1x8x64xf32>
    %1 = vector.shape_cast %0 : vector<1x8x64xf32> to vector<8x64xf32>
    %2 = arith.truncf %1 : vector<8x64xf32> to vector<8x64xbf16>
    %c0_2 = arith.constant 0 : index
    %c0_3 = arith.constant 0 : index
    %3 = vector.load %arg3[%c0_2, %c0_3] : memref<64x16xbf16, #tpu.memory_space<vmem>>, vector<64x16xbf16>
    %cst = arith.constant dense<0.000000e+00> : vector<8x16xf32>
    %4 = tpu.matmul %2, %3, %cst {dimension_numbers = #tpu.dot_dimension_numbers<[1], [0], [0], [1], [0, 0, 1, 1], [], []>} : vector<8x64xbf16>, vector<64x16xbf16>, vector<8x16xf32> -> vector<8x16xf32>
    %c0_4 = arith.constant 0 : index
    %c0_5 = arith.constant 0 : index
    %5 = vector.load %arg4[%c0_4, %c0_5] : memref<8x16xf32, #tpu.memory_space<vmem>>, vector<8x16xf32>
    %6 = arith.addf %4, %5 : vector<8x16xf32>
    %cst_6 = arith.constant 0.000000e+00 : f32
    %7 = vector.broadcast %cst_6 : f32 to vector<8x16xf32>
    %8 = arith.maximumf %6, %7 : vector<8x16xf32>
    %cst_7 = arith.constant 0.000000e+00 : f32
    %9 = vector.broadcast %cst_7 : f32 to vector<8x290xf32>
    %c0_8 = arith.constant 0 : index
    %c0_9 = arith.constant 0 : index
    %10 = vector.load %arg17[%c0_8, %c0_9] : memref<8x290xf32, #tpu.memory_space<vmem>>, vector<8x290xf32>
    tpu.vector_store %arg17[%c0_8, %c0_9], %9 {strides = array<i32>} : memref<8x290xf32, #tpu.memory_space<vmem>>, vector<8x290xf32>,
    %11 = arith.truncf %8 : vector<8x16xf32> to vector<8x16xbf16>
    %c0_10 = arith.constant 0 : index
    %c0_11 = arith.constant 0 : index
    %12 = vector.load %arg5[%c0_10, %c0_11] : memref<16x64xbf16, #tpu.memory_space<vmem>>, vector<16x64xbf16>
    %cst_12 = arith.constant dense<0.000000e+00> : vector<8x64xf32>
    %13 = tpu.matmul %11, %12, %cst_12 {dimension_numbers = #tpu.dot_dimension_numbers<[1], [0], [0], [1], [0, 0, 1, 1], [], []>} : vector<8x16xbf16>, vector<16x64xbf16>, vector<8x64xf32> -> vector<8x64xf32>
    %c0_13 = arith.constant 0 : index
    %c17 = arith.constant 17 : index
    %14 = vector.load %arg17[%c0_13, %c17] : memref<8x290xf32, #tpu.memory_space<vmem>>, vector<8x64xf32>
    tpu.vector_store %arg17[%c0_13, %c17], %13 {strides = array<i32>} : memref<8x290xf32, #tpu.memory_space<vmem>>, vector<8x64xf32>,
    %c0_14 = arith.constant 0 : index
    %c0_15 = arith.constant 0 : index
    %c0_16 = arith.constant 0 : index
    %15 = vector.load %arg7[%c0_14, %c0_15, %c0_16] : memref<2x8x64xf32, #tpu.memory_space<vmem>>, vector<1x8x64xf32>
    %16 = vector.shape_cast %15 : vector<1x8x64xf32> to vector<8x64xf32>
    %c1 = arith.constant 1 : index
    %c0_17 = arith.constant 0 : index
    %c0_18 = arith.constant 0 : index
    %17 = vector.load %arg7[%c1, %c0_17, %c0_18] : memref<2x8x64xf32, #tpu.memory_space<vmem>>, vector<1x8x64xf32>
    %18 = vector.shape_cast %17 : vector<1x8x64xf32> to vector<8x64xf32>
    %c0_19 = arith.constant 0 : index
    %c8 = arith.constant 8 : index
    %19 = vector.load %arg17[%c0_19, %c8] : memref<8x290xf32, #tpu.memory_space<vmem>>, vector<8x64xf32>
    %20 = arith.mulf %19, %16 : vector<8x64xf32>
    %c0_20 = arith.constant 0 : index
    %c0_21 = arith.constant 0 : index
    %c0_22 = arith.constant 0 : index
    %21 = vector.load %arg10[%c0_20, %c0_21, %c0_22] : memref<27x8x8xbf16, #tpu.memory_space<vmem>>, vector<1x8x8xbf16>
    %22 = vector.shape_cast %21 : vector<1x8x8xbf16> to vector<8x8xbf16>
    %23 = arith.truncf %20 : vector<8x64xf32> to vector<8x64xbf16>
    %cst_23 = arith.constant dense<0.000000e+00> : vector<8x64xf32>
    %24 = tpu.matmul %22, %23, %cst_23 {dimension_numbers = #tpu.dot_dimension_numbers<[1], [0], [0], [1], [0, 0, 1, 1], [], []>} : vector<8x8xbf16>, vector<8x64xbf16>, vector<8x64xf32> -> vector<8x64xf32>
    %c0_24 = arith.constant 0 : index
    %c9 = arith.constant 9 : index
    %25 = vector.load %arg17[%c0_24, %c9] : memref<8x290xf32, #tpu.memory_space<vmem>>, vector<8x64xf32>
    %c1_25 = arith.constant 1 : index
    %c0_26 = arith.constant 0 : index
    %c0_27 = arith.constant 0 : index
    %26 = vector.load %arg10[%c1_25, %c0_26, %c0_27] : memref<27x8x8xbf16, #tpu.memory_space<vmem>>, vector<1x8x8xbf16>
    %27 = vector.shape_cast %26 : vector<1x8x8xbf16> to vector<8x8xbf16>
    %28 = arith.truncf %25 : vector<8x64xf32> to vector<8x64xbf16>
    %cst_28 = arith.constant dense<0.000000e+00> : vector<8x64xf32>
    %29 = tpu.matmul %27, %28, %cst_28 {dimension_numbers = #tpu.dot_dimension_numbers<[1], [0], [0], [1], [0, 0, 1, 1], [], []>} : vector<8x8xbf16>, vector<8x64xbf16>, vector<8x64xf32> -> vector<8x64xf32>
    %30 = arith.addf %24, %29 : vector<8x64xf32>
    %c0_29 = arith.constant 0 : index
    %c10 = arith.constant 10 : index
    %31 = vector.load %arg17[%c0_29, %c10] : memref<8x290xf32, #tpu.memory_space<vmem>>, vector<8x64xf32>
    %32 = arith.mulf %31, %18 : vector<8x64xf32>
    %c2 = arith.constant 2 : index
    %c0_30 = arith.constant 0 : index
    %c0_31 = arith.constant 0 : index
    %33 = vector.load %arg10[%c2, %c0_30, %c0_31] : memref<27x8x8xbf16, #tpu.memory_space<vmem>>, vector<1x8x8xbf16>
    %34 = vector.shape_cast %33 : vector<1x8x8xbf16> to vector<8x8xbf16>
    %35 = arith.truncf %32 : vector<8x64xf32> to vector<8x64xbf16>
    %cst_32 = arith.constant dense<0.000000e+00> : vector<8x64xf32>
    %36 = tpu.matmul %34, %35, %cst_32 {dimension_numbers = #tpu.dot_dimension_numbers<[1], [0], [0], [1], [0, 0, 1, 1], [], []>} : vector<8x8xbf16>, vector<8x64xbf16>, vector<8x64xf32> -> vector<8x64xf32>
    %37 = arith.addf %30, %36 : vector<8x64xf32>
    %c0_33 = arith.constant 0 : index
    %c16 = arith.constant 16 : index
    %38 = vector.load %arg17[%c0_33, %c16] : memref<8x290xf32, #tpu.memory_space<vmem>>, vector<8x64xf32>
    %39 = arith.mulf %38, %16 : vector<8x64xf32>
    %c3 = arith.constant 3 : index
    %c0_34 = arith.constant 0 : index
    %c0_35 = arith.constant 0 : index
    %40 = vector.load %arg10[%c3, %c0_34, %c0_35] : memref<27x8x8xbf16, #tpu.memory_space<vmem>>, vector<1x8x8xbf16>
    %41 = vector.shape_cast %40 : vector<1x8x8xbf16> to vector<8x8xbf16>
    %42 = arith.truncf %39 : vector<8x64xf32> to vector<8x64xbf16>
    %cst_36 = arith.constant dense<0.000000e+00> : vector<8x64xf32>
    %43 = tpu.matmul %41, %42, %cst_36 {dimension_numbers = #tpu.dot_dimension_numbers<[1], [0], [0], [1], [0, 0, 1, 1], [], []>} : vector<8x8xbf16>, vector<8x64xbf16>, vector<8x64xf32> -> vector<8x64xf32>
    %44 = arith.addf %37, %43 : vector<8x64xf32>
    %c0_37 = arith.constant 0 : index
    %c17_38 = arith.constant 17 : index
    %45 = vector.load %arg17[%c0_37, %c17_38] : memref<8x290xf32, #tpu.memory_space<vmem>>, vector<8x64xf32>
    %c4 = arith.constant 4 : index
    %c0_39 = arith.constant 0 : index
    %c0_40 = arith.constant 0 : index
    %46 = vector.load %arg10[%c4, %c0_39, %c0_40] : memref<27x8x8xbf16, #tpu.memory_space<vmem>>, vector<1x8x8xbf16>
    %47 = vector.shape_cast %46 : vector<1x8x8xbf16> to vector<8x8xbf16>
    %48 = arith.truncf %45 : vector<8x64xf32> to vector<8x64xbf16>
    %cst_41 = arith.constant dense<0.000000e+00> : vector<8x64xf32>
    %49 = tpu.matmul %47, %48, %cst_41 {dimension_numbers = #tpu.dot_dimension_numbers<[1], [0], [0], [1], [0, 0, 1, 1], [], []>} : vector<8x8xbf16>, vector<8x64xbf16>, vector<8x64xf32> -> vector<8x64xf32>
    %50 = arith.addf %44, %49 : vector<8x64xf32>
    %c0_42 = arith.constant 0 : index
    %c18 = arith.constant 18 : index
    %51 = vector.load %arg17[%c0_42, %c18] : memref<8x290xf32, #tpu.memory_space<vmem>>, vector<8x64xf32>
    %52 = arith.mulf %51, %18 : vector<8x64xf32>
    %c5 = arith.constant 5 : index
    %c0_43 = arith.constant 0 : index
    %c0_44 = arith.constant 0 : index
    %53 = vector.load %arg10[%c5, %c0_43, %c0_44] : memref<27x8x8xbf16, #tpu.memory_space<vmem>>, vector<1x8x8xbf16>
    %54 = vector.shape_cast %53 : vector<1x8x8xbf16> to vector<8x8xbf16>
    %55 = arith.truncf %52 : vector<8x64xf32> to vector<8x64xbf16>
    %cst_45 = arith.constant dense<0.000000e+00> : vector<8x64xf32>
    %56 = tpu.matmul %54, %55, %cst_45 {dimension_numbers = #tpu.dot_dimension_numbers<[1], [0], [0], [1], [0, 0, 1, 1], [], []>} : vector<8x8xbf16>, vector<8x64xbf16>, vector<8x64xf32> -> vector<8x64xf32>
    %57 = arith.addf %50, %56 : vector<8x64xf32>
    %c0_46 = arith.constant 0 : index
    %c24 = arith.constant 24 : index
    %58 = vector.load %arg17[%c0_46, %c24] : memref<8x290xf32, #tpu.memory_space<vmem>>, vector<8x64xf32>
    %59 = arith.mulf %58, %16 : vector<8x64xf32>
    %c6 = arith.constant 6 : index
    %c0_47 = arith.constant 0 : index
    %c0_48 = arith.constant 0 : index
    %60 = vector.load %arg10[%c6, %c0_47, %c0_48] : memref<27x8x8xbf16, #tpu.memory_space<vmem>>, vector<1x8x8xbf16>
    %61 = vector.shape_cast %60 : vector<1x8x8xbf16> to vector<8x8xbf16>
    %62 = arith.truncf %59 : vector<8x64xf32> to vector<8x64xbf16>
    %cst_49 = arith.constant dense<0.000000e+00> : vector<8x64xf32>
    %63 = tpu.matmul %61, %62, %cst_49 {dimension_numbers = #tpu.dot_dimension_numbers<[1], [0], [0], [1], [0, 0, 1, 1], [], []>} : vector<8x8xbf16>, vector<8x64xbf16>, vector<8x64xf32> -> vector<8x64xf32>
    %64 = arith.addf %57, %63 : vector<8x64xf32>
    %c0_50 = arith.constant 0 : index
    %c25 = arith.constant 25 : index
    %65 = vector.load %arg17[%c0_50, %c25] : memref<8x290xf32, #tpu.memory_space<vmem>>, vector<8x64xf32>
    %c7 = arith.constant 7 : index
    %c0_51 = arith.constant 0 : index
    %c0_52 = arith.constant 0 : index
    %66 = vector.load %arg10[%c7, %c0_51, %c0_52] : memref<27x8x8xbf16, #tpu.memory_space<vmem>>, vector<1x8x8xbf16>
    %67 = vector.shape_cast %66 : vector<1x8x8xbf16> to vector<8x8xbf16>
    %68 = arith.truncf %65 : vector<8x64xf32> to vector<8x64xbf16>
    %cst_53 = arith.constant dense<0.000000e+00> : vector<8x64xf32>
    %69 = tpu.matmul %67, %68, %cst_53 {dimension_numbers = #tpu.dot_dimension_numbers<[1], [0], [0], [1], [0, 0, 1, 1], [], []>} : vector<8x8xbf16>, vector<8x64xbf16>, vector<8x64xf32> -> vector<8x64xf32>
    %70 = arith.addf %64, %69 : vector<8x64xf32>
    %c0_54 = arith.constant 0 : index
    %c26 = arith.constant 26 : index
    %71 = vector.load %arg17[%c0_54, %c26] : memref<8x290xf32, #tpu.memory_space<vmem>>, vector<8x64xf32>
    %72 = arith.mulf %71, %18 : vector<8x64xf32>
    %c8_55 = arith.constant 8 : index
    %c0_56 = arith.constant 0 : index
    %c0_57 = arith.constant 0 : index
    %73 = vector.load %arg10[%c8_55, %c0_56, %c0_57] : memref<27x8x8xbf16, #tpu.memory_space<vmem>>, vector<1x8x8xbf16>
    %74 = vector.shape_cast %73 : vector<1x8x8xbf16> to vector<8x8xbf16>
    %75 = arith.truncf %72 : vector<8x64xf32> to vector<8x64xbf16>
    %cst_58 = arith.constant dense<0.000000e+00> : vector<8x64xf32>
    %76 = tpu.matmul %74, %75, %cst_58 {dimension_numbers = #tpu.dot_dimension_numbers<[1], [0], [0], [1], [0, 0, 1, 1], [], []>} : vector<8x8xbf16>, vector<8x64xbf16>, vector<8x64xf32> -> vector<8x64xf32>
    %77 = arith.addf %70, %76 : vector<8x64xf32>
    %c0_59 = arith.constant 0 : index
    %c0_60 = arith.constant 0 : index
    %c0_61 = arith.constant 0 : index
    %78 = vector.load %arg11[%c0_59, %c0_60, %c0_61] : memref<3x8x1xf32, #tpu.memory_space<vmem>>, vector<1x8x1xf32>
    %79 = vector.shape_cast %78 : vector<1x8x1xf32> to vector<8x1xf32>
    %80 = vector.broadcast %79 : vector<8x1xf32> to vector<8x64xf32>
    %81 = arith.addf %77, %80 : vector<8x64xf32>
    %cst_62 = arith.constant 0.000000e+00 : f32
    %82 = vector.broadcast %cst_62 : f32 to vector<8x64xf32>
    %83 = arith.maximumf %81, %82 : vector<8x64xf32>
    %c0_63 = arith.constant 0 : index
    %c0_64 = arith.constant 0 : index
    %c0_65 = arith.constant 0 : index
    %84 = vector.load %arg12[%c0_63, %c0_64, %c0_65] : memref<2x8x1xf32, #tpu.memory_space<vmem>>, vector<1x8x1xf32>
    %85 = vector.shape_cast %84 : vector<1x8x1xf32> to vector<8x1xf32>
    %86 = vector.broadcast %85 : vector<8x1xf32> to vector<8x64xf32>
    %87 = arith.mulf %83, %86 : vector<8x64xf32>
    %c0_66 = arith.constant 0 : index
    %c0_67 = arith.constant 0 : index
    %c0_68 = arith.constant 0 : index
    %88 = vector.load %arg13[%c0_66, %c0_67, %c0_68] : memref<2x8x1xf32, #tpu.memory_space<vmem>>, vector<1x8x1xf32>
    %89 = vector.shape_cast %88 : vector<1x8x1xf32> to vector<8x1xf32>
    %90 = vector.broadcast %89 : vector<8x1xf32> to vector<8x64xf32>
    %91 = arith.addf %87, %90 : vector<8x64xf32>
    %92 = arith.truncf %91 : vector<8x64xf32> to vector<8x64xbf16>
    %c0_69 = arith.constant 0 : index
    %c0_70 = arith.constant 0 : index
    %93 = vector.load %arg6[%c0_69, %c0_70] : memref<64x256xbf16, #tpu.memory_space<vmem>>, vector<64x256xbf16>
    %cst_71 = arith.constant dense<0.000000e+00> : vector<8x256xf32>
    %94 = tpu.matmul %92, %93, %cst_71 {dimension_numbers = #tpu.dot_dimension_numbers<[1], [0], [0], [1], [0, 0, 1, 1], [], []>} : vector<8x64xbf16>, vector<64x256xbf16>, vector<8x256xf32> -> vector<8x256xf32>
    %c0_72 = arith.constant 0 : index
    %c17_73 = arith.constant 17 : index
    %95 = vector.load %arg17[%c0_72, %c17_73] : memref<8x290xf32, #tpu.memory_space<vmem>>, vector<8x256xf32>
    tpu.vector_store %arg17[%c0_72, %c17_73], %94 {strides = array<i32>} : memref<8x290xf32, #tpu.memory_space<vmem>>, vector<8x256xf32>,
    %c0_74 = arith.constant 0 : index
    %c0_75 = arith.constant 0 : index
    %c0_76 = arith.constant 0 : index
    %96 = vector.load %arg8[%c0_74, %c0_75, %c0_76] : memref<2x8x256xf32, #tpu.memory_space<vmem>>, vector<1x8x256xf32>
    %97 = vector.shape_cast %96 : vector<1x8x256xf32> to vector<8x256xf32>
    %c1_77 = arith.constant 1 : index
    %c0_78 = arith.constant 0 : index
    %c0_79 = arith.constant 0 : index
    %98 = vector.load %arg8[%c1_77, %c0_78, %c0_79] : memref<2x8x256xf32, #tpu.memory_space<vmem>>, vector<1x8x256xf32>
    %99 = vector.shape_cast %98 : vector<1x8x256xf32> to vector<8x256xf32>
    %c0_80 = arith.constant 0 : index
    %c0_81 = arith.constant 0 : index
    %100 = vector.load %arg17[%c0_80, %c0_81] : memref<8x290xf32, #tpu.memory_space<vmem>>, vector<8x256xf32>
    %101 = arith.mulf %100, %97 : vector<8x256xf32>
    %c9_82 = arith.constant 9 : index
    %c0_83 = arith.constant 0 : index
    %c0_84 = arith.constant 0 : index
    %102 = vector.load %arg10[%c9_82, %c0_83, %c0_84] : memref<27x8x8xbf16, #tpu.memory_space<vmem>>, vector<1x8x8xbf16>
    %103 = vector.shape_cast %102 : vector<1x8x8xbf16> to vector<8x8xbf16>
    %104 = arith.truncf %101 : vector<8x256xf32> to vector<8x256xbf16>
    %cst_85 = arith.constant dense<0.000000e+00> : vector<8x256xf32>
    %105 = tpu.matmul %103, %104, %cst_85 {dimension_numbers = #tpu.dot_dimension_numbers<[1], [0], [0], [1], [0, 0, 1, 1], [], []>} : vector<8x8xbf16>, vector<8x256xbf16>, vector<8x256xf32> -> vector<8x256xf32>
    %c0_86 = arith.constant 0 : index
    %c1_87 = arith.constant 1 : index
    %106 = vector.load %arg17[%c0_86, %c1_87] : memref<8x290xf32, #tpu.memory_space<vmem>>, vector<8x256xf32>
    %c10_88 = arith.constant 10 : index
    %c0_89 = arith.constant 0 : index
    %c0_90 = arith.constant 0 : index
    %107 = vector.load %arg10[%c10_88, %c0_89, %c0_90] : memref<27x8x8xbf16, #tpu.memory_space<vmem>>, vector<1x8x8xbf16>
    %108 = vector.shape_cast %107 : vector<1x8x8xbf16> to vector<8x8xbf16>
    %109 = arith.truncf %106 : vector<8x256xf32> to vector<8x256xbf16>
    %cst_91 = arith.constant dense<0.000000e+00> : vector<8x256xf32>
    %110 = tpu.matmul %108, %109, %cst_91 {dimension_numbers = #tpu.dot_dimension_numbers<[1], [0], [0], [1], [0, 0, 1, 1], [], []>} : vector<8x8xbf16>, vector<8x256xbf16>, vector<8x256xf32> -> vector<8x256xf32>
    %111 = arith.addf %105, %110 : vector<8x256xf32>
    %c0_92 = arith.constant 0 : index
    %c2_93 = arith.constant 2 : index
    %112 = vector.load %arg17[%c0_92, %c2_93] : memref<8x290xf32, #tpu.memory_space<vmem>>, vector<8x256xf32>
    %113 = arith.mulf %112, %99 : vector<8x256xf32>
    %c11 = arith.constant 11 : index
    %c0_94 = arith.constant 0 : index
    %c0_95 = arith.constant 0 : index
    %114 = vector.load %arg10[%c11, %c0_94, %c0_95] : memref<27x8x8xbf16, #tpu.memory_space<vmem>>, vector<1x8x8xbf16>
    %115 = vector.shape_cast %114 : vector<1x8x8xbf16> to vector<8x8xbf16>
    %116 = arith.truncf %113 : vector<8x256xf32> to vector<8x256xbf16>
    %cst_96 = arith.constant dense<0.000000e+00> : vector<8x256xf32>
    %117 = tpu.matmul %115, %116, %cst_96 {dimension_numbers = #tpu.dot_dimension_numbers<[1], [0], [0], [1], [0, 0, 1, 1], [], []>} : vector<8x8xbf16>, vector<8x256xbf16>, vector<8x256xf32> -> vector<8x256xf32>
    %118 = arith.addf %111, %117 : vector<8x256xf32>
    %c0_97 = arith.constant 0 : index
    %c16_98 = arith.constant 16 : index
    %119 = vector.load %arg17[%c0_97, %c16_98] : memref<8x290xf32, #tpu.memory_space<vmem>>, vector<8x256xf32>
    %120 = arith.mulf %119, %97 : vector<8x256xf32>
    %c12 = arith.constant 12 : index
    %c0_99 = arith.constant 0 : index
    %c0_100 = arith.constant 0 : index
    %121 = vector.load %arg10[%c12, %c0_99, %c0_100] : memref<27x8x8xbf16, #tpu.memory_space<vmem>>, vector<1x8x8xbf16>
    %122 = vector.shape_cast %121 : vector<1x8x8xbf16> to vector<8x8xbf16>
    %123 = arith.truncf %120 : vector<8x256xf32> to vector<8x256xbf16>
    %cst_101 = arith.constant dense<0.000000e+00> : vector<8x256xf32>
    %124 = tpu.matmul %122, %123, %cst_101 {dimension_numbers = #tpu.dot_dimension_numbers<[1], [0], [0], [1], [0, 0, 1, 1], [], []>} : vector<8x8xbf16>, vector<8x256xbf16>, vector<8x256xf32> -> vector<8x256xf32>
    %125 = arith.addf %118, %124 : vector<8x256xf32>
    %c0_102 = arith.constant 0 : index
    %c17_103 = arith.constant 17 : index
    %126 = vector.load %arg17[%c0_102, %c17_103] : memref<8x290xf32, #tpu.memory_space<vmem>>, vector<8x256xf32>
    %c13 = arith.constant 13 : index
    %c0_104 = arith.constant 0 : index
    %c0_105 = arith.constant 0 : index
    %127 = vector.load %arg10[%c13, %c0_104, %c0_105] : memref<27x8x8xbf16, #tpu.memory_space<vmem>>, vector<1x8x8xbf16>
    %128 = vector.shape_cast %127 : vector<1x8x8xbf16> to vector<8x8xbf16>
    %129 = arith.truncf %126 : vector<8x256xf32> to vector<8x256xbf16>
    %cst_106 = arith.constant dense<0.000000e+00> : vector<8x256xf32>
    %130 = tpu.matmul %128, %129, %cst_106 {dimension_numbers = #tpu.dot_dimension_numbers<[1], [0], [0], [1], [0, 0, 1, 1], [], []>} : vector<8x8xbf16>, vector<8x256xbf16>, vector<8x256xf32> -> vector<8x256xf32>
    %131 = arith.addf %125, %130 : vector<8x256xf32>
    %c0_107 = arith.constant 0 : index
    %c18_108 = arith.constant 18 : index
    %132 = vector.load %arg17[%c0_107, %c18_108] : memref<8x290xf32, #tpu.memory_space<vmem>>, vector<8x256xf32>
    %133 = arith.mulf %132, %99 : vector<8x256xf32>
    %c14 = arith.constant 14 : index
    %c0_109 = arith.constant 0 : index
    %c0_110 = arith.constant 0 : index
    %134 = vector.load %arg10[%c14, %c0_109, %c0_110] : memref<27x8x8xbf16, #tpu.memory_space<vmem>>, vector<1x8x8xbf16>
    %135 = vector.shape_cast %134 : vector<1x8x8xbf16> to vector<8x8xbf16>
    %136 = arith.truncf %133 : vector<8x256xf32> to vector<8x256xbf16>
    %cst_111 = arith.constant dense<0.000000e+00> : vector<8x256xf32>
    %137 = tpu.matmul %135, %136, %cst_111 {dimension_numbers = #tpu.dot_dimension_numbers<[1], [0], [0], [1], [0, 0, 1, 1], [], []>} : vector<8x8xbf16>, vector<8x256xbf16>, vector<8x256xf32> -> vector<8x256xf32>
    %138 = arith.addf %131, %137 : vector<8x256xf32>
    %c0_112 = arith.constant 0 : index
    %c32 = arith.constant 32 : index
    %139 = vector.load %arg17[%c0_112, %c32] : memref<8x290xf32, #tpu.memory_space<vmem>>, vector<8x256xf32>
    %140 = arith.mulf %139, %97 : vector<8x256xf32>
    %c15 = arith.constant 15 : index
    %c0_113 = arith.constant 0 : index
    %c0_114 = arith.constant 0 : index
    %141 = vector.load %arg10[%c15, %c0_113, %c0_114] : memref<27x8x8xbf16, #tpu.memory_space<vmem>>, vector<1x8x8xbf16>
    %142 = vector.shape_cast %141 : vector<1x8x8xbf16> to vector<8x8xbf16>
    %143 = arith.truncf %140 : vector<8x256xf32> to vector<8x256xbf16>
    %cst_115 = arith.constant dense<0.000000e+00> : vector<8x256xf32>
    %144 = tpu.matmul %142, %143, %cst_115 {dimension_numbers = #tpu.dot_dimension_numbers<[1], [0], [0], [1], [0, 0, 1, 1], [], []>} : vector<8x8xbf16>, vector<8x256xbf16>, vector<8x256xf32> -> vector<8x256xf32>
    %145 = arith.addf %138, %144 : vector<8x256xf32>
    %c0_116 = arith.constant 0 : index
    %c33 = arith.constant 33 : index
    %146 = vector.load %arg17[%c0_116, %c33] : memref<8x290xf32, #tpu.memory_space<vmem>>, vector<8x256xf32>
    %c16_117 = arith.constant 16 : index
    %c0_118 = arith.constant 0 : index
    %c0_119 = arith.constant 0 : index
    %147 = vector.load %arg10[%c16_117, %c0_118, %c0_119] : memref<27x8x8xbf16, #tpu.memory_space<vmem>>, vector<1x8x8xbf16>
    %148 = vector.shape_cast %147 : vector<1x8x8xbf16> to vector<8x8xbf16>
    %149 = arith.truncf %146 : vector<8x256xf32> to vector<8x256xbf16>
    %cst_120 = arith.constant dense<0.000000e+00> : vector<8x256xf32>
    %150 = tpu.matmul %148, %149, %cst_120 {dimension_numbers = #tpu.dot_dimension_numbers<[1], [0], [0], [1], [0, 0, 1, 1], [], []>} : vector<8x8xbf16>, vector<8x256xbf16>, vector<8x256xf32> -> vector<8x256xf32>
    %151 = arith.addf %145, %150 : vector<8x256xf32>
    %c0_121 = arith.constant 0 : index
    %c34 = arith.constant 34 : index
    %152 = vector.load %arg17[%c0_121, %c34] : memref<8x290xf32, #tpu.memory_space<vmem>>, vector<8x256xf32>
    %153 = arith.mulf %152, %99 : vector<8x256xf32>
    %c17_122 = arith.constant 17 : index
    %c0_123 = arith.constant 0 : index
    %c0_124 = arith.constant 0 : index
    %154 = vector.load %arg10[%c17_122, %c0_123, %c0_124] : memref<27x8x8xbf16, #tpu.memory_space<vmem>>, vector<1x8x8xbf16>
    %155 = vector.shape_cast %154 : vector<1x8x8xbf16> to vector<8x8xbf16>
    %156 = arith.truncf %153 : vector<8x256xf32> to vector<8x256xbf16>
    %cst_125 = arith.constant dense<0.000000e+00> : vector<8x256xf32>
    %157 = tpu.matmul %155, %156, %cst_125 {dimension_numbers = #tpu.dot_dimension_numbers<[1], [0], [0], [1], [0, 0, 1, 1], [], []>} : vector<8x8xbf16>, vector<8x256xbf16>, vector<8x256xf32> -> vector<8x256xf32>
    %158 = arith.addf %151, %157 : vector<8x256xf32>
    %c1_126 = arith.constant 1 : index
    %c0_127 = arith.constant 0 : index
    %c0_128 = arith.constant 0 : index
    %159 = vector.load %arg11[%c1_126, %c0_127, %c0_128] : memref<3x8x1xf32, #tpu.memory_space<vmem>>, vector<1x8x1xf32>
    %160 = vector.shape_cast %159 : vector<1x8x1xf32> to vector<8x1xf32>
    %161 = vector.broadcast %160 : vector<8x1xf32> to vector<8x256xf32>
    %162 = arith.addf %158, %161 : vector<8x256xf32>
    %cst_129 = arith.constant 0.000000e+00 : f32
    %163 = vector.broadcast %cst_129 : f32 to vector<8x256xf32>
    %164 = arith.maximumf %162, %163 : vector<8x256xf32>
    %c1_130 = arith.constant 1 : index
    %c0_131 = arith.constant 0 : index
    %c0_132 = arith.constant 0 : index
    %165 = vector.load %arg12[%c1_130, %c0_131, %c0_132] : memref<2x8x1xf32, #tpu.memory_space<vmem>>, vector<1x8x1xf32>
    %166 = vector.shape_cast %165 : vector<1x8x1xf32> to vector<8x1xf32>
    %167 = vector.broadcast %166 : vector<8x1xf32> to vector<8x256xf32>
    %168 = arith.mulf %164, %167 : vector<8x256xf32>
    %c1_133 = arith.constant 1 : index
    %c0_134 = arith.constant 0 : index
    %c0_135 = arith.constant 0 : index
    %169 = vector.load %arg13[%c1_133, %c0_134, %c0_135] : memref<2x8x1xf32, #tpu.memory_space<vmem>>, vector<1x8x1xf32>
    %170 = vector.shape_cast %169 : vector<1x8x1xf32> to vector<8x1xf32>
    %171 = vector.broadcast %170 : vector<8x1xf32> to vector<8x256xf32>
    %172 = arith.addf %168, %171 : vector<8x256xf32>
    %c0_136 = arith.constant 0 : index
    %c17_137 = arith.constant 17 : index
    %173 = vector.load %arg17[%c0_136, %c17_137] : memref<8x290xf32, #tpu.memory_space<vmem>>, vector<8x256xf32>
    tpu.vector_store %arg17[%c0_136, %c17_137], %172 {strides = array<i32>} : memref<8x290xf32, #tpu.memory_space<vmem>>, vector<8x256xf32>,
    %c0_138 = arith.constant 0 : index
    %c0_139 = arith.constant 0 : index
    %c0_140 = arith.constant 0 : index
    %174 = vector.load %arg9[%c0_138, %c0_139, %c0_140] : memref<2x8x256xf32, #tpu.memory_space<vmem>>, vector<1x8x256xf32>
    %175 = vector.shape_cast %174 : vector<1x8x256xf32> to vector<8x256xf32>
    %c1_141 = arith.constant 1 : index
    %c0_142 = arith.constant 0 : index
    %c0_143 = arith.constant 0 : index
    %176 = vector.load %arg9[%c1_141, %c0_142, %c0_143] : memref<2x8x256xf32, #tpu.memory_space<vmem>>, vector<1x8x256xf32>
    %177 = vector.shape_cast %176 : vector<1x8x256xf32> to vector<8x256xf32>
    %c0_144 = arith.constant 0 : index
    %c0_145 = arith.constant 0 : index
    %178 = vector.load %arg17[%c0_144, %c0_145] : memref<8x290xf32, #tpu.memory_space<vmem>>, vector<8x256xf32>
    %179 = arith.mulf %178, %175 : vector<8x256xf32>
    %c18_146 = arith.constant 18 : index
    %c0_147 = arith.constant 0 : index
    %c0_148 = arith.constant 0 : index
    %180 = vector.load %arg10[%c18_146, %c0_147, %c0_148] : memref<27x8x8xbf16, #tpu.memory_space<vmem>>, vector<1x8x8xbf16>
    %181 = vector.shape_cast %180 : vector<1x8x8xbf16> to vector<8x8xbf16>
    %182 = arith.truncf %179 : vector<8x256xf32> to vector<8x256xbf16>
    %cst_149 = arith.constant dense<0.000000e+00> : vector<8x256xf32>
    %183 = tpu.matmul %181, %182, %cst_149 {dimension_numbers = #tpu.dot_dimension_numbers<[1], [0], [0], [1], [0, 0, 1, 1], [], []>} : vector<8x8xbf16>, vector<8x256xbf16>, vector<8x256xf32> -> vector<8x256xf32>
    %c0_150 = arith.constant 0 : index
    %c1_151 = arith.constant 1 : index
    %184 = vector.load %arg17[%c0_150, %c1_151] : memref<8x290xf32, #tpu.memory_space<vmem>>, vector<8x256xf32>
    %c19 = arith.constant 19 : index
    %c0_152 = arith.constant 0 : index
    %c0_153 = arith.constant 0 : index
    %185 = vector.load %arg10[%c19, %c0_152, %c0_153] : memref<27x8x8xbf16, #tpu.memory_space<vmem>>, vector<1x8x8xbf16>
    %186 = vector.shape_cast %185 : vector<1x8x8xbf16> to vector<8x8xbf16>
    %187 = arith.truncf %184 : vector<8x256xf32> to vector<8x256xbf16>
    %cst_154 = arith.constant dense<0.000000e+00> : vector<8x256xf32>
    %188 = tpu.matmul %186, %187, %cst_154 {dimension_numbers = #tpu.dot_dimension_numbers<[1], [0], [0], [1], [0, 0, 1, 1], [], []>} : vector<8x8xbf16>, vector<8x256xbf16>, vector<8x256xf32> -> vector<8x256xf32>
    %189 = arith.addf %183, %188 : vector<8x256xf32>
    %c0_155 = arith.constant 0 : index
    %c2_156 = arith.constant 2 : index
    %190 = vector.load %arg17[%c0_155, %c2_156] : memref<8x290xf32, #tpu.memory_space<vmem>>, vector<8x256xf32>
    %191 = arith.mulf %190, %177 : vector<8x256xf32>
    %c20 = arith.constant 20 : index
    %c0_157 = arith.constant 0 : index
    %c0_158 = arith.constant 0 : index
    %192 = vector.load %arg10[%c20, %c0_157, %c0_158] : memref<27x8x8xbf16, #tpu.memory_space<vmem>>, vector<1x8x8xbf16>
    %193 = vector.shape_cast %192 : vector<1x8x8xbf16> to vector<8x8xbf16>
    %194 = arith.truncf %191 : vector<8x256xf32> to vector<8x256xbf16>
    %cst_159 = arith.constant dense<0.000000e+00> : vector<8x256xf32>
    %195 = tpu.matmul %193, %194, %cst_159 {dimension_numbers = #tpu.dot_dimension_numbers<[1], [0], [0], [1], [0, 0, 1, 1], [], []>} : vector<8x8xbf16>, vector<8x256xbf16>, vector<8x256xf32> -> vector<8x256xf32>
    %196 = arith.addf %189, %195 : vector<8x256xf32>
    %c0_160 = arith.constant 0 : index
    %c16_161 = arith.constant 16 : index
    %197 = vector.load %arg17[%c0_160, %c16_161] : memref<8x290xf32, #tpu.memory_space<vmem>>, vector<8x256xf32>
    %198 = arith.mulf %197, %175 : vector<8x256xf32>
    %c21 = arith.constant 21 : index
    %c0_162 = arith.constant 0 : index
    %c0_163 = arith.constant 0 : index
    %199 = vector.load %arg10[%c21, %c0_162, %c0_163] : memref<27x8x8xbf16, #tpu.memory_space<vmem>>, vector<1x8x8xbf16>
    %200 = vector.shape_cast %199 : vector<1x8x8xbf16> to vector<8x8xbf16>
    %201 = arith.truncf %198 : vector<8x256xf32> to vector<8x256xbf16>
    %cst_164 = arith.constant dense<0.000000e+00> : vector<8x256xf32>
    %202 = tpu.matmul %200, %201, %cst_164 {dimension_numbers = #tpu.dot_dimension_numbers<[1], [0], [0], [1], [0, 0, 1, 1], [], []>} : vector<8x8xbf16>, vector<8x256xbf16>, vector<8x256xf32> -> vector<8x256xf32>
    %203 = arith.addf %196, %202 : vector<8x256xf32>
    %c0_165 = arith.constant 0 : index
    %c17_166 = arith.constant 17 : index
    %204 = vector.load %arg17[%c0_165, %c17_166] : memref<8x290xf32, #tpu.memory_space<vmem>>, vector<8x256xf32>
    %c22 = arith.constant 22 : index
    %c0_167 = arith.constant 0 : index
    %c0_168 = arith.constant 0 : index
    %205 = vector.load %arg10[%c22, %c0_167, %c0_168] : memref<27x8x8xbf16, #tpu.memory_space<vmem>>, vector<1x8x8xbf16>
    %206 = vector.shape_cast %205 : vector<1x8x8xbf16> to vector<8x8xbf16>
    %207 = arith.truncf %204 : vector<8x256xf32> to vector<8x256xbf16>
    %cst_169 = arith.constant dense<0.000000e+00> : vector<8x256xf32>
    %208 = tpu.matmul %206, %207, %cst_169 {dimension_numbers = #tpu.dot_dimension_numbers<[1], [0], [0], [1], [0, 0, 1, 1], [], []>} : vector<8x8xbf16>, vector<8x256xbf16>, vector<8x256xf32> -> vector<8x256xf32>
    %209 = arith.addf %203, %208 : vector<8x256xf32>
    %c0_170 = arith.constant 0 : index
    %c18_171 = arith.constant 18 : index
    %210 = vector.load %arg17[%c0_170, %c18_171] : memref<8x290xf32, #tpu.memory_space<vmem>>, vector<8x256xf32>
    %211 = arith.mulf %210, %177 : vector<8x256xf32>
    %c23 = arith.constant 23 : index
    %c0_172 = arith.constant 0 : index
    %c0_173 = arith.constant 0 : index
    %212 = vector.load %arg10[%c23, %c0_172, %c0_173] : memref<27x8x8xbf16, #tpu.memory_space<vmem>>, vector<1x8x8xbf16>
    %213 = vector.shape_cast %212 : vector<1x8x8xbf16> to vector<8x8xbf16>
    %214 = arith.truncf %211 : vector<8x256xf32> to vector<8x256xbf16>
    %cst_174 = arith.constant dense<0.000000e+00> : vector<8x256xf32>
    %215 = tpu.matmul %213, %214, %cst_174 {dimension_numbers = #tpu.dot_dimension_numbers<[1], [0], [0], [1], [0, 0, 1, 1], [], []>} : vector<8x8xbf16>, vector<8x256xbf16>, vector<8x256xf32> -> vector<8x256xf32>
    %216 = arith.addf %209, %215 : vector<8x256xf32>
    %c0_175 = arith.constant 0 : index
    %c32_176 = arith.constant 32 : index
    %217 = vector.load %arg17[%c0_175, %c32_176] : memref<8x290xf32, #tpu.memory_space<vmem>>, vector<8x256xf32>
    %218 = arith.mulf %217, %175 : vector<8x256xf32>
    %c24_177 = arith.constant 24 : index
    %c0_178 = arith.constant 0 : index
    %c0_179 = arith.constant 0 : index
    %219 = vector.load %arg10[%c24_177, %c0_178, %c0_179] : memref<27x8x8xbf16, #tpu.memory_space<vmem>>, vector<1x8x8xbf16>
    %220 = vector.shape_cast %219 : vector<1x8x8xbf16> to vector<8x8xbf16>
    %221 = arith.truncf %218 : vector<8x256xf32> to vector<8x256xbf16>
    %cst_180 = arith.constant dense<0.000000e+00> : vector<8x256xf32>
    %222 = tpu.matmul %220, %221, %cst_180 {dimension_numbers = #tpu.dot_dimension_numbers<[1], [0], [0], [1], [0, 0, 1, 1], [], []>} : vector<8x8xbf16>, vector<8x256xbf16>, vector<8x256xf32> -> vector<8x256xf32>
    %223 = arith.addf %216, %222 : vector<8x256xf32>
    %c0_181 = arith.constant 0 : index
    %c33_182 = arith.constant 33 : index
    %224 = vector.load %arg17[%c0_181, %c33_182] : memref<8x290xf32, #tpu.memory_space<vmem>>, vector<8x256xf32>
    %c25_183 = arith.constant 25 : index
    %c0_184 = arith.constant 0 : index
    %c0_185 = arith.constant 0 : index
    %225 = vector.load %arg10[%c25_183, %c0_184, %c0_185] : memref<27x8x8xbf16, #tpu.memory_space<vmem>>, vector<1x8x8xbf16>
    %226 = vector.shape_cast %225 : vector<1x8x8xbf16> to vector<8x8xbf16>
    %227 = arith.truncf %224 : vector<8x256xf32> to vector<8x256xbf16>
    %cst_186 = arith.constant dense<0.000000e+00> : vector<8x256xf32>
    %228 = tpu.matmul %226, %227, %cst_186 {dimension_numbers = #tpu.dot_dimension_numbers<[1], [0], [0], [1], [0, 0, 1, 1], [], []>} : vector<8x8xbf16>, vector<8x256xbf16>, vector<8x256xf32> -> vector<8x256xf32>
    %229 = arith.addf %223, %228 : vector<8x256xf32>
    %c0_187 = arith.constant 0 : index
    %c34_188 = arith.constant 34 : index
    %230 = vector.load %arg17[%c0_187, %c34_188] : memref<8x290xf32, #tpu.memory_space<vmem>>, vector<8x256xf32>
    %231 = arith.mulf %230, %177 : vector<8x256xf32>
    %c26_189 = arith.constant 26 : index
    %c0_190 = arith.constant 0 : index
    %c0_191 = arith.constant 0 : index
    %232 = vector.load %arg10[%c26_189, %c0_190, %c0_191] : memref<27x8x8xbf16, #tpu.memory_space<vmem>>, vector<1x8x8xbf16>
    %233 = vector.shape_cast %232 : vector<1x8x8xbf16> to vector<8x8xbf16>
    %234 = arith.truncf %231 : vector<8x256xf32> to vector<8x256xbf16>
    %cst_192 = arith.constant dense<0.000000e+00> : vector<8x256xf32>
    %235 = tpu.matmul %233, %234, %cst_192 {dimension_numbers = #tpu.dot_dimension_numbers<[1], [0], [0], [1], [0, 0, 1, 1], [], []>} : vector<8x8xbf16>, vector<8x256xbf16>, vector<8x256xf32> -> vector<8x256xf32>
    %236 = arith.addf %229, %235 : vector<8x256xf32>
    %c2_193 = arith.constant 2 : index
    %c0_194 = arith.constant 0 : index
    %c0_195 = arith.constant 0 : index
    %237 = vector.load %arg11[%c2_193, %c0_194, %c0_195] : memref<3x8x1xf32, #tpu.memory_space<vmem>>, vector<1x8x1xf32>
    %238 = vector.shape_cast %237 : vector<1x8x1xf32> to vector<8x1xf32>
    %239 = vector.broadcast %238 : vector<8x1xf32> to vector<8x256xf32>
    %240 = arith.addf %236, %239 : vector<8x256xf32>
    %cst_196 = arith.constant 0.000000e+00 : f32
    %241 = vector.broadcast %cst_196 : f32 to vector<8x256xf32>
    %242 = arith.maximumf %240, %241 : vector<8x256xf32>
    %c0_197 = arith.constant 0 : index
    %c0_198 = arith.constant 0 : index
    %243 = vector.load %arg14[%c0_197, %c0_198] : memref<8x8xbf16, #tpu.memory_space<vmem>>, vector<8x8xbf16>
    %244 = arith.truncf %242 : vector<8x256xf32> to vector<8x256xbf16>
    %cst_199 = arith.constant dense<0.000000e+00> : vector<8x256xf32>
    %245 = tpu.matmul %243, %244, %cst_199 {dimension_numbers = #tpu.dot_dimension_numbers<[1], [0], [0], [1], [0, 0, 1, 1], [], []>} : vector<8x8xbf16>, vector<8x256xbf16>, vector<8x256xf32> -> vector<8x256xf32>
    %c0_200 = arith.constant 0 : index
    %c0_201 = arith.constant 0 : index
    %246 = vector.load %arg15[%c0_200, %c0_201] : memref<8x1xf32, #tpu.memory_space<vmem>>, vector<8x1xf32>
    %247 = vector.broadcast %246 : vector<8x1xf32> to vector<8x256xf32>
    %248 = arith.addf %245, %247 : vector<8x256xf32>
    %c0_202 = arith.constant 0 : index
    %c0_203 = arith.constant 0 : index
    %249 = memref.load %arg1[%c0_202, %c0_203] : memref<1x1xf32, #tpu.memory_space<smem>>
    %250 = vector.broadcast %249 : f32 to vector<8x256xf32>
    %251 = arith.mulf %248, %250 : vector<8x256xf32>
    %c0_204 = arith.constant 0 : index
    %c0_205 = arith.constant 0 : index
    %c0_206 = arith.constant 0 : index
    %252 = vector.load %arg16[%c0_204, %c0_205, %c0_206] : memref<1x8x256xf32, #tpu.memory_space<vmem>>, vector<1x8x256xf32>
    %253 = vector.shape_cast %252 : vector<1x8x256xf32> to vector<8x256xf32>
    %254 = vector.shape_cast %251 : vector<8x256xf32> to vector<1x8x256xf32>
    tpu.vector_store %arg16[%c0_204, %c0_205, %c0_206], %254 {strides = array<i32>} : memref<1x8x256xf32, #tpu.memory_space<vmem>>, vector<1x8x256xf32>,
    return
  }
  func.func @transform_0(%arg0: i32) -> (i32, i32) {
    %c0_i32 = arith.constant 0 : i32
    %c0_i32_0 = arith.constant 0 : i32
    %c0_i32_1 = arith.constant 0 : i32
    return %c0_i32, %c0_i32_0 : i32, i32
  }
  func.func @transform_1(%arg0: i32) -> (i32, i32, i32) {
    %c0_i32 = arith.constant 0 : i32
    %c0_i32_0 = arith.constant 0 : i32
    %c0_i32_1 = arith.constant 0 : i32
    return %arg0, %c0_i32, %c0_i32_0 : i32, i32, i32
  }
  func.func @transform_2(%arg0: i32) -> (i32, i32) {
    %c0_i32 = arith.constant 0 : i32
    %c0_i32_0 = arith.constant 0 : i32
    %c0_i32_1 = arith.constant 0 : i32
    return %c0_i32, %c0_i32_0 : i32, i32
  }
  func.func @transform_3(%arg0: i32) -> (i32, i32) {
    %c0_i32 = arith.constant 0 : i32
    %c0_i32_0 = arith.constant 0 : i32
    %c0_i32_1 = arith.constant 0 : i32
    return %c0_i32, %c0_i32_0 : i32, i32
  }
  func.func @transform_4(%arg0: i32) -> (i32, i32) {
    %c0_i32 = arith.constant 0 : i32
    %c0_i32_0 = arith.constant 0 : i32
    %c0_i32_1 = arith.constant 0 : i32
    return %c0_i32, %c0_i32_0 : i32, i32
  }
  func.func @transform_5(%arg0: i32) -> (i32, i32) {
    %c0_i32 = arith.constant 0 : i32
    %c0_i32_0 = arith.constant 0 : i32
    %c0_i32_1 = arith.constant 0 : i32
    return %c0_i32, %c0_i32_0 : i32, i32
  }
  func.func @transform_6(%arg0: i32) -> (i32, i32, i32) {
    %c0_i32 = arith.constant 0 : i32
    %c0_i32_0 = arith.constant 0 : i32
    %c0_i32_1 = arith.constant 0 : i32
    %c0_i32_2 = arith.constant 0 : i32
    return %c0_i32, %c0_i32_0, %c0_i32_1 : i32, i32, i32
  }
  func.func @transform_7(%arg0: i32) -> (i32, i32, i32) {
    %c0_i32 = arith.constant 0 : i32
    %c0_i32_0 = arith.constant 0 : i32
    %c0_i32_1 = arith.constant 0 : i32
    %c0_i32_2 = arith.constant 0 : i32
    return %c0_i32, %c0_i32_0, %c0_i32_1 : i32, i32, i32
  }
  func.func @transform_8(%arg0: i32) -> (i32, i32, i32) {
    %c0_i32 = arith.constant 0 : i32
    %c0_i32_0 = arith.constant 0 : i32
    %c0_i32_1 = arith.constant 0 : i32
    %c0_i32_2 = arith.constant 0 : i32
    return %c0_i32, %c0_i32_0, %c0_i32_1 : i32, i32, i32
  }
  func.func @transform_9(%arg0: i32) -> (i32, i32, i32) {
    %c0_i32 = arith.constant 0 : i32
    %c0_i32_0 = arith.constant 0 : i32
    %c0_i32_1 = arith.constant 0 : i32
    %c0_i32_2 = arith.constant 0 : i32
    return %c0_i32, %c0_i32_0, %c0_i32_1 : i32, i32, i32
  }
  func.func @transform_10(%arg0: i32) -> (i32, i32, i32) {
    %c0_i32 = arith.constant 0 : i32
    %c0_i32_0 = arith.constant 0 : i32
    %c0_i32_1 = arith.constant 0 : i32
    %c0_i32_2 = arith.constant 0 : i32
    return %c0_i32, %c0_i32_0, %c0_i32_1 : i32, i32, i32
  }
  func.func @transform_11(%arg0: i32) -> (i32, i32, i32) {
    %c0_i32 = arith.constant 0 : i32
    %c0_i32_0 = arith.constant 0 : i32
    %c0_i32_1 = arith.constant 0 : i32
    %c0_i32_2 = arith.constant 0 : i32
    return %c0_i32, %c0_i32_0, %c0_i32_1 : i32, i32, i32
  }
  func.func @transform_12(%arg0: i32) -> (i32, i32, i32) {
    %c0_i32 = arith.constant 0 : i32
    %c0_i32_0 = arith.constant 0 : i32
    %c0_i32_1 = arith.constant 0 : i32
    %c0_i32_2 = arith.constant 0 : i32
    return %c0_i32, %c0_i32_0, %c0_i32_1 : i32, i32, i32
  }
  func.func @transform_13(%arg0: i32) -> (i32, i32) {
    %c0_i32 = arith.constant 0 : i32
    %c0_i32_0 = arith.constant 0 : i32
    %c0_i32_1 = arith.constant 0 : i32
    return %c0_i32, %c0_i32_0 : i32, i32
  }
  func.func @transform_14(%arg0: i32) -> (i32, i32) {
    %c0_i32 = arith.constant 0 : i32
    %c0_i32_0 = arith.constant 0 : i32
    %c0_i32_1 = arith.constant 0 : i32
    return %c0_i32, %c0_i32_0 : i32, i32
  }
  func.func @transform_15(%arg0: i32) -> (i32, i32, i32) {
    %c0_i32 = arith.constant 0 : i32
    %c0_i32_0 = arith.constant 0 : i32
    %c0_i32_1 = arith.constant 0 : i32
    return %arg0, %c0_i32, %c0_i32_0 : i32, i32, i32
  }
}

</mosaic_0001>

<llo_original>
// kernel: tpu_custom_call.1
$region0: #{tpu_custom_call.1}
  #allocation0 [shape = 'u32[]', space=smem, size = 0x4, offset = 0x4, fixed_abs, tag = 'smem constant byte address 0x4 - core index']
  #allocation1 [shape = 'u32[144,128]{1,0:T(1,128)}', space=vmem, size = 0x12000, scoped, tag = 'internal scratch']
  #allocation2 [shape = 'f32[8,290]{1,0:T(8,128)}', space=vmem, size = 0x3000, scoped, tag = 'scratch operand']
  #allocation3 [shape = 'f32[1,1]{1,0:T(1,128)S(6)}', space=smem, size = 0x200, scoped, tag = 'scoped memory for tpu_custom_call.1']
  %s0 = inlined_call_operand.<no memory space> [shape: f32[1,1], index: 0, kind: input, shape index: {}]
  %s1 = inlined_call_operand.vmem [shape: f32[2,8,64], index: 1, kind: input, shape index: {}]
  %s2 = inlined_call_operand.vmem [shape: bf16[64,16], index: 2, kind: input, shape index: {}]
  %s3 = inlined_call_operand.vmem [shape: f32[8,16], index: 3, kind: input, shape index: {}]
  %s4 = inlined_call_operand.vmem [shape: bf16[16,64], index: 4, kind: input, shape index: {}]
  %s5 = inlined_call_operand.vmem [shape: bf16[64,256], index: 5, kind: input, shape index: {}]
  %s6 = inlined_call_operand.vmem [shape: f32[2,8,64], index: 6, kind: input, shape index: {}]
  %s7 = inlined_call_operand.vmem [shape: f32[2,8,256], index: 7, kind: input, shape index: {}]
  %s8 = inlined_call_operand.vmem [shape: f32[2,8,256], index: 8, kind: input, shape index: {}]
  %s9 = inlined_call_operand.vmem [shape: bf16[27,8,8], index: 9, kind: input, shape index: {}]
  %s10 = inlined_call_operand.vmem [shape: f32[3,8,1], index: 10, kind: input, shape index: {}]
  %s11 = inlined_call_operand.vmem [shape: f32[2,8,1], index: 11, kind: input, shape index: {}]
  %s12 = inlined_call_operand.vmem [shape: f32[2,8,1], index: 12, kind: input, shape index: {}]
  %s13 = inlined_call_operand.vmem [shape: bf16[8,8], index: 13, kind: input, shape index: {}]
  %s14 = inlined_call_operand.vmem [shape: f32[8,1], index: 14, kind: input, shape index: {}]
  %s15 = inlined_call_operand.hbm [shape: f32[2,8,256], index: 15, kind: output, shape index: {}]
  %s16 = sld [smem:[#allocation0]]
  $region93: #{tpu_custom_call.1} parent=0
    _
  %s18 = ssub.s32 1, %s16
  %s19 = scalar_select 0, %s18, %s16
  %20 = sst [smem:[#allocation3]] %s0
  $region1: #{tpu_custom_call.1} parent=0
    #allocation4 [shape = 'u8[16384]{0}', space=vmem, size = 0x4000, scoped, tag = 'output window, operand 0']
    #allocation5 [shape = 's32[2]{0}', space=sflag, size = 0x8, scoped, tag = 'scoped memory for tpu_custom_call.1']
    %21 = vsyncpa [#allocation5], 0
    %s22 = scalar_lea.sflag [#allocation5], 1
    %23 = vsyncpa %s22, 0
    loop: start=0, step=1, limit=4
    $region2: #{tpu_custom_call.1} parent=1 // loop_pre_header
      _
    $region3: #{tpu_custom_call.1} parent=1 // loop_header
      %s25 = sphi 0, %s29
      %p26 = scmp.ge.s32.totalorder %s25, 4
      %s33 = sphi 0, %s33
      %s35 = sphi 0, %s33
      %s36 = sphi 0, %s35
      %s50 = sphi 0, %s36
      %s56 = sphi 0, %s58
      %s59 = sphi 0, %s56
      %s60 = sphi 0, %s59
      %s76 = sphi 0, %s60
      %s80 = sphi 0, %s80
      %s82 = sphi 0, %s80
      %s83 = sphi 0, %s82
      %s97 = sphi 0, %s83
      %s101 = sphi 0, %s101
      %s103 = sphi 0, %s101
      %s104 = sphi 0, %s103
      %s118 = sphi 0, %s104
      %s122 = sphi 0, %s122
      %s124 = sphi 0, %s122
      %s125 = sphi 0, %s124
      %s139 = sphi 0, %s125
      %s143 = sphi 0, %s143
      %s145 = sphi 0, %s143
      %s146 = sphi 0, %s145
      %s160 = sphi 0, %s146
      %s164 = sphi 0, %s164
      %s166 = sphi 0, %s164
      %s167 = sphi 0, %s166
      %s181 = sphi 0, %s167
      %s185 = sphi 0, %s185
      %s187 = sphi 0, %s185
      %s188 = sphi 0, %s187
      %s202 = sphi 0, %s188
      %s206 = sphi 0, %s206
      %s208 = sphi 0, %s206
      %s209 = sphi 0, %s208
      %s223 = sphi 0, %s209
      %s227 = sphi 0, %s227
      %s229 = sphi 0, %s227
      %s230 = sphi 0, %s229
      %s244 = sphi 0, %s230
      %s248 = sphi 0, %s248
      %s250 = sphi 0, %s248
      %s251 = sphi 0, %s250
      %s265 = sphi 0, %s251
      %s269 = sphi 0, %s269
      %s271 = sphi 0, %s269
      %s272 = sphi 0, %s271
      %s286 = sphi 0, %s272
      %s290 = sphi 0, %s290
      %s292 = sphi 0, %s290
      %s293 = sphi 0, %s292
      %s307 = sphi 0, %s293
      %s311 = sphi 0, %s311
      %s313 = sphi 0, %s311
      %s314 = sphi 0, %s313
      %s328 = sphi 0, %s314
      %s332 = sphi 0, %s332
      %s334 = sphi 0, %s332
      %s335 = sphi 0, %s334
      %s349 = sphi 0, %s335
      %s355 = sphi 0, %s357
      %s358 = sphi 0, %s355
      %s359 = sphi 0, %s358
      %s375 = sphi 0, %s359
    $region4: #{tpu_custom_call.1} parent=1 // loop_header_branch
      %28 = sbr.rel (%p26) target = $region8
    $region5: #{tpu_custom_call.1} parent=1 // loop_body
      %s30 = ssub.s32 %s25, 1
      %s31 = ssub.s32 %s25, 2
      %s32 = sadd.s32 %s25, 1
      %s34 = sadd.s32 %s33, 1
      %p37 = scmp.eq.s32.totalorder %s25, 1
      %p38 = scmp.ne.s32.totalorder %s33, %s35
      %p39 = scmp.eq.s32.totalorder %s25, 0
      %p40 = por %p38, %p39
      %p41 = scmp.ne.s32.totalorder %s33, %s35
      %p42 = scmp.eq.s32.totalorder %s30, 1
      %p43 = por %p41, %p42
      %p44 = scmp.ne.s32.totalorder %s35, %s36
      %p45 = scmp.eq.s32.totalorder %s30, 0
      %p46 = por %p44, %p45
      %p47 = scmp.ne.s32.totalorder %s35, %s36
      %p48 = scmp.eq.s32.totalorder %s31, 1
      %p49 = por %p47, %p48
      %p51 = scmp.ne.s32.totalorder %s36, %s50
      %p52 = scmp.eq.s32.totalorder %s31, 0
      %p53 = por %p51, %p52
      %s54 = ssub.s32 %s25, %s32
      %p55 = scmp.eq.s32.totalorder %s54, 0
      %s57 = sadd.s32 %s56, 1
      %s58 = scalar_select %p55, %s56, %s57
      %p61 = pneg %p55
      %p62 = scmp.eq.s32.totalorder %s25, 1
      %p63 = por %p61, %p62
      %p64 = scmp.ne.s32.totalorder %s56, %s59
      %p65 = scmp.eq.s32.totalorder %s25, 0
      %p66 = por %p64, %p65
      %p67 = scmp.ne.s32.totalorder %s56, %s59
      %p68 = scmp.eq.s32.totalorder %s30, 1
      %p69 = por %p67, %p68
      %p70 = scmp.ne.s32.totalorder %s59, %s60
      %p71 = scmp.eq.s32.totalorder %s30, 0
      %p72 = por %p70, %p71
      %p73 = scmp.ne.s32.totalorder %s59, %s60
      %p74 = scmp.eq.s32.totalorder %s31, 1
      %p75 = por %p73, %p74
      %p77 = scmp.ne.s32.totalorder %s60, %s76
      %p78 = scmp.eq.s32.totalorder %s31, 0
      %p79 = por %p77, %p78
      %s81 = sadd.s32 %s80, 1
      %p84 = scmp.eq.s32.totalorder %s25, 1
      %p85 = scmp.ne.s32.totalorder %s80, %s82
      %p86 = scmp.eq.s32.totalorder %s25, 0
      %p87 = por %p85, %p86
      %p88 = scmp.ne.s32.totalorder %s80, %s82
      %p89 = scmp.eq.s32.totalorder %s30, 1
      %p90 = por %p88, %p89
      %p91 = scmp.ne.s32.totalorder %s82, %s83
      %p92 = scmp.eq.s32.totalorder %s30, 0
      %p93 = por %p91, %p92
      %p94 = scmp.ne.s32.totalorder %s82, %s83
      %p95 = scmp.eq.s32.totalorder %s31, 1
      %p96 = por %p94, %p95
      %p98 = scmp.ne.s32.totalorder %s83, %s97
      %p99 = scmp.eq.s32.totalorder %s31, 0
      %p100 = por %p98, %p99
      %s102 = sadd.s32 %s101, 1
      %p105 = scmp.eq.s32.totalorder %s25, 1
      %p106 = scmp.ne.s32.totalorder %s101, %s103
      %p107 = scmp.eq.s32.totalorder %s25, 0
      %p108 = por %p106, %p107
      %p109 = scmp.ne.s32.totalorder %s101, %s103
      %p110 = scmp.eq.s32.totalorder %s30, 1
      %p111 = por %p109, %p110
      %p112 = scmp.ne.s32.totalorder %s103, %s104
      %p113 = scmp.eq.s32.totalorder %s30, 0
      %p114 = por %p112, %p113
      %p115 = scmp.ne.s32.totalorder %s103, %s104
      %p116 = scmp.eq.s32.totalorder %s31, 1
      %p117 = por %p115, %p116
      %p119 = scmp.ne.s32.totalorder %s104, %s118
      %p120 = scmp.eq.s32.totalorder %s31, 0
      %p121 = por %p119, %p120
      %s123 = sadd.s32 %s122, 1
      %p126 = scmp.eq.s32.totalorder %s25, 1
      %p127 = scmp.ne.s32.totalorder %s122, %s124
      %p128 = scmp.eq.s32.totalorder %s25, 0
      %p129 = por %p127, %p128
      %p130 = scmp.ne.s32.totalorder %s122, %s124
      %p131 = scmp.eq.s32.totalorder %s30, 1
      %p132 = por %p130, %p131
      %p133 = scmp.ne.s32.totalorder %s124, %s125
      %p134 = scmp.eq.s32.totalorder %s30, 0
      %p135 = por %p133, %p134
      %p136 = scmp.ne.s32.totalorder %s124, %s125
      %p137 = scmp.eq.s32.totalorder %s31, 1
      %p138 = por %p136, %p137
      %p140 = scmp.ne.s32.totalorder %s125, %s139
      %p141 = scmp.eq.s32.totalorder %s31, 0
      %p142 = por %p140, %p141
      %s144 = sadd.s32 %s143, 1
      %p147 = scmp.eq.s32.totalorder %s25, 1
      %p148 = scmp.ne.s32.totalorder %s143, %s145
      %p149 = scmp.eq.s32.totalorder %s25, 0
      %p150 = por %p148, %p149
      %p151 = scmp.ne.s32.totalorder %s143, %s145
      %p152 = scmp.eq.s32.totalorder %s30, 1
      %p153 = por %p151, %p152
      %p154 = scmp.ne.s32.totalorder %s145, %s146
      %p155 = scmp.eq.s32.totalorder %s30, 0
      %p156 = por %p154, %p155
      %p157 = scmp.ne.s32.totalorder %s145, %s146
      %p158 = scmp.eq.s32.totalorder %s31, 1
      %p159 = por %p157, %p158
      %p161 = scmp.ne.s32.totalorder %s146, %s160
      %p162 = scmp.eq.s32.totalorder %s31, 0
      %p163 = por %p161, %p162
      %s165 = sadd.s32 %s164, 1
      %p168 = scmp.eq.s32.totalorder %s25, 1
      %p169 = scmp.ne.s32.totalorder %s164, %s166
      %p170 = scmp.eq.s32.totalorder %s25, 0
      %p171 = por %p169, %p170
      %p172 = scmp.ne.s32.totalorder %s164, %s166
      %p173 = scmp.eq.s32.totalorder %s30, 1
      %p174 = por %p172, %p173
      %p175 = scmp.ne.s32.totalorder %s166, %s167
      %p176 = scmp.eq.s32.totalorder %s30, 0
      %p177 = por %p175, %p176
      %p178 = scmp.ne.s32.totalorder %s166, %s167
      %p179 = scmp.eq.s32.totalorder %s31, 1
      %p180 = por %p178, %p179
      %p182 = scmp.ne.s32.totalorder %s167, %s181
      %p183 = scmp.eq.s32.totalorder %s31, 0
      %p184 = por %p182, %p183
      %s186 = sadd.s32 %s185, 1
      %p189 = scmp.eq.s32.totalorder %s25, 1
      %p190 = scmp.ne.s32.totalorder %s185, %s187
      %p191 = scmp.eq.s32.totalorder %s25, 0
      %p192 = por %p190, %p191
      %p193 = scmp.ne.s32.totalorder %s185, %s187
      %p194 = scmp.eq.s32.totalorder %s30, 1
      %p195 = por %p193, %p194
      %p196 = scmp.ne.s32.totalorder %s187, %s188
      %p197 = scmp.eq.s32.totalorder %s30, 0
      %p198 = por %p196, %p197
      %p199 = scmp.ne.s32.totalorder %s187, %s188
      %p200 = scmp.eq.s32.totalorder %s31, 1
      %p201 = por %p199, %p200
      %p203 = scmp.ne.s32.totalorder %s188, %s202
      %p204 = scmp.eq.s32.totalorder %s31, 0
      %p205 = por %p203, %p204
      %s207 = sadd.s32 %s206, 1
      %p210 = scmp.eq.s32.totalorder %s25, 1
      %p211 = scmp.ne.s32.totalorder %s206, %s208
      %p212 = scmp.eq.s32.totalorder %s25, 0
      %p213 = por %p211, %p212
      %p214 = scmp.ne.s32.totalorder %s206, %s208
      %p215 = scmp.eq.s32.totalorder %s30, 1
      %p216 = por %p214, %p215
      %p217 = scmp.ne.s32.totalorder %s208, %s209
      %p218 = scmp.eq.s32.totalorder %s30, 0
      %p219 = por %p217, %p218
      %p220 = scmp.ne.s32.totalorder %s208, %s209
      %p221 = scmp.eq.s32.totalorder %s31, 1
      %p222 = por %p220, %p221
      %p224 = scmp.ne.s32.totalorder %s209, %s223
      %p225 = scmp.eq.s32.totalorder %s31, 0
      %p226 = por %p224, %p225
      %s228 = sadd.s32 %s227, 1
      %p231 = scmp.eq.s32.totalorder %s25, 1
      %p232 = scmp.ne.s32.totalorder %s227, %s229
      %p233 = scmp.eq.s32.totalorder %s25, 0
      %p234 = por %p232, %p233
      %p235 = scmp.ne.s32.totalorder %s227, %s229
      %p236 = scmp.eq.s32.totalorder %s30, 1
      %p237 = por %p235, %p236
      %p238 = scmp.ne.s32.totalorder %s229, %s230
      %p239 = scmp.eq.s32.totalorder %s30, 0
      %p240 = por %p238, %p239
      %p241 = scmp.ne.s32.totalorder %s229, %s230
      %p242 = scmp.eq.s32.totalorder %s31, 1
      %p243 = por %p241, %p242
      %p245 = scmp.ne.s32.totalorder %s230, %s244
      %p246 = scmp.eq.s32.totalorder %s31, 0
      %p247 = por %p245, %p246
      %s249 = sadd.s32 %s248, 1
      %p252 = scmp.eq.s32.totalorder %s25, 1
      %p253 = scmp.ne.s32.totalorder %s248, %s250
      %p254 = scmp.eq.s32.totalorder %s25, 0
      %p255 = por %p253, %p254
      %p256 = scmp.ne.s32.totalorder %s248, %s250
      %p257 = scmp.eq.s32.totalorder %s30, 1
      %p258 = por %p256, %p257
      %p259 = scmp.ne.s32.totalorder %s250, %s251
      %p260 = scmp.eq.s32.totalorder %s30, 0
      %p261 = por %p259, %p260
      %p262 = scmp.ne.s32.totalorder %s250, %s251
      %p263 = scmp.eq.s32.totalorder %s31, 1
      %p264 = por %p262, %p263
      %p266 = scmp.ne.s32.totalorder %s251, %s265
      %p267 = scmp.eq.s32.totalorder %s31, 0
      %p268 = por %p266, %p267
      %s270 = sadd.s32 %s269, 1
      %p273 = scmp.eq.s32.totalorder %s25, 1
      %p274 = scmp.ne.s32.totalorder %s269, %s271
      %p275 = scmp.eq.s32.totalorder %s25, 0
      %p276 = por %p274, %p275
      %p277 = scmp.ne.s32.totalorder %s269, %s271
      %p278 = scmp.eq.s32.totalorder %s30, 1
      %p279 = por %p277, %p278
      %p280 = scmp.ne.s32.totalorder %s271, %s272
      %p281 = scmp.eq.s32.totalorder %s30, 0
      %p282 = por %p280, %p281
      %p283 = scmp.ne.s32.totalorder %s271, %s272
      %p284 = scmp.eq.s32.totalorder %s31, 1
      %p285 = por %p283, %p284
      %p287 = scmp.ne.s32.totalorder %s272, %s286
      %p288 = scmp.eq.s32.totalorder %s31, 0
      %p289 = por %p287, %p288
      %s291 = sadd.s32 %s290, 1
      %p294 = scmp.eq.s32.totalorder %s25, 1
      %p295 = scmp.ne.s32.totalorder %s290, %s292
      %p296 = scmp.eq.s32.totalorder %s25, 0
      %p297 = por %p295, %p296
      %p298 = scmp.ne.s32.totalorder %s290, %s292
      %p299 = scmp.eq.s32.totalorder %s30, 1
      %p300 = por %p298, %p299
      %p301 = scmp.ne.s32.totalorder %s292, %s293
      %p302 = scmp.eq.s32.totalorder %s30, 0
      %p303 = por %p301, %p302
      %p304 = scmp.ne.s32.totalorder %s292, %s293
      %p305 = scmp.eq.s32.totalorder %s31, 1
      %p306 = por %p304, %p305
      %p308 = scmp.ne.s32.totalorder %s293, %s307
      %p309 = scmp.eq.s32.totalorder %s31, 0
      %p310 = por %p308, %p309
      %s312 = sadd.s32 %s311, 1
      %p315 = scmp.eq.s32.totalorder %s25, 1
      %p316 = scmp.ne.s32.totalorder %s311, %s313
      %p317 = scmp.eq.s32.totalorder %s25, 0
      %p318 = por %p316, %p317
      %p319 = scmp.ne.s32.totalorder %s311, %s313
      %p320 = scmp.eq.s32.totalorder %s30, 1
      %p321 = por %p319, %p320
      %p322 = scmp.ne.s32.totalorder %s313, %s314
      %p323 = scmp.eq.s32.totalorder %s30, 0
      %p324 = por %p322, %p323
      %p325 = scmp.ne.s32.totalorder %s313, %s314
      %p326 = scmp.eq.s32.totalorder %s31, 1
      %p327 = por %p325, %p326
      %p329 = scmp.ne.s32.totalorder %s314, %s328
      %p330 = scmp.eq.s32.totalorder %s31, 0
      %p331 = por %p329, %p330
      %s333 = sadd.s32 %s332, 1
      %p336 = scmp.eq.s32.totalorder %s25, 1
      %p337 = scmp.ne.s32.totalorder %s332, %s334
      %p338 = scmp.eq.s32.totalorder %s25, 0
      %p339 = por %p337, %p338
      %p340 = scmp.ne.s32.totalorder %s332, %s334
      %p341 = scmp.eq.s32.totalorder %s30, 1
      %p342 = por %p340, %p341
      %p343 = scmp.ne.s32.totalorder %s334, %s335
      %p344 = scmp.eq.s32.totalorder %s30, 0
      %p345 = por %p343, %p344
      %p346 = scmp.ne.s32.totalorder %s334, %s335
      %p347 = scmp.eq.s32.totalorder %s31, 1
      %p348 = por %p346, %p347
      %p350 = scmp.ne.s32.totalorder %s335, %s349
      %p351 = scmp.eq.s32.totalorder %s31, 0
      %p352 = por %p350, %p351
      %s353 = ssub.s32 %s25, %s32
      %p354 = scmp.eq.s32.totalorder %s353, 0
      %s356 = sadd.s32 %s355, 1
      %s357 = scalar_select %p354, %s355, %s356
      %p360 = pneg %p354
      %p361 = scmp.eq.s32.totalorder %s25, 1
      %p362 = por %p360, %p361
      %p363 = scmp.ne.s32.totalorder %s355, %s358
      %p364 = scmp.eq.s32.totalorder %s25, 0
      %p365 = por %p363, %p364
      %p366 = scmp.ne.s32.totalorder %s355, %s358
      %p367 = scmp.eq.s32.totalorder %s30, 1
      %p368 = por %p366, %p367
      %p369 = scmp.ne.s32.totalorder %s358, %s359
      %p370 = scmp.eq.s32.totalorder %s30, 0
      %p371 = por %p369, %p370
      %p372 = scmp.ne.s32.totalorder %s358, %s359
      %p373 = scmp.eq.s32.totalorder %s31, 1
      %p374 = por %p372, %p373
      %p376 = scmp.ne.s32.totalorder %s359, %s375
      %p377 = scmp.eq.s32.totalorder %s31, 0
      %p378 = por %p376, %p377
      %p379 = scmp.le.s32.totalorder 1, %s25
      %p380 = scmp.lt.s32.totalorder %s25, 3
      %p381 = pnand %p379, %p380
      %p382 = pneg %p381
      // Predicated region
      $region9: #{tpu_custom_call.1} parent=5 // pred_check
        _
      $region10: #{tpu_custom_call.1} parent=5 // pred_check_branch
        %384 = sbr.rel (%p381) target = $region12
      $region11: #{tpu_custom_call.1} parent=5 // pred_region
        %s385 = ssub.s32 %s25, 1
        // Predicated region
        $region13: #{tpu_custom_call.1} parent=11 // pred_check
          %p386 = pneg %p46
        $region14: #{tpu_custom_call.1} parent=11 // pred_check_branch
          %388 = sbr.rel (%p386) target = $region16
        $region15: #{tpu_custom_call.1} parent=11 // pred_region
          _
        $region16: #{tpu_custom_call.1} parent=11 // pred_fallthru
          _
        // Predicated region
        $region17: #{tpu_custom_call.1} parent=11 // pred_check
          %p389 = pneg %p93
        $region18: #{tpu_custom_call.1} parent=11 // pred_check_branch
          %391 = sbr.rel (%p389) target = $region20
        $region19: #{tpu_custom_call.1} parent=11 // pred_region
          _
        $region20: #{tpu_custom_call.1} parent=11 // pred_fallthru
          _
        // Predicated region
        $region21: #{tpu_custom_call.1} parent=11 // pred_check
          %p392 = pneg %p114
        $region22: #{tpu_custom_call.1} parent=11 // pred_check_branch
          %394 = sbr.rel (%p392) target = $region24
        $region23: #{tpu_custom_call.1} parent=11 // pred_region
          _
        $region24: #{tpu_custom_call.1} parent=11 // pred_fallthru
          _
        // Predicated region
        $region25: #{tpu_custom_call.1} parent=11 // pred_check
          %p395 = pneg %p135
        $region26: #{tpu_custom_call.1} parent=11 // pred_check_branch
          %397 = sbr.rel (%p395) target = $region28
        $region27: #{tpu_custom_call.1} parent=11 // pred_region
          _
        $region28: #{tpu_custom_call.1} parent=11 // pred_fallthru
          _
        // Predicated region
        $region29: #{tpu_custom_call.1} parent=11 // pred_check
          %p398 = pneg %p156
        $region30: #{tpu_custom_call.1} parent=11 // pred_check_branch
          %400 = sbr.rel (%p398) target = $region32
        $region31: #{tpu_custom_call.1} parent=11 // pred_region
          _
        $region32: #{tpu_custom_call.1} parent=11 // pred_fallthru
          _
        // Predicated region
        $region33: #{tpu_custom_call.1} parent=11 // pred_check
          %p401 = pneg %p177
        $region34: #{tpu_custom_call.1} parent=11 // pred_check_branch
          %403 = sbr.rel (%p401) target = $region36
        $region35: #{tpu_custom_call.1} parent=11 // pred_region
          _
        $region36: #{tpu_custom_call.1} parent=11 // pred_fallthru
          _
        // Predicated region
        $region37: #{tpu_custom_call.1} parent=11 // pred_check
          %p404 = pneg %p198
        $region38: #{tpu_custom_call.1} parent=11 // pred_check_branch
          %406 = sbr.rel (%p404) target = $region40
        $region39: #{tpu_custom_call.1} parent=11 // pred_region
          _
        $region40: #{tpu_custom_call.1} parent=11 // pred_fallthru
          _
        // Predicated region
        $region41: #{tpu_custom_call.1} parent=11 // pred_check
          %p407 = pneg %p219
        $region42: #{tpu_custom_call.1} parent=11 // pred_check_branch
          %409 = sbr.rel (%p407) target = $region44
        $region43: #{tpu_custom_call.1} parent=11 // pred_region
          _
        $region44: #{tpu_custom_call.1} parent=11 // pred_fallthru
          _
        // Predicated region
        $region45: #{tpu_custom_call.1} parent=11 // pred_check
          %p410 = pneg %p240
        $region46: #{tpu_custom_call.1} parent=11 // pred_check_branch
          %412 = sbr.rel (%p410) target = $region48
        $region47: #{tpu_custom_call.1} parent=11 // pred_region
          _
        $region48: #{tpu_custom_call.1} parent=11 // pred_fallthru
          _
        // Predicated region
        $region49: #{tpu_custom_call.1} parent=11 // pred_check
          %p413 = pneg %p261
        $region50: #{tpu_custom_call.1} parent=11 // pred_check_branch
          %415 = sbr.rel (%p413) target = $region52
        $region51: #{tpu_custom_call.1} parent=11 // pred_region
          _
        $region52: #{tpu_custom_call.1} parent=11 // pred_fallthru
          _
        // Predicated region
        $region53: #{tpu_custom_call.1} parent=11 // pred_check
          %p416 = pneg %p282
        $region54: #{tpu_custom_call.1} parent=11 // pred_check_branch
          %418 = sbr.rel (%p416) target = $region56
        $region55: #{tpu_custom_call.1} parent=11 // pred_region
          _
        $region56: #{tpu_custom_call.1} parent=11 // pred_fallthru
          _
        // Predicated region
        $region57: #{tpu_custom_call.1} parent=11 // pred_check
          %p419 = pneg %p303
        $region58: #{tpu_custom_call.1} parent=11 // pred_check_branch
          %421 = sbr.rel (%p419) target = $region60
        $region59: #{tpu_custom_call.1} parent=11 // pred_region
          _
        $region60: #{tpu_custom_call.1} parent=11 // pred_fallthru
          _
        // Predicated region
        $region61: #{tpu_custom_call.1} parent=11 // pred_check
          %p422 = pneg %p324
        $region62: #{tpu_custom_call.1} parent=11 // pred_check_branch
          %424 = sbr.rel (%p422) target = $region64
        $region63: #{tpu_custom_call.1} parent=11 // pred_region
          _
        $region64: #{tpu_custom_call.1} parent=11 // pred_fallthru
          _
        // Predicated region
        $region65: #{tpu_custom_call.1} parent=11 // pred_check
          %p425 = pneg %p345
        $region66: #{tpu_custom_call.1} parent=11 // pred_check_branch
          %427 = sbr.rel (%p425) target = $region68
        $region67: #{tpu_custom_call.1} parent=11 // pred_region
          _
        $region68: #{tpu_custom_call.1} parent=11 // pred_fallthru
          _
      $region12: #{tpu_custom_call.1} parent=5 // pred_fallthru
        _
      %p428 = scmp.lt.s32.totalorder %s25, 2
      // Predicated region
      $region69: #{tpu_custom_call.1} parent=5 // pred_check
        %p429 = pneg %p428
      $region70: #{tpu_custom_call.1} parent=5 // pred_check_branch
        %431 = sbr.rel (%p429) target = $region72
      $region71: #{tpu_custom_call.1} parent=5 // pred_region
        // Predicated region
        $region73: #{tpu_custom_call.1} parent=71 // pred_check
          %p432 = pneg %p66
        $region74: #{tpu_custom_call.1} parent=71 // pred_check_branch
          %434 = sbr.rel (%p432) target = $region76
        $region75: #{tpu_custom_call.1} parent=71 // pred_region
          %p435 = scmp.lt.s32.totalorder %s25, 1
          %s436 = scalar_select %p435, %s25, 1
          %s437 = smul.addr %s436, 8
          %s438 = scalar_lea.vmem %s1, %s437
        $region76: #{tpu_custom_call.1} parent=71 // pred_fallthru
          _
      $region72: #{tpu_custom_call.1} parent=5 // pred_fallthru
        _
      %p439 = scmp.le.s32.totalorder 1, %s25
      %p440 = scmp.lt.s32.totalorder %s25, 3
      %p441 = pnand %p439, %p440
      %p442 = pneg %p441
      // Predicated region
      $region77: #{tpu_custom_call.1} parent=5 // pred_check
        _
      $region78: #{tpu_custom_call.1} parent=5 // pred_check_branch
        %444 = sbr.rel (%p441) target = $region80
      $region79: #{tpu_custom_call.1} parent=5 // pred_region
        %s445 = ssub.s32 %s25, 1
        %p446 = pneg %p46
        %p447 = pneg %p43
        %p448 = scmp.lt.s32.totalorder %s30, 1
        %s449 = scalar_select %p448, %s30, 1
        %s450 = smul.addr %s449, 8
        %s451 = scalar_lea.vmem %s1, %s450
        %p452 = pneg %p72
        %p453 = pneg %p69
        %p454 = pneg %p93
        %p455 = pneg %p90
        %p456 = pneg %p114
        %p457 = pneg %p111
        %p458 = pneg %p135
        %p459 = pneg %p132
        %p460 = pneg %p156
        %p461 = pneg %p153
        %p462 = pneg %p177
        %p463 = pneg %p174
        %p464 = pneg %p198
        %p465 = pneg %p195
        %p466 = pneg %p219
        %p467 = pneg %p216
        %p468 = pneg %p240
        %p469 = pneg %p237
        %p470 = pneg %p261
        %p471 = pneg %p258
        %p472 = pneg %p282
        %p473 = pneg %p279
        %p474 = pneg %p303
        %p475 = pneg %p300
        %p476 = pneg %p324
        %p477 = pneg %p321
        %p478 = pneg %p345
        %p479 = pneg %p342
        %p480 = pneg %p371
        %p481 = pneg %p368
        %s482 = sand.u32 %s358, 1
        %s483 = scalar_lea.sflag [#allocation5], %s482
        %s484 = sand.u32 %s358, 1
        %s485 = smul.addr %s484, 16
        %s486 = scalar_lea.vmem [#allocation4], %s485
        %p487 = scmp.lt.s32.totalorder %s30, 1
        %s488 = scalar_select %p487, %s30, 1
        %s489 = smul.addr %s488, 8
        %s490 = scalar_lea.vmem %s1, %s489
        %v492 = vld [vmem:[%s490] sm:$0xff]
        %v493 = vpack.c.bf16 %v492, %v492
        %v494 = vld [vmem:[%s2] sm:$0xf]
        %v495 = vld [vmem:[%s2 + $0x4] sm:$0xf]
        %v496 = vld [vmem:[%s2 + $0x8] sm:$0xf]
        %v497 = vld [vmem:[%s2 + $0xc] sm:$0xf]
        %v498 = vld [vmem:[%s2 + $0x10] sm:$0xf]
        %v499 = vld [vmem:[%s2 + $0x14] sm:$0xf]
        %v500 = vld [vmem:[%s2 + $0x18] sm:$0xf]
        %v501 = vld [vmem:[%s2 + $0x1c] sm:$0xf]
        %v502 = vld [vmem:[%s3] sm:$0xff]
        %v511 = vunpack.c.l.b16 %v494
        %v512 = vunpack.c.l.b16 %v495
        %v513 = vunpack.c.l.b16 %v496
        %v514 = vunpack.c.l.b16 %v497
        %v515 = vunpack.c.l.b16 %v498
        %v516 = vunpack.c.l.b16 %v499
        %v517 = vunpack.c.l.b16 %v500
        %v518 = vunpack.c.l.b16 %v501
        %v519 = vpack.c.b16 %v512, %v511
        %v520 = vpack.c.b16 %v514, %v513
        %v521 = vpack.c.b16 %v516, %v515
        %v522 = vpack.c.b16 %v518, %v517
        %vm527 = vcmask 523264
        %v529 = vsel %vm527, %v493, 0
        %531 = vmatprep.subr.bf16.mxu0 0
        %532 = vmatpush1.bf16.msra.mxu0 0
        %533 = vmatprep.subr.bf16.mxu0 0
        %534 = vmatpush1.bf16.msra.mxu0 0
        %535 = vmatprep.subr.bf16.mxu0 0
        %536 = vmatpush1.bf16.msra.mxu0 0
        %537 = vmatprep.subr.bf16.mxu0 0
        %538 = vmatpush1.bf16.msra.mxu0 0
        %539 = vmatprep.subr.bf16.mxu0 0
        %540 = vmatpush1.bf16.msra.mxu0 %v522
        %541 = vmatprep.subr.bf16.mxu0 0
        %542 = vmatpush1.bf16.msra.mxu0 %v521
        %543 = vmatprep.subr.bf16.mxu0 0
        %544 = vmatpush1.bf16.msra.mxu0 %v520
        %545 = vmatprep.subr.bf16.mxu0 0
        %546 = vmatpush1.bf16.msra.mxu0 %v519
        %547 = vmatprep.subr.bf16.mxu0 0
        %548 = vmatpush2.bf16.msra.mxu0 0
        %549 = vmatprep.subr.bf16.mxu0 0
        %550 = vmatpush2.bf16.msra.mxu0 0
        %551 = vmatprep.subr.bf16.mxu0 0
        %552 = vmatpush2.bf16.msra.mxu0 0
        %553 = vmatprep.subr.bf16.mxu0 0
        %554 = vmatpush2.bf16.msra.mxu0 0
        %555 = vmatprep.subr.bf16.mxu0 0
        %556 = vmatpush2.bf16.msra.mxu0 0
        %557 = vmatprep.subr.bf16.mxu0 0
        %558 = vmatpush2.bf16.msra.mxu0 0
        %559 = vmatprep.subr.bf16.mxu0 0
        %560 = vmatpush2.bf16.msra.mxu0 0
        %561 = vmatprep.subr.bf16.mxu0 0
        %562 = vmatpush2.bf16.msra.mxu0 0
        %563 = vmatprep.mubr.bf16.mxu0 0
        %564 = vmatmul.mubr.bf16.gmra.mxu0 %v529
        %v565 = vpop.f32.mrf.mxu0
        %v566 = vadd.f32 %v502, %v565
        %v567 = vpop.f32.mrf.mxu0
        %v568 = vpop.f32.mrf.mxu0
        %v569 = vpop.f32.mrf.mxu0
        %570 = vdwg.mxu0
        %v571 = vmax.f32 %v566, 0.0
        %572 = vst [vmem:[#allocation2] sm:$0xff] 0.0
        %573 = vst [vmem:[#allocation2 + $0x8] sm:$0xff] 0.0
        %vm574 = vcmask 277504
        %575 = vst.msk [vmem:[#allocation2 + $0x10] sm:$0xff] %vm574, 0.0
        %v576 = vpack.c.bf16 %v571, %v571
        %v577 = vld [vmem:[%s4] sm:$0xf]
        %v578 = vld [vmem:[%s4 + $0x4] sm:$0xf]
        %v581 = vunpack.c.l.b16 %v577
        %v582 = vunpack.c.l.b16 %v578
        %v583 = vpack.c.b16 %v582, %v581
        %vm585 = vcmask 130048
        %v587 = vsel %vm585, %v576, 0
        %589 = vmatprep.subr.bf16.mxu0 0
        %590 = vmatpush1.bf16.msra.mxu0 0
        %591 = vmatprep.subr.bf16.mxu0 0
        %592 = vmatpush1.bf16.msra.mxu0 0
        %593 = vmatprep.subr.bf16.mxu0 0
        %594 = vmatpush1.bf16.msra.mxu0 0
        %595 = vmatprep.subr.bf16.mxu0 0
        %596 = vmatpush1.bf16.msra.mxu0 0
        %597 = vmatprep.subr.bf16.mxu0 0
        %598 = vmatpush1.bf16.msra.mxu0 0
        %599 = vmatprep.subr.bf16.mxu0 0
        %600 = vmatpush1.bf16.msra.mxu0 0
        %601 = vmatprep.subr.bf16.mxu0 0
        %602 = vmatpush1.bf16.msra.mxu0 0
        %603 = vmatprep.subr.bf16.mxu0 0
        %604 = vmatpush1.bf16.msra.mxu0 %v583
        %605 = vmatprep.subr.bf16.mxu0 0
        %606 = vmatpush2.bf16.msra.mxu0 0
        %607 = vmatprep.subr.bf16.mxu0 0
        %608 = vmatpush2.bf16.msra.mxu0 0
        %609 = vmatprep.subr.bf16.mxu0 0
        %610 = vmatpush2.bf16.msra.mxu0 0
        %611 = vmatprep.subr.bf16.mxu0 0
        %612 = vmatpush2.bf16.msra.mxu0 0
        %613 = vmatprep.subr.bf16.mxu0 0
        %614 = vmatpush2.bf16.msra.mxu0 0
        %615 = vmatprep.subr.bf16.mxu0 0
        %616 = vmatpush2.bf16.msra.mxu0 0
        %617 = vmatprep.subr.bf16.mxu0 0
        %618 = vmatpush2.bf16.msra.mxu0 0
        %619 = vmatprep.subr.bf16.mxu0 0
        %620 = vmatpush2.bf16.msra.mxu0 0
        %621 = vmatprep.mubr.bf16.mxu0 0
        %622 = vmatmul.mubr.bf16.gmra.mxu0 %v587
        %v623 = vpop.f32.mrf.mxu0
        %v624 = vadd.f32 0.0, %v623
        %v625 = vpop.f32.mrf.mxu0
        %v626 = vpop.f32.mrf.mxu0
        %v627 = vpop.f32.mrf.mxu0
        %628 = vdwg.mxu0
        %630 = vrot.lane.b32.xlu0 %v624, 17
        %v631 = vpop.permute.xlu0 %630
        %vm633 = vcmask 662664
        %634 = vst.msk [vmem:[#allocation2] sm:$0xff] %vm633, %v631
        %v635 = vld [vmem:[%s6] sm:$0xff]
        %s636 = scalar_lea.vmem %s6, 8
        %v637 = vld [vmem:[%s636] sm:$0xff]
        %v638 = vld [vmem:[#allocation2] sm:$0xff]
        %640 = vrot.lane.b32.xlu0 %v635, 8
        %v641 = vpop.permute.xlu0 %640
        %v643 = vmul.f32 %v638, %v641
        %v644 = vld [vmem:[%s9] sm:$0xf]
        %v645 = vpack.c.bf16 %v643, %v643
        %s646 = scalar_lea.vmem %s9, 4
        %v647 = vld [vmem:[%s646] sm:$0xf]
        %v648 = vpack.c.bf16 %v638, %v638
        %650 = vrot.lane.b32.xlu0 %v648, 119
        %v651 = vpop.permute.xlu0 %650
        %vm652 = vcmask 64512
        %v654 = vsel %vm652, %v647, 0
        %vm656 = vcmask 1043456
        %v658 = vsel %vm656, %v651, 0
        %660 = vmatprep.subr.bf16.mxu0 0
        %661 = vmatpush1.bf16.msra.mxu0 0
        %662 = vmatprep.subr.bf16.mxu0 0
        %663 = vmatpush1.bf16.msra.mxu0 0
        %664 = vmatprep.subr.bf16.mxu0 0
        %665 = vmatpush1.bf16.msra.mxu0 0
        %666 = vmatprep.subr.bf16.mxu0 0
        %667 = vmatpush1.bf16.msra.mxu0 0
        %668 = vmatprep.subr.bf16.mxu0 0
        %669 = vmatpush1.bf16.msra.mxu0 0
        %670 = vmatprep.subr.bf16.mxu0 0
        %671 = vmatpush1.bf16.msra.mxu0 0
        %672 = vmatprep.subr.bf16.mxu0 0
        %673 = vmatpush1.bf16.msra.mxu0 0
        %674 = vmatprep.subr.bf16.mxu0 0
        %675 = vmatpush1.bf16.msra.mxu0 %v658
        %676 = vmatprep.subr.bf16.mxu0 0
        %677 = vmatpush2.bf16.msra.mxu0 0
        %678 = vmatprep.subr.bf16.mxu0 0
        %679 = vmatpush2.bf16.msra.mxu0 0
        %680 = vmatprep.subr.bf16.mxu0 0
        %681 = vmatpush2.bf16.msra.mxu0 0
        %682 = vmatprep.subr.bf16.mxu0 0
        %683 = vmatpush2.bf16.msra.mxu0 0
        %684 = vmatprep.subr.bf16.mxu0 0
        %685 = vmatpush2.bf16.msra.mxu0 0
        %686 = vmatprep.subr.bf16.mxu0 0
        %687 = vmatpush2.bf16.msra.mxu0 0
        %688 = vmatprep.subr.bf16.mxu0 0
        %689 = vmatpush2.bf16.msra.mxu0 0
        %690 = vmatprep.subr.bf16.mxu0 0
        %691 = vmatpush2.bf16.msra.mxu0 0
        %692 = vmatprep.mubr.bf16.mxu0 0
        %693 = vmatmul.mubr.bf16.gmra.mxu0 %v654
        %v694 = vpop.f32.mrf.mxu0
        %v695 = vadd.f32 0.0, %v694
        %v696 = vpop.f32.mrf.mxu0
        %v697 = vpop.f32.mrf.mxu0
        %v698 = vpop.f32.mrf.mxu0
        %699 = vdwg.mxu0
        %701 = vrot.lane.b32.xlu0 %v645, 120
        %v702 = vpop.permute.xlu0 %701
        %v704 = vsel %vm652, %v644, 0
        %v707 = vsel %vm656, %v702, 0
        %709 = vmatprep.subr.bf16.mxu0 0
        %710 = vmatpush1.bf16.msra.mxu0 0
        %711 = vmatprep.subr.bf16.mxu0 0
        %712 = vmatpush1.bf16.msra.mxu0 0
        %713 = vmatprep.subr.bf16.mxu0 0
        %714 = vmatpush1.bf16.msra.mxu0 0
        %715 = vmatprep.subr.bf16.mxu0 0
        %716 = vmatpush1.bf16.msra.mxu0 0
        %717 = vmatprep.subr.bf16.mxu0 0
        %718 = vmatpush1.bf16.msra.mxu0 0
        %719 = vmatprep.subr.bf16.mxu0 0
        %720 = vmatpush1.bf16.msra.mxu0 0
        %721 = vmatprep.subr.bf16.mxu0 0
        %722 = vmatpush1.bf16.msra.mxu0 0
        %723 = vmatprep.subr.bf16.mxu0 0
        %724 = vmatpush1.bf16.msra.mxu0 %v707
        %725 = vmatprep.subr.bf16.mxu0 0
        %726 = vmatpush2.bf16.msra.mxu0 0
        %727 = vmatprep.subr.bf16.mxu0 0
        %728 = vmatpush2.bf16.msra.mxu0 0
        %729 = vmatprep.subr.bf16.mxu0 0
        %730 = vmatpush2.bf16.msra.mxu0 0
        %731 = vmatprep.subr.bf16.mxu0 0
        %732 = vmatpush2.bf16.msra.mxu0 0
        %733 = vmatprep.subr.bf16.mxu0 0
        %734 = vmatpush2.bf16.msra.mxu0 0
        %735 = vmatprep.subr.bf16.mxu0 0
        %736 = vmatpush2.bf16.msra.mxu0 0
        %737 = vmatprep.subr.bf16.mxu0 0
        %738 = vmatpush2.bf16.msra.mxu0 0
        %739 = vmatprep.subr.bf16.mxu0 0
        %740 = vmatpush2.bf16.msra.mxu0 0
        %741 = vmatprep.mubr.bf16.mxu0 0
        %742 = vmatmul.mubr.bf16.gmra.mxu0 %v704
        %v743 = vpop.f32.mrf.mxu0
        %v744 = vadd.f32 %v695, %v743
        %v745 = vpop.f32.mrf.mxu0
        %v746 = vpop.f32.mrf.mxu0
        %v747 = vpop.f32.mrf.mxu0
        %748 = vdwg.mxu0
        %750 = vrot.lane.b32.xlu0 %v637, 10
        %v751 = vpop.permute.xlu0 %750
        %v753 = vmul.f32 %v638, %v751
        %s754 = scalar_lea.vmem %s9, 8
        %v755 = vld [vmem:[%s754] sm:$0xf]
        %v756 = vpack.c.bf16 %v753, %v753
        %758 = vrot.lane.b32.xlu0 %v756, 118
        %v759 = vpop.permute.xlu0 %758
        %v761 = vsel %vm652, %v755, 0
        %v764 = vsel %vm656, %v759, 0
        %766 = vmatprep.subr.bf16.mxu0 0
        %767 = vmatpush1.bf16.msra.mxu0 0
        %768 = vmatprep.subr.bf16.mxu0 0
        %769 = vmatpush1.bf16.msra.mxu0 0
        %770 = vmatprep.subr.bf16.mxu0 0
        %771 = vmatpush1.bf16.msra.mxu0 0
        %772 = vmatprep.subr.bf16.mxu0 0
        %773 = vmatpush1.bf16.msra.mxu0 0
        %774 = vmatprep.subr.bf16.mxu0 0
        %775 = vmatpush1.bf16.msra.mxu0 0
        %776 = vmatprep.subr.bf16.mxu0 0
        %777 = vmatpush1.bf16.msra.mxu0 0
        %778 = vmatprep.subr.bf16.mxu0 0
        %779 = vmatpush1.bf16.msra.mxu0 0
        %780 = vmatprep.subr.bf16.mxu0 0
        %781 = vmatpush1.bf16.msra.mxu0 %v764
        %782 = vmatprep.subr.bf16.mxu0 0
        %783 = vmatpush2.bf16.msra.mxu0 0
        %784 = vmatprep.subr.bf16.mxu0 0
        %785 = vmatpush2.bf16.msra.mxu0 0
        %786 = vmatprep.subr.bf16.mxu0 0
        %787 = vmatpush2.bf16.msra.mxu0 0
        %788 = vmatprep.subr.bf16.mxu0 0
        %789 = vmatpush2.bf16.msra.mxu0 0
        %790 = vmatprep.subr.bf16.mxu0 0
        %791 = vmatpush2.bf16.msra.mxu0 0
        %792 = vmatprep.subr.bf16.mxu0 0
        %793 = vmatpush2.bf16.msra.mxu0 0
        %794 = vmatprep.subr.bf16.mxu0 0
        %795 = vmatpush2.bf16.msra.mxu0 0
        %796 = vmatprep.subr.bf16.mxu0 0
        %797 = vmatpush2.bf16.msra.mxu0 0
        %798 = vmatprep.mubr.bf16.mxu0 0
        %799 = vmatmul.mubr.bf16.gmra.mxu0 %v761
        %v800 = vpop.f32.mrf.mxu0
        %v801 = vadd.f32 0.0, %v800
        %v802 = vpop.f32.mrf.mxu0
        %v803 = vpop.f32.mrf.mxu0
        %v804 = vpop.f32.mrf.mxu0
        %805 = vdwg.mxu0
        %v806 = vadd.f32 %v744, %v801
        %807 = vrot.lane.b32.xlu0 %v635, 16
        %v808 = vpop.permute.xlu0 %807
        %v810 = vmul.f32 %v638, %v808
        %s811 = scalar_lea.vmem %s9, 12
        %v812 = vld [vmem:[%s811] sm:$0xf]
        %v813 = vpack.c.bf16 %v810, %v810
        %815 = vrot.lane.b32.xlu0 %v813, 112
        %v816 = vpop.permute.xlu0 %815
        %v818 = vsel %vm652, %v812, 0
        %v821 = vsel %vm656, %v816, 0
        %823 = vmatprep.subr.bf16.mxu0 0
        %824 = vmatpush1.bf16.msra.mxu0 0
        %825 = vmatprep.subr.bf16.mxu0 0
        %826 = vmatpush1.bf16.msra.mxu0 0
        %827 = vmatprep.subr.bf16.mxu0 0
        %828 = vmatpush1.bf16.msra.mxu0 0
        %829 = vmatprep.subr.bf16.mxu0 0
        %830 = vmatpush1.bf16.msra.mxu0 0
        %831 = vmatprep.subr.bf16.mxu0 0
        %832 = vmatpush1.bf16.msra.mxu0 0
        %833 = vmatprep.subr.bf16.mxu0 0
        %834 = vmatpush1.bf16.msra.mxu0 0
        %835 = vmatprep.subr.bf16.mxu0 0
        %836 = vmatpush1.bf16.msra.mxu0 0
        %837 = vmatprep.subr.bf16.mxu0 0
        %838 = vmatpush1.bf16.msra.mxu0 %v821
        %839 = vmatprep.subr.bf16.mxu0 0
        %840 = vmatpush2.bf16.msra.mxu0 0
        %841 = vmatprep.subr.bf16.mxu0 0
        %842 = vmatpush2.bf16.msra.mxu0 0
        %843 = vmatprep.subr.bf16.mxu0 0
        %844 = vmatpush2.bf16.msra.mxu0 0
        %845 = vmatprep.subr.bf16.mxu0 0
        %846 = vmatpush2.bf16.msra.mxu0 0
        %847 = vmatprep.subr.bf16.mxu0 0
        %848 = vmatpush2.bf16.msra.mxu0 0
        %849 = vmatprep.subr.bf16.mxu0 0
        %850 = vmatpush2.bf16.msra.mxu0 0
        %851 = vmatprep.subr.bf16.mxu0 0
        %852 = vmatpush2.bf16.msra.mxu0 0
        %853 = vmatprep.subr.bf16.mxu0 0
        %854 = vmatpush2.bf16.msra.mxu0 0
        %855 = vmatprep.mubr.bf16.mxu0 0
        %856 = vmatmul.mubr.bf16.gmra.mxu0 %v818
        %v857 = vpop.f32.mrf.mxu0
        %v858 = vadd.f32 0.0, %v857
        %v859 = vpop.f32.mrf.mxu0
        %v860 = vpop.f32.mrf.mxu0
        %v861 = vpop.f32.mrf.mxu0
        %862 = vdwg.mxu0
        %v863 = vadd.f32 %v806, %v858
        %s864 = scalar_lea.vmem %s9, 16
        %v865 = vld [vmem:[%s864] sm:$0xf]
        %866 = vrot.lane.b32.xlu0 %v648, 111
        %v867 = vpop.permute.xlu0 %866
        %v869 = vsel %vm652, %v865, 0
        %v872 = vsel %vm656, %v867, 0
        %874 = vmatprep.subr.bf16.mxu0 0
        %875 = vmatpush1.bf16.msra.mxu0 0
        %876 = vmatprep.subr.bf16.mxu0 0
        %877 = vmatpush1.bf16.msra.mxu0 0
        %878 = vmatprep.subr.bf16.mxu0 0
        %879 = vmatpush1.bf16.msra.mxu0 0
        %880 = vmatprep.subr.bf16.mxu0 0
        %881 = vmatpush1.bf16.msra.mxu0 0
        %882 = vmatprep.subr.bf16.mxu0 0
        %883 = vmatpush1.bf16.msra.mxu0 0
        %884 = vmatprep.subr.bf16.mxu0 0
        %885 = vmatpush1.bf16.msra.mxu0 0
        %886 = vmatprep.subr.bf16.mxu0 0
        %887 = vmatpush1.bf16.msra.mxu0 0
        %888 = vmatprep.subr.bf16.mxu0 0
        %889 = vmatpush1.bf16.msra.mxu0 %v872
        %890 = vmatprep.subr.bf16.mxu0 0
        %891 = vmatpush2.bf16.msra.mxu0 0
        %892 = vmatprep.subr.bf16.mxu0 0
        %893 = vmatpush2.bf16.msra.mxu0 0
        %894 = vmatprep.subr.bf16.mxu0 0
        %895 = vmatpush2.bf16.msra.mxu0 0
        %896 = vmatprep.subr.bf16.mxu0 0
        %897 = vmatpush2.bf16.msra.mxu0 0
        %898 = vmatprep.subr.bf16.mxu0 0
        %899 = vmatpush2.bf16.msra.mxu0 0
        %900 = vmatprep.subr.bf16.mxu0 0
        %901 = vmatpush2.bf16.msra.mxu0 0
        %902 = vmatprep.subr.bf16.mxu0 0
        %903 = vmatpush2.bf16.msra.mxu0 0
        %904 = vmatprep.subr.bf16.mxu0 0
        %905 = vmatpush2.bf16.msra.mxu0 0
        %906 = vmatprep.mubr.bf16.mxu0 0
        %907 = vmatmul.mubr.bf16.gmra.mxu0 %v869
        %v908 = vpop.f32.mrf.mxu0
        %v909 = vadd.f32 0.0, %v908
        %v910 = vpop.f32.mrf.mxu0
        %v911 = vpop.f32.mrf.mxu0
        %v912 = vpop.f32.mrf.mxu0
        %913 = vdwg.mxu0
        %v914 = vadd.f32 %v863, %v909
        %915 = vrot.lane.b32.xlu0 %v637, 18
        %v916 = vpop.permute.xlu0 %915
        %v918 = vmul.f32 %v638, %v916
        %s919 = scalar_lea.vmem %s9, 20
        %v920 = vld [vmem:[%s919] sm:$0xf]
        %v921 = vpack.c.bf16 %v918, %v918
        %923 = vrot.lane.b32.xlu0 %v921, 110
        %v924 = vpop.permute.xlu0 %923
        %v926 = vsel %vm652, %v920, 0
        %v929 = vsel %vm656, %v924, 0
        %931 = vmatprep.subr.bf16.mxu0 0
        %932 = vmatpush1.bf16.msra.mxu0 0
        %933 = vmatprep.subr.bf16.mxu0 0
        %934 = vmatpush1.bf16.msra.mxu0 0
        %935 = vmatprep.subr.bf16.mxu0 0
        %936 = vmatpush1.bf16.msra.mxu0 0
        %937 = vmatprep.subr.bf16.mxu0 0
        %938 = vmatpush1.bf16.msra.mxu0 0
        %939 = vmatprep.subr.bf16.mxu0 0
        %940 = vmatpush1.bf16.msra.mxu0 0
        %941 = vmatprep.subr.bf16.mxu0 0
        %942 = vmatpush1.bf16.msra.mxu0 0
        %943 = vmatprep.subr.bf16.mxu0 0
        %944 = vmatpush1.bf16.msra.mxu0 0
        %945 = vmatprep.subr.bf16.mxu0 0
        %946 = vmatpush1.bf16.msra.mxu0 %v929
        %947 = vmatprep.subr.bf16.mxu0 0
        %948 = vmatpush2.bf16.msra.mxu0 0
        %949 = vmatprep.subr.bf16.mxu0 0
        %950 = vmatpush2.bf16.msra.mxu0 0
        %951 = vmatprep.subr.bf16.mxu0 0
        %952 = vmatpush2.bf16.msra.mxu0 0
        %953 = vmatprep.subr.bf16.mxu0 0
        %954 = vmatpush2.bf16.msra.mxu0 0
        %955 = vmatprep.subr.bf16.mxu0 0
        %956 = vmatpush2.bf16.msra.mxu0 0
        %957 = vmatprep.subr.bf16.mxu0 0
        %958 = vmatpush2.bf16.msra.mxu0 0
        %959 = vmatprep.subr.bf16.mxu0 0
        %960 = vmatpush2.bf16.msra.mxu0 0
        %961 = vmatprep.subr.bf16.mxu0 0
        %962 = vmatpush2.bf16.msra.mxu0 0
        %963 = vmatprep.mubr.bf16.mxu0 0
        %964 = vmatmul.mubr.bf16.gmra.mxu0 %v926
        %v965 = vpop.f32.mrf.mxu0
        %v966 = vadd.f32 0.0, %v965
        %v967 = vpop.f32.mrf.mxu0
        %v968 = vpop.f32.mrf.mxu0
        %v969 = vpop.f32.mrf.mxu0
        %970 = vdwg.mxu0
        %v971 = vadd.f32 %v914, %v966
        %972 = vrot.lane.b32.xlu0 %v635, 24
        %v973 = vpop.permute.xlu0 %972
        %v975 = vmul.f32 %v638, %v973
        %s976 = scalar_lea.vmem %s9, 24
        %v977 = vld [vmem:[%s976] sm:$0xf]
        %v978 = vpack.c.bf16 %v975, %v975
        %980 = vrot.lane.b32.xlu0 %v978, 104
        %v981 = vpop.permute.xlu0 %980
        %v983 = vsel %vm652, %v977, 0
        %v986 = vsel %vm656, %v981, 0
        %988 = vmatprep.subr.bf16.mxu0 0
        %989 = vmatpush1.bf16.msra.mxu0 0
        %990 = vmatprep.subr.bf16.mxu0 0
        %991 = vmatpush1.bf16.msra.mxu0 0
        %992 = vmatprep.subr.bf16.mxu0 0
        %993 = vmatpush1.bf16.msra.mxu0 0
        %994 = vmatprep.subr.bf16.mxu0 0
        %995 = vmatpush1.bf16.msra.mxu0 0
        %996 = vmatprep.subr.bf16.mxu0 0
        %997 = vmatpush1.bf16.msra.mxu0 0
        %998 = vmatprep.subr.bf16.mxu0 0
        %999 = vmatpush1.bf16.msra.mxu0 0
        %1000 = vmatprep.subr.bf16.mxu0 0
        %1001 = vmatpush1.bf16.msra.mxu0 0
        %1002 = vmatprep.subr.bf16.mxu0 0
        %1003 = vmatpush1.bf16.msra.mxu0 %v986
        %1004 = vmatprep.subr.bf16.mxu0 0
        %1005 = vmatpush2.bf16.msra.mxu0 0
        %1006 = vmatprep.subr.bf16.mxu0 0
        %1007 = vmatpush2.bf16.msra.mxu0 0
        %1008 = vmatprep.subr.bf16.mxu0 0
        %1009 = vmatpush2.bf16.msra.mxu0 0
        %1010 = vmatprep.subr.bf16.mxu0 0
        %1011 = vmatpush2.bf16.msra.mxu0 0
        %1012 = vmatprep.subr.bf16.mxu0 0
        %1013 = vmatpush2.bf16.msra.mxu0 0
        %1014 = vmatprep.subr.bf16.mxu0 0
        %1015 = vmatpush2.bf16.msra.mxu0 0
        %1016 = vmatprep.subr.bf16.mxu0 0
        %1017 = vmatpush2.bf16.msra.mxu0 0
        %1018 = vmatprep.subr.bf16.mxu0 0
        %1019 = vmatpush2.bf16.msra.mxu0 0
        %1020 = vmatprep.mubr.bf16.mxu0 0
        %1021 = vmatmul.mubr.bf16.gmra.mxu0 %v983
        %v1022 = vpop.f32.mrf.mxu0
        %v1023 = vadd.f32 0.0, %v1022
        %v1024 = vpop.f32.mrf.mxu0
        %v1025 = vpop.f32.mrf.mxu0
        %v1026 = vpop.f32.mrf.mxu0
        %1027 = vdwg.mxu0
        %v1028 = vadd.f32 %v971, %v1023
        %s1029 = scalar_lea.vmem %s9, 28
        %v1030 = vld [vmem:[%s1029] sm:$0xf]
        %1031 = vrot.lane.b32.xlu0 %v648, 103
        %v1032 = vpop.permute.xlu0 %1031
        %v1034 = vsel %vm652, %v1030, 0
        %v1037 = vsel %vm656, %v1032, 0
        %1039 = vmatprep.subr.bf16.mxu0 0
        %1040 = vmatpush1.bf16.msra.mxu0 0
        %1041 = vmatprep.subr.bf16.mxu0 0
        %1042 = vmatpush1.bf16.msra.mxu0 0
        %1043 = vmatprep.subr.bf16.mxu0 0
        %1044 = vmatpush1.bf16.msra.mxu0 0
        %1045 = vmatprep.subr.bf16.mxu0 0
        %1046 = vmatpush1.bf16.msra.mxu0 0
        %1047 = vmatprep.subr.bf16.mxu0 0
        %1048 = vmatpush1.bf16.msra.mxu0 0
        %1049 = vmatprep.subr.bf16.mxu0 0
        %1050 = vmatpush1.bf16.msra.mxu0 0
        %1051 = vmatprep.subr.bf16.mxu0 0
        %1052 = vmatpush1.bf16.msra.mxu0 0
        %1053 = vmatprep.subr.bf16.mxu0 0
        %1054 = vmatpush1.bf16.msra.mxu0 %v1037
        %1055 = vmatprep.subr.bf16.mxu0 0
        %1056 = vmatpush2.bf16.msra.mxu0 0
        %1057 = vmatprep.subr.bf16.mxu0 0
        %1058 = vmatpush2.bf16.msra.mxu0 0
        %1059 = vmatprep.subr.bf16.mxu0 0
        %1060 = vmatpush2.bf16.msra.mxu0 0
        %1061 = vmatprep.subr.bf16.mxu0 0
        %1062 = vmatpush2.bf16.msra.mxu0 0
        %1063 = vmatprep.subr.bf16.mxu0 0
        %1064 = vmatpush2.bf16.msra.mxu0 0
        %1065 = vmatprep.subr.bf16.mxu0 0
        %1066 = vmatpush2.bf16.msra.mxu0 0
        %1067 = vmatprep.subr.bf16.mxu0 0
        %1068 = vmatpush2.bf16.msra.mxu0 0
        %1069 = vmatprep.subr.bf16.mxu0 0
        %1070 = vmatpush2.bf16.msra.mxu0 0
        %1071 = vmatprep.mubr.bf16.mxu0 0
        %1072 = vmatmul.mubr.bf16.gmra.mxu0 %v1034
        %v1073 = vpop.f32.mrf.mxu0
        %v1074 = vadd.f32 0.0, %v1073
        %v1075 = vpop.f32.mrf.mxu0
        %v1076 = vpop.f32.mrf.mxu0
        %v1077 = vpop.f32.mrf.mxu0
        %1078 = vdwg.mxu0
        %v1079 = vadd.f32 %v1028, %v1074
        %1080 = vrot.lane.b32.xlu0 %v637, 26
        %v1081 = vpop.permute.xlu0 %1080
        %v1083 = vmul.f32 %v638, %v1081
        %s1084 = scalar_lea.vmem %s9, 32
        %v1085 = vld [vmem:[%s1084] sm:$0xf]
        %v1086 = vpack.c.bf16 %v1083, %v1083
        %1088 = vrot.lane.b32.xlu0 %v1086, 102
        %v1089 = vpop.permute.xlu0 %1088
        %v1091 = vsel %vm652, %v1085, 0
        %v1094 = vsel %vm656, %v1089, 0
        %1096 = vmatprep.subr.bf16.mxu0 0
        %1097 = vmatpush1.bf16.msra.mxu0 0
        %1098 = vmatprep.subr.bf16.mxu0 0
        %1099 = vmatpush1.bf16.msra.mxu0 0
        %1100 = vmatprep.subr.bf16.mxu0 0
        %1101 = vmatpush1.bf16.msra.mxu0 0
        %1102 = vmatprep.subr.bf16.mxu0 0
        %1103 = vmatpush1.bf16.msra.mxu0 0
        %1104 = vmatprep.subr.bf16.mxu0 0
        %1105 = vmatpush1.bf16.msra.mxu0 0
        %1106 = vmatprep.subr.bf16.mxu0 0
        %1107 = vmatpush1.bf16.msra.mxu0 0
        %1108 = vmatprep.subr.bf16.mxu0 0
        %1109 = vmatpush1.bf16.msra.mxu0 0
        %1110 = vmatprep.subr.bf16.mxu0 0
        %1111 = vmatpush1.bf16.msra.mxu0 %v1094
        %1112 = vmatprep.subr.bf16.mxu0 0
        %1113 = vmatpush2.bf16.msra.mxu0 0
        %1114 = vmatprep.subr.bf16.mxu0 0
        %1115 = vmatpush2.bf16.msra.mxu0 0
        %1116 = vmatprep.subr.bf16.mxu0 0
        %1117 = vmatpush2.bf16.msra.mxu0 0
        %1118 = vmatprep.subr.bf16.mxu0 0
        %1119 = vmatpush2.bf16.msra.mxu0 0
        %1120 = vmatprep.subr.bf16.mxu0 0
        %1121 = vmatpush2.bf16.msra.mxu0 0
        %1122 = vmatprep.subr.bf16.mxu0 0
        %1123 = vmatpush2.bf16.msra.mxu0 0
        %1124 = vmatprep.subr.bf16.mxu0 0
        %1125 = vmatpush2.bf16.msra.mxu0 0
        %1126 = vmatprep.subr.bf16.mxu0 0
        %1127 = vmatpush2.bf16.msra.mxu0 0
        %1128 = vmatprep.mubr.bf16.mxu0 0
        %1129 = vmatmul.mubr.bf16.gmra.mxu0 %v1091
        %v1130 = vpop.f32.mrf.mxu0
        %v1131 = vadd.f32 0.0, %v1130
        %v1132 = vpop.f32.mrf.mxu0
        %v1133 = vpop.f32.mrf.mxu0
        %v1134 = vpop.f32.mrf.mxu0
        %1135 = vdwg.mxu0
        %v1136 = vadd.f32 %v1079, %v1131
        %v1137 = vld [vmem:[%s10] sm:$0xff]
        %1139 = vset.pattern.permute.xlu0 0
        %1140 = vperm.xlu0 %1139, %v1137
        %v1141 = vpop.permute.xlu0 %1140
        %v1143 = vadd.f32 %v1136, %v1141
        %v1144 = vmax.f32 %v1143, 0.0
        %v1145 = vld [vmem:[%s11] sm:$0xff]
        %1147 = vset.pattern.permute.xlu0 0
        %1148 = vperm.xlu0 %1147, %v1145
        %v1149 = vpop.permute.xlu0 %1148
        %v1151 = vmul.f32 %v1144, %v1149
        %v1152 = vld [vmem:[%s12] sm:$0xff]
        %1154 = vset.pattern.permute.xlu0 0
        %1155 = vperm.xlu0 %1154, %v1152
        %v1156 = vpop.permute.xlu0 %1155
        %v1158 = vadd.f32 %v1151, %v1156
        %v1159 = vpack.c.bf16 %v1158, %v1158
        %v1160 = vld [vmem:[%s5] sm:$0xff]
        %v1161 = vld [vmem:[%s5 + $0x8] sm:$0xff]
        %v1162 = vld [vmem:[%s5 + $0x10] sm:$0xff]
        %v1163 = vld [vmem:[%s5 + $0x18] sm:$0xff]
        %v1164 = vld [vmem:[%s5 + $0x20] sm:$0xff]
        %v1165 = vld [vmem:[%s5 + $0x28] sm:$0xff]
        %v1166 = vld [vmem:[%s5 + $0x30] sm:$0xff]
        %v1167 = vld [vmem:[%s5 + $0x38] sm:$0xff]
        %v1176 = vunpack.c.l.b16 %v1160
        %v1177 = vunpack.c.h.b16 %v1160
        %v1178 = vunpack.c.l.b16 %v1161
        %v1179 = vunpack.c.h.b16 %v1161
        %v1180 = vunpack.c.l.b16 %v1162
        %v1181 = vunpack.c.h.b16 %v1162
        %v1182 = vunpack.c.l.b16 %v1163
        %v1183 = vunpack.c.h.b16 %v1163
        %v1184 = vunpack.c.l.b16 %v1164
        %v1185 = vunpack.c.h.b16 %v1164
        %v1186 = vunpack.c.l.b16 %v1165
        %v1187 = vunpack.c.h.b16 %v1165
        %v1188 = vunpack.c.l.b16 %v1166
        %v1189 = vunpack.c.h.b16 %v1166
        %v1190 = vunpack.c.l.b16 %v1167
        %v1191 = vunpack.c.h.b16 %v1167
        %v1192 = vpack.c.b16 %v1178, %v1176
        %v1193 = vpack.c.b16 %v1179, %v1177
        %v1194 = vpack.c.b16 %v1182, %v1180
        %v1195 = vpack.c.b16 %v1183, %v1181
        %v1196 = vpack.c.b16 %v1186, %v1184
        %v1197 = vpack.c.b16 %v1187, %v1185
        %v1198 = vpack.c.b16 %v1190, %v1188
        %v1199 = vpack.c.b16 %v1191, %v1189
        %v1209 = vsel %vm527, %v1159, 0
        %1211 = vmatprep.subr.bf16.mxu0 0
        %1212 = vmatpush1.bf16.msra.mxu0 0
        %1213 = vmatprep.subr.bf16.mxu0 0
        %1214 = vmatpush1.bf16.msra.mxu0 0
        %1215 = vmatprep.subr.bf16.mxu0 0
        %1216 = vmatpush1.bf16.msra.mxu0 0
        %1217 = vmatprep.subr.bf16.mxu0 0
        %1218 = vmatpush1.bf16.msra.mxu0 0
        %1219 = vmatprep.subr.bf16.mxu0 %v1199
        %1220 = vmatpush1.bf16.msra.mxu0 %v1198
        %1221 = vmatprep.subr.bf16.mxu0 %v1197
        %1222 = vmatpush1.bf16.msra.mxu0 %v1196
        %1223 = vmatprep.subr.bf16.mxu0 %v1195
        %1224 = vmatpush1.bf16.msra.mxu0 %v1194
        %1225 = vmatprep.subr.bf16.mxu0 %v1193
        %1226 = vmatpush1.bf16.msra.mxu0 %v1192
        %1227 = vmatprep.subr.bf16.mxu0 0
        %1228 = vmatpush2.bf16.msra.mxu0 0
        %1229 = vmatprep.subr.bf16.mxu0 0
        %1230 = vmatpush2.bf16.msra.mxu0 0
        %1231 = vmatprep.subr.bf16.mxu0 0
        %1232 = vmatpush2.bf16.msra.mxu0 0
        %1233 = vmatprep.subr.bf16.mxu0 0
        %1234 = vmatpush2.bf16.msra.mxu0 0
        %1235 = vmatprep.subr.bf16.mxu0 0
        %1236 = vmatpush2.bf16.msra.mxu0 0
        %1237 = vmatprep.subr.bf16.mxu0 0
        %1238 = vmatpush2.bf16.msra.mxu0 0
        %1239 = vmatprep.subr.bf16.mxu0 0
        %1240 = vmatpush2.bf16.msra.mxu0 0
        %1241 = vmatprep.subr.bf16.mxu0 0
        %1242 = vmatpush2.bf16.msra.mxu0 0
        %1243 = vmatprep.mubr.bf16.mxu0 0
        %1244 = vmatmul.mubr.bf16.gmra.mxu0 %v1209
        %v1245 = vpop.f32.mrf.mxu0
        %v1246 = vadd.f32 0.0, %v1245
        %v1247 = vpop.f32.mrf.mxu0
        %v1248 = vadd.f32 0.0, %v1247
        %v1249 = vpop.f32.mrf.mxu0
        %v1250 = vpop.f32.mrf.mxu0
        %1251 = vdwg.mxu0
        %1254 = vrot.lane.b32.xlu0 %v1246, 17
        %v1255 = vpop.permute.xlu0 %1254
        %1256 = vrot.lane.b32.xlu0 %v1248, 17
        %v1257 = vpop.permute.xlu0 %1256
        %vm1258 = vcmask 138240
        %v1259 = vsel %vm1258, %v1255, %v1257
        %vm1263 = vcmask 1047688
        %1264 = vst.msk [vmem:[#allocation2] sm:$0xff] %vm1263, %v1255
        %1265 = vst [vmem:[#allocation2 + $0x8] sm:$0xff] %v1259
        %1266 = vst.msk [vmem:[#allocation2 + $0x10] sm:$0xff] %vm1258, %v1257
        %v1267 = vld [vmem:[%s7] sm:$0xff]
        %v1268 = vld [vmem:[%s7 + $0x8] sm:$0xff]
        %s1269 = scalar_lea.vmem %s7, 16
        %v1270 = vld [vmem:[%s1269] sm:$0xff]
        %v1271 = vld [vmem:[%s1269 + $0x8] sm:$0xff]
        %v1272 = vld [vmem:[#allocation2] sm:$0xff]
        %v1273 = vld [vmem:[#allocation2 + $0x8] sm:$0xff]
        %v1274 = vmul.f32 %v1272, %v1267
        %v1275 = vmul.f32 %v1273, %v1268
        %s1276 = scalar_lea.vmem %s9, 36
        %v1277 = vld [vmem:[%s1276] sm:$0xf]
        %v1278 = vpack.c.bf16 %v1274, %v1274
        %v1279 = vpack.c.bf16 %v1275, %v1275
        %v1280 = vld [vmem:[#allocation2 + $0x10] sm:$0xff]
        %s1281 = scalar_lea.vmem %s9, 40
        %v1282 = vld [vmem:[%s1281] sm:$0xf]
        %v1283 = vpack.c.bf16 %v1272, %v1272
        %v1284 = vpack.c.bf16 %v1273, %v1273
        %v1285 = vpack.c.bf16 %v1280, %v1280
        %1289 = vrot.lane.b32.xlu0 %v1283, 127
        %v1290 = vpop.permute.xlu0 %1289
        %1291 = vrot.lane.b32.xlu0 %v1284, 127
        %v1292 = vpop.permute.xlu0 %1291
        %1293 = vrot.lane.b32.xlu0 %v1285, 127
        %v1294 = vpop.permute.xlu0 %1293
        %vm1295 = vcmask 1039360
        %v1296 = vsel %vm1295, %v1290, %v1292
        %v1297 = vsel %vm1295, %v1292, %v1294
        %v1299 = vsel %vm652, %v1282, 0
        %v1302 = vsel %vm656, %v1296, 0
        %v1305 = vsel %vm656, %v1297, 0
        %1307 = vmatprep.subr.bf16.mxu0 0
        %1308 = vmatpush1.bf16.msra.mxu0 0
        %1309 = vmatprep.subr.bf16.mxu0 0
        %1310 = vmatpush1.bf16.msra.mxu0 0
        %1311 = vmatprep.subr.bf16.mxu0 0
        %1312 = vmatpush1.bf16.msra.mxu0 0
        %1313 = vmatprep.subr.bf16.mxu0 0
        %1314 = vmatpush1.bf16.msra.mxu0 0
        %1315 = vmatprep.subr.bf16.mxu0 0
        %1316 = vmatpush1.bf16.msra.mxu0 0
        %1317 = vmatprep.subr.bf16.mxu0 0
        %1318 = vmatpush1.bf16.msra.mxu0 0
        %1319 = vmatprep.subr.bf16.mxu0 0
        %1320 = vmatpush1.bf16.msra.mxu0 0
        %1321 = vmatprep.subr.bf16.mxu0 %v1305
        %1322 = vmatpush1.bf16.msra.mxu0 %v1302
        %1323 = vmatprep.subr.bf16.mxu0 0
        %1324 = vmatpush2.bf16.msra.mxu0 0
        %1325 = vmatprep.subr.bf16.mxu0 0
        %1326 = vmatpush2.bf16.msra.mxu0 0
        %1327 = vmatprep.subr.bf16.mxu0 0
        %1328 = vmatpush2.bf16.msra.mxu0 0
        %1329 = vmatprep.subr.bf16.mxu0 0
        %1330 = vmatpush2.bf16.msra.mxu0 0
        %1331 = vmatprep.subr.bf16.mxu0 0
        %1332 = vmatpush2.bf16.msra.mxu0 0
        %1333 = vmatprep.subr.bf16.mxu0 0
        %1334 = vmatpush2.bf16.msra.mxu0 0
        %1335 = vmatprep.subr.bf16.mxu0 0
        %1336 = vmatpush2.bf16.msra.mxu0 0
        %1337 = vmatprep.subr.bf16.mxu0 0
        %1338 = vmatpush2.bf16.msra.mxu0 0
        %1339 = vmatprep.mubr.bf16.mxu0 0
        %1340 = vmatmul.mubr.bf16.gmra.mxu0 %v1299
        %v1341 = vpop.f32.mrf.mxu0
        %v1342 = vadd.f32 0.0, %v1341
        %v1343 = vpop.f32.mrf.mxu0
        %v1344 = vadd.f32 0.0, %v1343
        %v1345 = vpop.f32.mrf.mxu0
        %v1346 = vpop.f32.mrf.mxu0
        %1347 = vdwg.mxu0
        %v1349 = vsel %vm652, %v1277, 0
        %v1352 = vsel %vm656, %v1278, 0
        %v1355 = vsel %vm656, %v1279, 0
        %1357 = vmatprep.subr.bf16.mxu0 0
        %1358 = vmatpush1.bf16.msra.mxu0 0
        %1359 = vmatprep.subr.bf16.mxu0 0
        %1360 = vmatpush1.bf16.msra.mxu0 0
        %1361 = vmatprep.subr.bf16.mxu0 0
        %1362 = vmatpush1.bf16.msra.mxu0 0
        %1363 = vmatprep.subr.bf16.mxu0 0
        %1364 = vmatpush1.bf16.msra.mxu0 0
        %1365 = vmatprep.subr.bf16.mxu0 0
        %1366 = vmatpush1.bf16.msra.mxu0 0
        %1367 = vmatprep.subr.bf16.mxu0 0
        %1368 = vmatpush1.bf16.msra.mxu0 0
        %1369 = vmatprep.subr.bf16.mxu0 0
        %1370 = vmatpush1.bf16.msra.mxu0 0
        %1371 = vmatprep.subr.bf16.mxu0 %v1355
        %1372 = vmatpush1.bf16.msra.mxu0 %v1352
        %1373 = vmatprep.subr.bf16.mxu0 0
        %1374 = vmatpush2.bf16.msra.mxu0 0
        %1375 = vmatprep.subr.bf16.mxu0 0
        %1376 = vmatpush2.bf16.msra.mxu0 0
        %1377 = vmatprep.subr.bf16.mxu0 0
        %1378 = vmatpush2.bf16.msra.mxu0 0
        %1379 = vmatprep.subr.bf16.mxu0 0
        %1380 = vmatpush2.bf16.msra.mxu0 0
        %1381 = vmatprep.subr.bf16.mxu0 0
        %1382 = vmatpush2.bf16.msra.mxu0 0
        %1383 = vmatprep.subr.bf16.mxu0 0
        %1384 = vmatpush2.bf16.msra.mxu0 0
        %1385 = vmatprep.subr.bf16.mxu0 0
        %1386 = vmatpush2.bf16.msra.mxu0 0
        %1387 = vmatprep.subr.bf16.mxu0 0
        %1388 = vmatpush2.bf16.msra.mxu0 0
        %1389 = vmatprep.mubr.bf16.mxu0 0
        %1390 = vmatmul.mubr.bf16.gmra.mxu0 %v1349
        %v1391 = vpop.f32.mrf.mxu0
        %v1392 = vadd.f32 %v1342, %v1391
        %v1393 = vpop.f32.mrf.mxu0
        %v1394 = vadd.f32 %v1344, %v1393
        %v1395 = vpop.f32.mrf.mxu0
        %v1396 = vpop.f32.mrf.mxu0
        %1397 = vdwg.mxu0
        %1400 = vrot.lane.b32.xlu0 %v1270, 2
        %v1401 = vpop.permute.xlu0 %1400
        %1402 = vrot.lane.b32.xlu0 %v1271, 2
        %v1403 = vpop.permute.xlu0 %1402
        %vm1404 = vcmask 15360
        %v1405 = vsel %vm1404, %v1401, %v1403
        %v1409 = vmul.f32 %v1272, %v1401
        %v1410 = vmul.f32 %v1273, %v1405
        %v1411 = vmul.f32 %v1280, %v1403
        %s1412 = scalar_lea.vmem %s9, 44
        %v1413 = vld [vmem:[%s1412] sm:$0xf]
        %v1414 = vpack.c.bf16 %v1409, %v1409
        %v1415 = vpack.c.bf16 %v1410, %v1410
        %v1416 = vpack.c.bf16 %v1411, %v1411
        %1420 = vrot.lane.b32.xlu0 %v1414, 126
        %v1421 = vpop.permute.xlu0 %1420
        %1422 = vrot.lane.b32.xlu0 %v1415, 126
        %v1423 = vpop.permute.xlu0 %1422
        %1424 = vrot.lane.b32.xlu0 %v1416, 126
        %v1425 = vpop.permute.xlu0 %1424
        %vm1426 = vcmask 1031168
        %v1427 = vsel %vm1426, %v1421, %v1423
        %v1428 = vsel %vm1426, %v1423, %v1425
        %v1430 = vsel %vm652, %v1413, 0
        %v1433 = vsel %vm656, %v1427, 0
        %v1436 = vsel %vm656, %v1428, 0
        %1438 = vmatprep.subr.bf16.mxu0 0
        %1439 = vmatpush1.bf16.msra.mxu0 0
        %1440 = vmatprep.subr.bf16.mxu0 0
        %1441 = vmatpush1.bf16.msra.mxu0 0
        %1442 = vmatprep.subr.bf16.mxu0 0
        %1443 = vmatpush1.bf16.msra.mxu0 0
        %1444 = vmatprep.subr.bf16.mxu0 0
        %1445 = vmatpush1.bf16.msra.mxu0 0
        %1446 = vmatprep.subr.bf16.mxu0 0
        %1447 = vmatpush1.bf16.msra.mxu0 0
        %1448 = vmatprep.subr.bf16.mxu0 0
        %1449 = vmatpush1.bf16.msra.mxu0 0
        %1450 = vmatprep.subr.bf16.mxu0 0
        %1451 = vmatpush1.bf16.msra.mxu0 0
        %1452 = vmatprep.subr.bf16.mxu0 %v1436
        %1453 = vmatpush1.bf16.msra.mxu0 %v1433
        %1454 = vmatprep.subr.bf16.mxu0 0
        %1455 = vmatpush2.bf16.msra.mxu0 0
        %1456 = vmatprep.subr.bf16.mxu0 0
        %1457 = vmatpush2.bf16.msra.mxu0 0
        %1458 = vmatprep.subr.bf16.mxu0 0
        %1459 = vmatpush2.bf16.msra.mxu0 0
        %1460 = vmatprep.subr.bf16.mxu0 0
        %1461 = vmatpush2.bf16.msra.mxu0 0
        %1462 = vmatprep.subr.bf16.mxu0 0
        %1463 = vmatpush2.bf16.msra.mxu0 0
        %1464 = vmatprep.subr.bf16.mxu0 0
        %1465 = vmatpush2.bf16.msra.mxu0 0
        %1466 = vmatprep.subr.bf16.mxu0 0
        %1467 = vmatpush2.bf16.msra.mxu0 0
        %1468 = vmatprep.subr.bf16.mxu0 0
        %1469 = vmatpush2.bf16.msra.mxu0 0
        %1470 = vmatprep.mubr.bf16.mxu0 0
        %1471 = vmatmul.mubr.bf16.gmra.mxu0 %v1430
        %v1472 = vpop.f32.mrf.mxu0
        %v1473 = vadd.f32 0.0, %v1472
        %v1474 = vpop.f32.mrf.mxu0
        %v1475 = vadd.f32 0.0, %v1474
        %v1476 = vpop.f32.mrf.mxu0
        %v1477 = vpop.f32.mrf.mxu0
        %1478 = vdwg.mxu0
        %v1479 = vadd.f32 %v1392, %v1473
        %v1480 = vadd.f32 %v1394, %v1475
        %1483 = vrot.lane.b32.xlu0 %v1267, 16
        %v1484 = vpop.permute.xlu0 %1483
        %1485 = vrot.lane.b32.xlu0 %v1268, 16
        %v1486 = vpop.permute.xlu0 %1485
        %v1487 = vsel %vm585, %v1484, %v1486
        %v1491 = vmul.f32 %v1272, %v1484
        %v1492 = vmul.f32 %v1273, %v1487
        %v1493 = vmul.f32 %v1280, %v1486
        %s1494 = scalar_lea.vmem %s9, 48
        %v1495 = vld [vmem:[%s1494] sm:$0xf]
        %v1496 = vpack.c.bf16 %v1491, %v1491
        %v1497 = vpack.c.bf16 %v1492, %v1492
        %v1498 = vpack.c.bf16 %v1493, %v1493
        %1502 = vrot.lane.b32.xlu0 %v1496, 112
        %v1503 = vpop.permute.xlu0 %1502
        %1504 = vrot.lane.b32.xlu0 %v1497, 112
        %v1505 = vpop.permute.xlu0 %1504
        %1506 = vrot.lane.b32.xlu0 %v1498, 112
        %v1507 = vpop.permute.xlu0 %1506
        %vm1508 = vcmask 916480
        %v1509 = vsel %vm1508, %v1503, %v1505
        %v1510 = vsel %vm1508, %v1505, %v1507
        %v1512 = vsel %vm652, %v1495, 0
        %v1515 = vsel %vm656, %v1509, 0
        %v1518 = vsel %vm656, %v1510, 0
        %1520 = vmatprep.subr.bf16.mxu0 0
        %1521 = vmatpush1.bf16.msra.mxu0 0
        %1522 = vmatprep.subr.bf16.mxu0 0
        %1523 = vmatpush1.bf16.msra.mxu0 0
        %1524 = vmatprep.subr.bf16.mxu0 0
        %1525 = vmatpush1.bf16.msra.mxu0 0
        %1526 = vmatprep.subr.bf16.mxu0 0
        %1527 = vmatpush1.bf16.msra.mxu0 0
        %1528 = vmatprep.subr.bf16.mxu0 0
        %1529 = vmatpush1.bf16.msra.mxu0 0
        %1530 = vmatprep.subr.bf16.mxu0 0
        %1531 = vmatpush1.bf16.msra.mxu0 0
        %1532 = vmatprep.subr.bf16.mxu0 0
        %1533 = vmatpush1.bf16.msra.mxu0 0
        %1534 = vmatprep.subr.bf16.mxu0 %v1518
        %1535 = vmatpush1.bf16.msra.mxu0 %v1515
        %1536 = vmatprep.subr.bf16.mxu0 0
        %1537 = vmatpush2.bf16.msra.mxu0 0
        %1538 = vmatprep.subr.bf16.mxu0 0
        %1539 = vmatpush2.bf16.msra.mxu0 0
        %1540 = vmatprep.subr.bf16.mxu0 0
        %1541 = vmatpush2.bf16.msra.mxu0 0
        %1542 = vmatprep.subr.bf16.mxu0 0
        %1543 = vmatpush2.bf16.msra.mxu0 0
        %1544 = vmatprep.subr.bf16.mxu0 0
        %1545 = vmatpush2.bf16.msra.mxu0 0
        %1546 = vmatprep.subr.bf16.mxu0 0
        %1547 = vmatpush2.bf16.msra.mxu0 0
        %1548 = vmatprep.subr.bf16.mxu0 0
        %1549 = vmatpush2.bf16.msra.mxu0 0
        %1550 = vmatprep.subr.bf16.mxu0 0
        %1551 = vmatpush2.bf16.msra.mxu0 0
        %1552 = vmatprep.mubr.bf16.mxu0 0
        %1553 = vmatmul.mubr.bf16.gmra.mxu0 %v1512
        %v1554 = vpop.f32.mrf.mxu0
        %v1555 = vadd.f32 0.0, %v1554
        %v1556 = vpop.f32.mrf.mxu0
        %v1557 = vadd.f32 0.0, %v1556
        %v1558 = vpop.f32.mrf.mxu0
        %v1559 = vpop.f32.mrf.mxu0
        %1560 = vdwg.mxu0
        %v1561 = vadd.f32 %v1479, %v1555
        %v1562 = vadd.f32 %v1480, %v1557
        %s1563 = scalar_lea.vmem %s9, 52
        %v1564 = vld [vmem:[%s1563] sm:$0xf]
        %1565 = vrot.lane.b32.xlu0 %v1283, 111
        %v1566 = vpop.permute.xlu0 %1565
        %1567 = vrot.lane.b32.xlu0 %v1284, 111
        %v1568 = vpop.permute.xlu0 %1567
        %1569 = vrot.lane.b32.xlu0 %v1285, 111
        %v1570 = vpop.permute.xlu0 %1569
        %vm1571 = vcmask 908288
        %v1572 = vsel %vm1571, %v1566, %v1568
        %v1573 = vsel %vm1571, %v1568, %v1570
        %v1575 = vsel %vm652, %v1564, 0
        %v1578 = vsel %vm656, %v1572, 0
        %v1581 = vsel %vm656, %v1573, 0
        %1583 = vmatprep.subr.bf16.mxu0 0
        %1584 = vmatpush1.bf16.msra.mxu0 0
        %1585 = vmatprep.subr.bf16.mxu0 0
        %1586 = vmatpush1.bf16.msra.mxu0 0
        %1587 = vmatprep.subr.bf16.mxu0 0
        %1588 = vmatpush1.bf16.msra.mxu0 0
        %1589 = vmatprep.subr.bf16.mxu0 0
        %1590 = vmatpush1.bf16.msra.mxu0 0
        %1591 = vmatprep.subr.bf16.mxu0 0
        %1592 = vmatpush1.bf16.msra.mxu0 0
        %1593 = vmatprep.subr.bf16.mxu0 0
        %1594 = vmatpush1.bf16.msra.mxu0 0
        %1595 = vmatprep.subr.bf16.mxu0 0
        %1596 = vmatpush1.bf16.msra.mxu0 0
        %1597 = vmatprep.subr.bf16.mxu0 %v1581
        %1598 = vmatpush1.bf16.msra.mxu0 %v1578
        %1599 = vmatprep.subr.bf16.mxu0 0
        %1600 = vmatpush2.bf16.msra.mxu0 0
        %1601 = vmatprep.subr.bf16.mxu0 0
        %1602 = vmatpush2.bf16.msra.mxu0 0
        %1603 = vmatprep.subr.bf16.mxu0 0
        %1604 = vmatpush2.bf16.msra.mxu0 0
        %1605 = vmatprep.subr.bf16.mxu0 0
        %1606 = vmatpush2.bf16.msra.mxu0 0
        %1607 = vmatprep.subr.bf16.mxu0 0
        %1608 = vmatpush2.bf16.msra.mxu0 0
        %1609 = vmatprep.subr.bf16.mxu0 0
        %1610 = vmatpush2.bf16.msra.mxu0 0
        %1611 = vmatprep.subr.bf16.mxu0 0
        %1612 = vmatpush2.bf16.msra.mxu0 0
        %1613 = vmatprep.subr.bf16.mxu0 0
        %1614 = vmatpush2.bf16.msra.mxu0 0
        %1615 = vmatprep.mubr.bf16.mxu0 0
        %1616 = vmatmul.mubr.bf16.gmra.mxu0 %v1575
        %v1617 = vpop.f32.mrf.mxu0
        %v1618 = vadd.f32 0.0, %v1617
        %v1619 = vpop.f32.mrf.mxu0
        %v1620 = vadd.f32 0.0, %v1619
        %v1621 = vpop.f32.mrf.mxu0
        %v1622 = vpop.f32.mrf.mxu0
        %1623 = vdwg.mxu0
        %v1624 = vadd.f32 %v1561, %v1618
        %v1625 = vadd.f32 %v1562, %v1620
        %1626 = vrot.lane.b32.xlu0 %v1270, 18
        %v1627 = vpop.permute.xlu0 %1626
        %1628 = vrot.lane.b32.xlu0 %v1271, 18
        %v1629 = vpop.permute.xlu0 %1628
        %vm1630 = vcmask 146432
        %v1631 = vsel %vm1630, %v1627, %v1629
        %v1635 = vmul.f32 %v1272, %v1627
        %v1636 = vmul.f32 %v1273, %v1631
        %v1637 = vmul.f32 %v1280, %v1629
        %s1638 = scalar_lea.vmem %s9, 56
        %v1639 = vld [vmem:[%s1638] sm:$0xf]
        %v1640 = vpack.c.bf16 %v1635, %v1635
        %v1641 = vpack.c.bf16 %v1636, %v1636
        %v1642 = vpack.c.bf16 %v1637, %v1637
        %1646 = vrot.lane.b32.xlu0 %v1640, 110
        %v1647 = vpop.permute.xlu0 %1646
        %1648 = vrot.lane.b32.xlu0 %v1641, 110
        %v1649 = vpop.permute.xlu0 %1648
        %1650 = vrot.lane.b32.xlu0 %v1642, 110
        %v1651 = vpop.permute.xlu0 %1650
        %vm1652 = vcmask 900096
        %v1653 = vsel %vm1652, %v1647, %v1649
        %v1654 = vsel %vm1652, %v1649, %v1651
        %v1656 = vsel %vm652, %v1639, 0
        %v1659 = vsel %vm656, %v1653, 0
        %v1662 = vsel %vm656, %v1654, 0
        %1664 = vmatprep.subr.bf16.mxu0 0
        %1665 = vmatpush1.bf16.msra.mxu0 0
        %1666 = vmatprep.subr.bf16.mxu0 0
        %1667 = vmatpush1.bf16.msra.mxu0 0
        %1668 = vmatprep.subr.bf16.mxu0 0
        %1669 = vmatpush1.bf16.msra.mxu0 0
        %1670 = vmatprep.subr.bf16.mxu0 0
        %1671 = vmatpush1.bf16.msra.mxu0 0
        %1672 = vmatprep.subr.bf16.mxu0 0
        %1673 = vmatpush1.bf16.msra.mxu0 0
        %1674 = vmatprep.subr.bf16.mxu0 0
        %1675 = vmatpush1.bf16.msra.mxu0 0
        %1676 = vmatprep.subr.bf16.mxu0 0
        %1677 = vmatpush1.bf16.msra.mxu0 0
        %1678 = vmatprep.subr.bf16.mxu0 %v1662
        %1679 = vmatpush1.bf16.msra.mxu0 %v1659
        %1680 = vmatprep.subr.bf16.mxu0 0
        %1681 = vmatpush2.bf16.msra.mxu0 0
        %1682 = vmatprep.subr.bf16.mxu0 0
        %1683 = vmatpush2.bf16.msra.mxu0 0
        %1684 = vmatprep.subr.bf16.mxu0 0
        %1685 = vmatpush2.bf16.msra.mxu0 0
        %1686 = vmatprep.subr.bf16.mxu0 0
        %1687 = vmatpush2.bf16.msra.mxu0 0
        %1688 = vmatprep.subr.bf16.mxu0 0
        %1689 = vmatpush2.bf16.msra.mxu0 0
        %1690 = vmatprep.subr.bf16.mxu0 0
        %1691 = vmatpush2.bf16.msra.mxu0 0
        %1692 = vmatprep.subr.bf16.mxu0 0
        %1693 = vmatpush2.bf16.msra.mxu0 0
        %1694 = vmatprep.subr.bf16.mxu0 0
        %1695 = vmatpush2.bf16.msra.mxu0 0
        %1696 = vmatprep.mubr.bf16.mxu0 0
        %1697 = vmatmul.mubr.bf16.gmra.mxu0 %v1656
        %v1698 = vpop.f32.mrf.mxu0
        %v1699 = vadd.f32 0.0, %v1698
        %v1700 = vpop.f32.mrf.mxu0
        %v1701 = vadd.f32 0.0, %v1700
        %v1702 = vpop.f32.mrf.mxu0
        %v1703 = vpop.f32.mrf.mxu0
        %1704 = vdwg.mxu0
        %v1705 = vadd.f32 %v1624, %v1699
        %v1706 = vadd.f32 %v1625, %v1701
        %1707 = vrot.lane.b32.xlu0 %v1267, 32
        %v1708 = vpop.permute.xlu0 %1707
        %1709 = vrot.lane.b32.xlu0 %v1268, 32
        %v1710 = vpop.permute.xlu0 %1709
        %vm1711 = vcmask 261120
        %v1712 = vsel %vm1711, %v1708, %v1710
        %v1716 = vmul.f32 %v1272, %v1708
        %v1717 = vmul.f32 %v1273, %v1712
        %v1718 = vmul.f32 %v1280, %v1710
        %s1719 = scalar_lea.vmem %s9, 60
        %v1720 = vld [vmem:[%s1719] sm:$0xf]
        %v1721 = vpack.c.bf16 %v1716, %v1716
        %v1722 = vpack.c.bf16 %v1717, %v1717
        %v1723 = vpack.c.bf16 %v1718, %v1718
        %1727 = vrot.lane.b32.xlu0 %v1721, 96
        %v1728 = vpop.permute.xlu0 %1727
        %1729 = vrot.lane.b32.xlu0 %v1722, 96
        %v1730 = vpop.permute.xlu0 %1729
        %1731 = vrot.lane.b32.xlu0 %v1723, 96
        %v1732 = vpop.permute.xlu0 %1731
        %vm1733 = vcmask 785408
        %v1734 = vsel %vm1733, %v1728, %v1730
        %v1735 = vsel %vm1733, %v1730, %v1732
        %v1737 = vsel %vm652, %v1720, 0
        %v1740 = vsel %vm656, %v1734, 0
        %v1743 = vsel %vm656, %v1735, 0
        %1745 = vmatprep.subr.bf16.mxu0 0
        %1746 = vmatpush1.bf16.msra.mxu0 0
        %1747 = vmatprep.subr.bf16.mxu0 0
        %1748 = vmatpush1.bf16.msra.mxu0 0
        %1749 = vmatprep.subr.bf16.mxu0 0
        %1750 = vmatpush1.bf16.msra.mxu0 0
        %1751 = vmatprep.subr.bf16.mxu0 0
        %1752 = vmatpush1.bf16.msra.mxu0 0
        %1753 = vmatprep.subr.bf16.mxu0 0
        %1754 = vmatpush1.bf16.msra.mxu0 0
        %1755 = vmatprep.subr.bf16.mxu0 0
        %1756 = vmatpush1.bf16.msra.mxu0 0
        %1757 = vmatprep.subr.bf16.mxu0 0
        %1758 = vmatpush1.bf16.msra.mxu0 0
        %1759 = vmatprep.subr.bf16.mxu0 %v1743
        %1760 = vmatpush1.bf16.msra.mxu0 %v1740
        %1761 = vmatprep.subr.bf16.mxu0 0
        %1762 = vmatpush2.bf16.msra.mxu0 0
        %1763 = vmatprep.subr.bf16.mxu0 0
        %1764 = vmatpush2.bf16.msra.mxu0 0
        %1765 = vmatprep.subr.bf16.mxu0 0
        %1766 = vmatpush2.bf16.msra.mxu0 0
        %1767 = vmatprep.subr.bf16.mxu0 0
        %1768 = vmatpush2.bf16.msra.mxu0 0
        %1769 = vmatprep.subr.bf16.mxu0 0
        %1770 = vmatpush2.bf16.msra.mxu0 0
        %1771 = vmatprep.subr.bf16.mxu0 0
        %1772 = vmatpush2.bf16.msra.mxu0 0
        %1773 = vmatprep.subr.bf16.mxu0 0
        %1774 = vmatpush2.bf16.msra.mxu0 0
        %1775 = vmatprep.subr.bf16.mxu0 0
        %1776 = vmatpush2.bf16.msra.mxu0 0
        %1777 = vmatprep.mubr.bf16.mxu0 0
        %1778 = vmatmul.mubr.bf16.gmra.mxu0 %v1737
        %v1779 = vpop.f32.mrf.mxu0
        %v1780 = vadd.f32 0.0, %v1779
        %v1781 = vpop.f32.mrf.mxu0
        %v1782 = vadd.f32 0.0, %v1781
        %v1783 = vpop.f32.mrf.mxu0
        %v1784 = vpop.f32.mrf.mxu0
        %1785 = vdwg.mxu0
        %v1786 = vadd.f32 %v1705, %v1780
        %v1787 = vadd.f32 %v1706, %v1782
        %s1788 = scalar_lea.vmem %s9, 64
        %v1789 = vld [vmem:[%s1788] sm:$0xf]
        %1790 = vrot.lane.b32.xlu0 %v1283, 95
        %v1791 = vpop.permute.xlu0 %1790
        %1792 = vrot.lane.b32.xlu0 %v1284, 95
        %v1793 = vpop.permute.xlu0 %1792
        %1794 = vrot.lane.b32.xlu0 %v1285, 95
        %v1795 = vpop.permute.xlu0 %1794
        %vm1796 = vcmask 777216
        %v1797 = vsel %vm1796, %v1791, %v1793
        %v1798 = vsel %vm1796, %v1793, %v1795
        %v1800 = vsel %vm652, %v1789, 0
        %v1803 = vsel %vm656, %v1797, 0
        %v1806 = vsel %vm656, %v1798, 0
        %1808 = vmatprep.subr.bf16.mxu0 0
        %1809 = vmatpush1.bf16.msra.mxu0 0
        %1810 = vmatprep.subr.bf16.mxu0 0
        %1811 = vmatpush1.bf16.msra.mxu0 0
        %1812 = vmatprep.subr.bf16.mxu0 0
        %1813 = vmatpush1.bf16.msra.mxu0 0
        %1814 = vmatprep.subr.bf16.mxu0 0
        %1815 = vmatpush1.bf16.msra.mxu0 0
        %1816 = vmatprep.subr.bf16.mxu0 0
        %1817 = vmatpush1.bf16.msra.mxu0 0
        %1818 = vmatprep.subr.bf16.mxu0 0
        %1819 = vmatpush1.bf16.msra.mxu0 0
        %1820 = vmatprep.subr.bf16.mxu0 0
        %1821 = vmatpush1.bf16.msra.mxu0 0
        %1822 = vmatprep.subr.bf16.mxu0 %v1806
        %1823 = vmatpush1.bf16.msra.mxu0 %v1803
        %1824 = vmatprep.subr.bf16.mxu0 0
        %1825 = vmatpush2.bf16.msra.mxu0 0
        %1826 = vmatprep.subr.bf16.mxu0 0
        %1827 = vmatpush2.bf16.msra.mxu0 0
        %1828 = vmatprep.subr.bf16.mxu0 0
        %1829 = vmatpush2.bf16.msra.mxu0 0
        %1830 = vmatprep.subr.bf16.mxu0 0
        %1831 = vmatpush2.bf16.msra.mxu0 0
        %1832 = vmatprep.subr.bf16.mxu0 0
        %1833 = vmatpush2.bf16.msra.mxu0 0
        %1834 = vmatprep.subr.bf16.mxu0 0
        %1835 = vmatpush2.bf16.msra.mxu0 0
        %1836 = vmatprep.subr.bf16.mxu0 0
        %1837 = vmatpush2.bf16.msra.mxu0 0
        %1838 = vmatprep.subr.bf16.mxu0 0
        %1839 = vmatpush2.bf16.msra.mxu0 0
        %1840 = vmatprep.mubr.bf16.mxu0 0
        %1841 = vmatmul.mubr.bf16.gmra.mxu0 %v1800
        %v1842 = vpop.f32.mrf.mxu0
        %v1843 = vadd.f32 0.0, %v1842
        %v1844 = vpop.f32.mrf.mxu0
        %v1845 = vadd.f32 0.0, %v1844
        %v1846 = vpop.f32.mrf.mxu0
        %v1847 = vpop.f32.mrf.mxu0
        %1848 = vdwg.mxu0
        %v1849 = vadd.f32 %v1786, %v1843
        %v1850 = vadd.f32 %v1787, %v1845
        %1851 = vrot.lane.b32.xlu0 %v1270, 34
        %v1852 = vpop.permute.xlu0 %1851
        %1853 = vrot.lane.b32.xlu0 %v1271, 34
        %v1854 = vpop.permute.xlu0 %1853
        %v1855 = vsel %vm574, %v1852, %v1854
        %v1859 = vmul.f32 %v1272, %v1852
        %v1860 = vmul.f32 %v1273, %v1855
        %v1861 = vmul.f32 %v1280, %v1854
        %s1862 = scalar_lea.vmem %s9, 68
        %v1863 = vld [vmem:[%s1862] sm:$0xf]
        %v1864 = vpack.c.bf16 %v1859, %v1859
        %v1865 = vpack.c.bf16 %v1860, %v1860
        %v1866 = vpack.c.bf16 %v1861, %v1861
        %1870 = vrot.lane.b32.xlu0 %v1864, 94
        %v1871 = vpop.permute.xlu0 %1870
        %1872 = vrot.lane.b32.xlu0 %v1865, 94
        %v1873 = vpop.permute.xlu0 %1872
        %1874 = vrot.lane.b32.xlu0 %v1866, 94
        %v1875 = vpop.permute.xlu0 %1874
        %vm1876 = vcmask 769024
        %v1877 = vsel %vm1876, %v1871, %v1873
        %v1878 = vsel %vm1876, %v1873, %v1875
        %v1880 = vsel %vm652, %v1863, 0
        %v1883 = vsel %vm656, %v1877, 0
        %v1886 = vsel %vm656, %v1878, 0
        %1888 = vmatprep.subr.bf16.mxu0 0
        %1889 = vmatpush1.bf16.msra.mxu0 0
        %1890 = vmatprep.subr.bf16.mxu0 0
        %1891 = vmatpush1.bf16.msra.mxu0 0
        %1892 = vmatprep.subr.bf16.mxu0 0
        %1893 = vmatpush1.bf16.msra.mxu0 0
        %1894 = vmatprep.subr.bf16.mxu0 0
        %1895 = vmatpush1.bf16.msra.mxu0 0
        %1896 = vmatprep.subr.bf16.mxu0 0
        %1897 = vmatpush1.bf16.msra.mxu0 0
        %1898 = vmatprep.subr.bf16.mxu0 0
        %1899 = vmatpush1.bf16.msra.mxu0 0
        %1900 = vmatprep.subr.bf16.mxu0 0
        %1901 = vmatpush1.bf16.msra.mxu0 0
        %1902 = vmatprep.subr.bf16.mxu0 %v1886
        %1903 = vmatpush1.bf16.msra.mxu0 %v1883
        %1904 = vmatprep.subr.bf16.mxu0 0
        %1905 = vmatpush2.bf16.msra.mxu0 0
        %1906 = vmatprep.subr.bf16.mxu0 0
        %1907 = vmatpush2.bf16.msra.mxu0 0
        %1908 = vmatprep.subr.bf16.mxu0 0
        %1909 = vmatpush2.bf16.msra.mxu0 0
        %1910 = vmatprep.subr.bf16.mxu0 0
        %1911 = vmatpush2.bf16.msra.mxu0 0
        %1912 = vmatprep.subr.bf16.mxu0 0
        %1913 = vmatpush2.bf16.msra.mxu0 0
        %1914 = vmatprep.subr.bf16.mxu0 0
        %1915 = vmatpush2.bf16.msra.mxu0 0
        %1916 = vmatprep.subr.bf16.mxu0 0
        %1917 = vmatpush2.bf16.msra.mxu0 0
        %1918 = vmatprep.subr.bf16.mxu0 0
        %1919 = vmatpush2.bf16.msra.mxu0 0
        %1920 = vmatprep.mubr.bf16.mxu0 0
        %1921 = vmatmul.mubr.bf16.gmra.mxu0 %v1880
        %v1922 = vpop.f32.mrf.mxu0
        %v1923 = vadd.f32 0.0, %v1922
        %v1924 = vpop.f32.mrf.mxu0
        %v1925 = vadd.f32 0.0, %v1924
        %v1926 = vpop.f32.mrf.mxu0
        %v1927 = vpop.f32.mrf.mxu0
        %1928 = vdwg.mxu0
        %v1929 = vadd.f32 %v1849, %v1923
        %v1930 = vadd.f32 %v1850, %v1925
        %s1931 = scalar_lea.vmem %s10, 8
        %v1932 = vld [vmem:[%s1931] sm:$0xff]
        %1934 = vset.pattern.permute.xlu0 0
        %1935 = vperm.xlu0 %1934, %v1932
        %v1936 = vpop.permute.xlu0 %1935
        %v1938 = vadd.f32 %v1929, %v1936
        %v1939 = vadd.f32 %v1930, %v1936
        %v1940 = vmax.f32 %v1938, 0.0
        %v1941 = vmax.f32 %v1939, 0.0
        %s1942 = scalar_lea.vmem %s11, 8
        %v1943 = vld [vmem:[%s1942] sm:$0xff]
        %1945 = vset.pattern.permute.xlu0 0
        %1946 = vperm.xlu0 %1945, %v1943
        %v1947 = vpop.permute.xlu0 %1946
        %v1949 = vmul.f32 %v1940, %v1947
        %v1950 = vmul.f32 %v1941, %v1947
        %s1951 = scalar_lea.vmem %s12, 8
        %v1952 = vld [vmem:[%s1951] sm:$0xff]
        %1954 = vset.pattern.permute.xlu0 0
        %1955 = vperm.xlu0 %1954, %v1952
        %v1956 = vpop.permute.xlu0 %1955
        %v1958 = vadd.f32 %v1949, %v1956
        %v1959 = vadd.f32 %v1950, %v1956
        %1962 = vrot.lane.b32.xlu0 %v1958, 17
        %v1963 = vpop.permute.xlu0 %1962
        %1964 = vrot.lane.b32.xlu0 %v1959, 17
        %v1965 = vpop.permute.xlu0 %1964
        %v1966 = vsel %vm1258, %v1963, %v1965
        %1970 = vst.msk [vmem:[#allocation2] sm:$0xff] %vm1263, %v1963
        %1971 = vst [vmem:[#allocation2 + $0x8] sm:$0xff] %v1966
        %1972 = vst.msk [vmem:[#allocation2 + $0x10] sm:$0xff] %vm1258, %v1965
        %v1973 = vld [vmem:[%s8] sm:$0xff]
        %v1974 = vld [vmem:[%s8 + $0x8] sm:$0xff]
        %s1975 = scalar_lea.vmem %s8, 16
        %v1976 = vld [vmem:[%s1975] sm:$0xff]
        %v1977 = vld [vmem:[%s1975 + $0x8] sm:$0xff]
        %v1978 = vld [vmem:[#allocation2] sm:$0xff]
        %v1979 = vld [vmem:[#allocation2 + $0x8] sm:$0xff]
        %v1980 = vmul.f32 %v1978, %v1973
        %v1981 = vmul.f32 %v1979, %v1974
        %s1982 = scalar_lea.vmem %s9, 72
        %v1983 = vld [vmem:[%s1982] sm:$0xf]
        %v1984 = vpack.c.bf16 %v1980, %v1980
        %v1985 = vpack.c.bf16 %v1981, %v1981
        %v1986 = vld [vmem:[#allocation2 + $0x10] sm:$0xff]
        %s1987 = scalar_lea.vmem %s9, 76
        %v1988 = vld [vmem:[%s1987] sm:$0xf]
        %v1989 = vpack.c.bf16 %v1978, %v1978
        %v1990 = vpack.c.bf16 %v1979, %v1979
        %v1991 = vpack.c.bf16 %v1986, %v1986
        %1995 = vrot.lane.b32.xlu0 %v1989, 127
        %v1996 = vpop.permute.xlu0 %1995
        %1997 = vrot.lane.b32.xlu0 %v1990, 127
        %v1998 = vpop.permute.xlu0 %1997
        %1999 = vrot.lane.b32.xlu0 %v1991, 127
        %v2000 = vpop.permute.xlu0 %1999
        %v2001 = vsel %vm1295, %v1996, %v1998
        %v2002 = vsel %vm1295, %v1998, %v2000
        %v2004 = vsel %vm652, %v1988, 0
        %v2007 = vsel %vm656, %v2001, 0
        %v2010 = vsel %vm656, %v2002, 0
        %2012 = vmatprep.subr.bf16.mxu0 0
        %2013 = vmatpush1.bf16.msra.mxu0 0
        %2014 = vmatprep.subr.bf16.mxu0 0
        %2015 = vmatpush1.bf16.msra.mxu0 0
        %2016 = vmatprep.subr.bf16.mxu0 0
        %2017 = vmatpush1.bf16.msra.mxu0 0
        %2018 = vmatprep.subr.bf16.mxu0 0
        %2019 = vmatpush1.bf16.msra.mxu0 0
        %2020 = vmatprep.subr.bf16.mxu0 0
        %2021 = vmatpush1.bf16.msra.mxu0 0
        %2022 = vmatprep.subr.bf16.mxu0 0
        %2023 = vmatpush1.bf16.msra.mxu0 0
        %2024 = vmatprep.subr.bf16.mxu0 0
        %2025 = vmatpush1.bf16.msra.mxu0 0
        %2026 = vmatprep.subr.bf16.mxu0 %v2010
        %2027 = vmatpush1.bf16.msra.mxu0 %v2007
        %2028 = vmatprep.subr.bf16.mxu0 0
        %2029 = vmatpush2.bf16.msra.mxu0 0
        %2030 = vmatprep.subr.bf16.mxu0 0
        %2031 = vmatpush2.bf16.msra.mxu0 0
        %2032 = vmatprep.subr.bf16.mxu0 0
        %2033 = vmatpush2.bf16.msra.mxu0 0
        %2034 = vmatprep.subr.bf16.mxu0 0
        %2035 = vmatpush2.bf16.msra.mxu0 0
        %2036 = vmatprep.subr.bf16.mxu0 0
        %2037 = vmatpush2.bf16.msra.mxu0 0
        %2038 = vmatprep.subr.bf16.mxu0 0
        %2039 = vmatpush2.bf16.msra.mxu0 0
        %2040 = vmatprep.subr.bf16.mxu0 0
        %2041 = vmatpush2.bf16.msra.mxu0 0
        %2042 = vmatprep.subr.bf16.mxu0 0
        %2043 = vmatpush2.bf16.msra.mxu0 0
        %2044 = vmatprep.mubr.bf16.mxu0 0
        %2045 = vmatmul.mubr.bf16.gmra.mxu0 %v2004
        %v2046 = vpop.f32.mrf.mxu0
        %v2047 = vadd.f32 0.0, %v2046
        %v2048 = vpop.f32.mrf.mxu0
        %v2049 = vadd.f32 0.0, %v2048
        %v2050 = vpop.f32.mrf.mxu0
        %v2051 = vpop.f32.mrf.mxu0
        %2052 = vdwg.mxu0
        %v2054 = vsel %vm652, %v1983, 0
        %v2057 = vsel %vm656, %v1984, 0
        %v2060 = vsel %vm656, %v1985, 0
        %2062 = vmatprep.subr.bf16.mxu0 0
        %2063 = vmatpush1.bf16.msra.mxu0 0
        %2064 = vmatprep.subr.bf16.mxu0 0
        %2065 = vmatpush1.bf16.msra.mxu0 0
        %2066 = vmatprep.subr.bf16.mxu0 0
        %2067 = vmatpush1.bf16.msra.mxu0 0
        %2068 = vmatprep.subr.bf16.mxu0 0
        %2069 = vmatpush1.bf16.msra.mxu0 0
        %2070 = vmatprep.subr.bf16.mxu0 0
        %2071 = vmatpush1.bf16.msra.mxu0 0
        %2072 = vmatprep.subr.bf16.mxu0 0
        %2073 = vmatpush1.bf16.msra.mxu0 0
        %2074 = vmatprep.subr.bf16.mxu0 0
        %2075 = vmatpush1.bf16.msra.mxu0 0
        %2076 = vmatprep.subr.bf16.mxu0 %v2060
        %2077 = vmatpush1.bf16.msra.mxu0 %v2057
        %2078 = vmatprep.subr.bf16.mxu0 0
        %2079 = vmatpush2.bf16.msra.mxu0 0
        %2080 = vmatprep.subr.bf16.mxu0 0
        %2081 = vmatpush2.bf16.msra.mxu0 0
        %2082 = vmatprep.subr.bf16.mxu0 0
        %2083 = vmatpush2.bf16.msra.mxu0 0
        %2084 = vmatprep.subr.bf16.mxu0 0
        %2085 = vmatpush2.bf16.msra.mxu0 0
        %2086 = vmatprep.subr.bf16.mxu0 0
        %2087 = vmatpush2.bf16.msra.mxu0 0
        %2088 = vmatprep.subr.bf16.mxu0 0
        %2089 = vmatpush2.bf16.msra.mxu0 0
        %2090 = vmatprep.subr.bf16.mxu0 0
        %2091 = vmatpush2.bf16.msra.mxu0 0
        %2092 = vmatprep.subr.bf16.mxu0 0
        %2093 = vmatpush2.bf16.msra.mxu0 0
        %2094 = vmatprep.mubr.bf16.mxu0 0
        %2095 = vmatmul.mubr.bf16.gmra.mxu0 %v2054
        %v2096 = vpop.f32.mrf.mxu0
        %v2097 = vadd.f32 %v2047, %v2096
        %v2098 = vpop.f32.mrf.mxu0
        %v2099 = vadd.f32 %v2049, %v2098
        %v2100 = vpop.f32.mrf.mxu0
        %v2101 = vpop.f32.mrf.mxu0
        %2102 = vdwg.mxu0
        %2105 = vrot.lane.b32.xlu0 %v1976, 2
        %v2106 = vpop.permute.xlu0 %2105
        %2107 = vrot.lane.b32.xlu0 %v1977, 2
        %v2108 = vpop.permute.xlu0 %2107
        %v2109 = vsel %vm1404, %v2106, %v2108
        %v2113 = vmul.f32 %v1978, %v2106
        %v2114 = vmul.f32 %v1979, %v2109
        %v2115 = vmul.f32 %v1986, %v2108
        %s2116 = scalar_lea.vmem %s9, 80
        %v2117 = vld [vmem:[%s2116] sm:$0xf]
        %v2118 = vpack.c.bf16 %v2113, %v2113
        %v2119 = vpack.c.bf16 %v2114, %v2114
        %v2120 = vpack.c.bf16 %v2115, %v2115
        %2124 = vrot.lane.b32.xlu0 %v2118, 126
        %v2125 = vpop.permute.xlu0 %2124
        %2126 = vrot.lane.b32.xlu0 %v2119, 126
        %v2127 = vpop.permute.xlu0 %2126
        %2128 = vrot.lane.b32.xlu0 %v2120, 126
        %v2129 = vpop.permute.xlu0 %2128
        %v2130 = vsel %vm1426, %v2125, %v2127
        %v2131 = vsel %vm1426, %v2127, %v2129
        %v2133 = vsel %vm652, %v2117, 0
        %v2136 = vsel %vm656, %v2130, 0
        %v2139 = vsel %vm656, %v2131, 0
        %2141 = vmatprep.subr.bf16.mxu0 0
        %2142 = vmatpush1.bf16.msra.mxu0 0
        %2143 = vmatprep.subr.bf16.mxu0 0
        %2144 = vmatpush1.bf16.msra.mxu0 0
        %2145 = vmatprep.subr.bf16.mxu0 0
        %2146 = vmatpush1.bf16.msra.mxu0 0
        %2147 = vmatprep.subr.bf16.mxu0 0
        %2148 = vmatpush1.bf16.msra.mxu0 0
        %2149 = vmatprep.subr.bf16.mxu0 0
        %2150 = vmatpush1.bf16.msra.mxu0 0
        %2151 = vmatprep.subr.bf16.mxu0 0
        %2152 = vmatpush1.bf16.msra.mxu0 0
        %2153 = vmatprep.subr.bf16.mxu0 0
        %2154 = vmatpush1.bf16.msra.mxu0 0
        %2155 = vmatprep.subr.bf16.mxu0 %v2139
        %2156 = vmatpush1.bf16.msra.mxu0 %v2136
        %2157 = vmatprep.subr.bf16.mxu0 0
        %2158 = vmatpush2.bf16.msra.mxu0 0
        %2159 = vmatprep.subr.bf16.mxu0 0
        %2160 = vmatpush2.bf16.msra.mxu0 0
        %2161 = vmatprep.subr.bf16.mxu0 0
        %2162 = vmatpush2.bf16.msra.mxu0 0
        %2163 = vmatprep.subr.bf16.mxu0 0
        %2164 = vmatpush2.bf16.msra.mxu0 0
        %2165 = vmatprep.subr.bf16.mxu0 0
        %2166 = vmatpush2.bf16.msra.mxu0 0
        %2167 = vmatprep.subr.bf16.mxu0 0
        %2168 = vmatpush2.bf16.msra.mxu0 0
        %2169 = vmatprep.subr.bf16.mxu0 0
        %2170 = vmatpush2.bf16.msra.mxu0 0
        %2171 = vmatprep.subr.bf16.mxu0 0
        %2172 = vmatpush2.bf16.msra.mxu0 0
        %2173 = vmatprep.mubr.bf16.mxu0 0
        %2174 = vmatmul.mubr.bf16.gmra.mxu0 %v2133
        %v2175 = vpop.f32.mrf.mxu0
        %v2176 = vadd.f32 0.0, %v2175
        %v2177 = vpop.f32.mrf.mxu0
        %v2178 = vadd.f32 0.0, %v2177
        %v2179 = vpop.f32.mrf.mxu0
        %v2180 = vpop.f32.mrf.mxu0
        %2181 = vdwg.mxu0
        %v2182 = vadd.f32 %v2097, %v2176
        %v2183 = vadd.f32 %v2099, %v2178
        %2186 = vrot.lane.b32.xlu0 %v1973, 16
        %v2187 = vpop.permute.xlu0 %2186
        %2188 = vrot.lane.b32.xlu0 %v1974, 16
        %v2189 = vpop.permute.xlu0 %2188
        %v2190 = vsel %vm585, %v2187, %v2189
        %v2194 = vmul.f32 %v1978, %v2187
        %v2195 = vmul.f32 %v1979, %v2190
        %v2196 = vmul.f32 %v1986, %v2189
        %s2197 = scalar_lea.vmem %s9, 84
        %v2198 = vld [vmem:[%s2197] sm:$0xf]
        %v2199 = vpack.c.bf16 %v2194, %v2194
        %v2200 = vpack.c.bf16 %v2195, %v2195
        %v2201 = vpack.c.bf16 %v2196, %v2196
        %2205 = vrot.lane.b32.xlu0 %v2199, 112
        %v2206 = vpop.permute.xlu0 %2205
        %2207 = vrot.lane.b32.xlu0 %v2200, 112
        %v2208 = vpop.permute.xlu0 %2207
        %2209 = vrot.lane.b32.xlu0 %v2201, 112
        %v2210 = vpop.permute.xlu0 %2209
        %v2211 = vsel %vm1508, %v2206, %v2208
        %v2212 = vsel %vm1508, %v2208, %v2210
        %v2214 = vsel %vm652, %v2198, 0
        %v2217 = vsel %vm656, %v2211, 0
        %v2220 = vsel %vm656, %v2212, 0
        %2222 = vmatprep.subr.bf16.mxu0 0
        %2223 = vmatpush1.bf16.msra.mxu0 0
        %2224 = vmatprep.subr.bf16.mxu0 0
        %2225 = vmatpush1.bf16.msra.mxu0 0
        %2226 = vmatprep.subr.bf16.mxu0 0
        %2227 = vmatpush1.bf16.msra.mxu0 0
        %2228 = vmatprep.subr.bf16.mxu0 0
        %2229 = vmatpush1.bf16.msra.mxu0 0
        %2230 = vmatprep.subr.bf16.mxu0 0
        %2231 = vmatpush1.bf16.msra.mxu0 0
        %2232 = vmatprep.subr.bf16.mxu0 0
        %2233 = vmatpush1.bf16.msra.mxu0 0
        %2234 = vmatprep.subr.bf16.mxu0 0
        %2235 = vmatpush1.bf16.msra.mxu0 0
        %2236 = vmatprep.subr.bf16.mxu0 %v2220
        %2237 = vmatpush1.bf16.msra.mxu0 %v2217
        %2238 = vmatprep.subr.bf16.mxu0 0
        %2239 = vmatpush2.bf16.msra.mxu0 0
        %2240 = vmatprep.subr.bf16.mxu0 0
        %2241 = vmatpush2.bf16.msra.mxu0 0
        %2242 = vmatprep.subr.bf16.mxu0 0
        %2243 = vmatpush2.bf16.msra.mxu0 0
        %2244 = vmatprep.subr.bf16.mxu0 0
        %2245 = vmatpush2.bf16.msra.mxu0 0
        %2246 = vmatprep.subr.bf16.mxu0 0
        %2247 = vmatpush2.bf16.msra.mxu0 0
        %2248 = vmatprep.subr.bf16.mxu0 0
        %2249 = vmatpush2.bf16.msra.mxu0 0
        %2250 = vmatprep.subr.bf16.mxu0 0
        %2251 = vmatpush2.bf16.msra.mxu0 0
        %2252 = vmatprep.subr.bf16.mxu0 0
        %2253 = vmatpush2.bf16.msra.mxu0 0
        %2254 = vmatprep.mubr.bf16.mxu0 0
        %2255 = vmatmul.mubr.bf16.gmra.mxu0 %v2214
        %v2256 = vpop.f32.mrf.mxu0
        %v2257 = vadd.f32 0.0, %v2256
        %v2258 = vpop.f32.mrf.mxu0
        %v2259 = vadd.f32 0.0, %v2258
        %v2260 = vpop.f32.mrf.mxu0
        %v2261 = vpop.f32.mrf.mxu0
        %2262 = vdwg.mxu0
        %v2263 = vadd.f32 %v2182, %v2257
        %v2264 = vadd.f32 %v2183, %v2259
        %s2265 = scalar_lea.vmem %s9, 88
        %v2266 = vld [vmem:[%s2265] sm:$0xf]
        %2267 = vrot.lane.b32.xlu0 %v1989, 111
        %v2268 = vpop.permute.xlu0 %2267
        %2269 = vrot.lane.b32.xlu0 %v1990, 111
        %v2270 = vpop.permute.xlu0 %2269
        %2271 = vrot.lane.b32.xlu0 %v1991, 111
        %v2272 = vpop.permute.xlu0 %2271
        %v2273 = vsel %vm1571, %v2268, %v2270
        %v2274 = vsel %vm1571, %v2270, %v2272
        %v2276 = vsel %vm652, %v2266, 0
        %v2279 = vsel %vm656, %v2273, 0
        %v2282 = vsel %vm656, %v2274, 0
        %2284 = vmatprep.subr.bf16.mxu0 0
        %2285 = vmatpush1.bf16.msra.mxu0 0
        %2286 = vmatprep.subr.bf16.mxu0 0
        %2287 = vmatpush1.bf16.msra.mxu0 0
        %2288 = vmatprep.subr.bf16.mxu0 0
        %2289 = vmatpush1.bf16.msra.mxu0 0
        %2290 = vmatprep.subr.bf16.mxu0 0
        %2291 = vmatpush1.bf16.msra.mxu0 0
        %2292 = vmatprep.subr.bf16.mxu0 0
        %2293 = vmatpush1.bf16.msra.mxu0 0
        %2294 = vmatprep.subr.bf16.mxu0 0
        %2295 = vmatpush1.bf16.msra.mxu0 0
        %2296 = vmatprep.subr.bf16.mxu0 0
        %2297 = vmatpush1.bf16.msra.mxu0 0
        %2298 = vmatprep.subr.bf16.mxu0 %v2282
        %2299 = vmatpush1.bf16.msra.mxu0 %v2279
        %2300 = vmatprep.subr.bf16.mxu0 0
        %2301 = vmatpush2.bf16.msra.mxu0 0
        %2302 = vmatprep.subr.bf16.mxu0 0
        %2303 = vmatpush2.bf16.msra.mxu0 0
        %2304 = vmatprep.subr.bf16.mxu0 0
        %2305 = vmatpush2.bf16.msra.mxu0 0
        %2306 = vmatprep.subr.bf16.mxu0 0
        %2307 = vmatpush2.bf16.msra.mxu0 0
        %2308 = vmatprep.subr.bf16.mxu0 0
        %2309 = vmatpush2.bf16.msra.mxu0 0
        %2310 = vmatprep.subr.bf16.mxu0 0
        %2311 = vmatpush2.bf16.msra.mxu0 0
        %2312 = vmatprep.subr.bf16.mxu0 0
        %2313 = vmatpush2.bf16.msra.mxu0 0
        %2314 = vmatprep.subr.bf16.mxu0 0
        %2315 = vmatpush2.bf16.msra.mxu0 0
        %2316 = vmatprep.mubr.bf16.mxu0 0
        %2317 = vmatmul.mubr.bf16.gmra.mxu0 %v2276
        %v2318 = vpop.f32.mrf.mxu0
        %v2319 = vadd.f32 0.0, %v2318
        %v2320 = vpop.f32.mrf.mxu0
        %v2321 = vadd.f32 0.0, %v2320
        %v2322 = vpop.f32.mrf.mxu0
        %v2323 = vpop.f32.mrf.mxu0
        %2324 = vdwg.mxu0
        %v2325 = vadd.f32 %v2263, %v2319
        %v2326 = vadd.f32 %v2264, %v2321
        %2327 = vrot.lane.b32.xlu0 %v1976, 18
        %v2328 = vpop.permute.xlu0 %2327
        %2329 = vrot.lane.b32.xlu0 %v1977, 18
        %v2330 = vpop.permute.xlu0 %2329
        %v2331 = vsel %vm1630, %v2328, %v2330
        %v2335 = vmul.f32 %v1978, %v2328
        %v2336 = vmul.f32 %v1979, %v2331
        %v2337 = vmul.f32 %v1986, %v2330
        %s2338 = scalar_lea.vmem %s9, 92
        %v2339 = vld [vmem:[%s2338] sm:$0xf]
        %v2340 = vpack.c.bf16 %v2335, %v2335
        %v2341 = vpack.c.bf16 %v2336, %v2336
        %v2342 = vpack.c.bf16 %v2337, %v2337
        %2346 = vrot.lane.b32.xlu0 %v2340, 110
        %v2347 = vpop.permute.xlu0 %2346
        %2348 = vrot.lane.b32.xlu0 %v2341, 110
        %v2349 = vpop.permute.xlu0 %2348
        %2350 = vrot.lane.b32.xlu0 %v2342, 110
        %v2351 = vpop.permute.xlu0 %2350
        %v2352 = vsel %vm1652, %v2347, %v2349
        %v2353 = vsel %vm1652, %v2349, %v2351
        %v2355 = vsel %vm652, %v2339, 0
        %v2358 = vsel %vm656, %v2352, 0
        %v2361 = vsel %vm656, %v2353, 0
        %2363 = vmatprep.subr.bf16.mxu0 0
        %2364 = vmatpush1.bf16.msra.mxu0 0
        %2365 = vmatprep.subr.bf16.mxu0 0
        %2366 = vmatpush1.bf16.msra.mxu0 0
        %2367 = vmatprep.subr.bf16.mxu0 0
        %2368 = vmatpush1.bf16.msra.mxu0 0
        %2369 = vmatprep.subr.bf16.mxu0 0
        %2370 = vmatpush1.bf16.msra.mxu0 0
        %2371 = vmatprep.subr.bf16.mxu0 0
        %2372 = vmatpush1.bf16.msra.mxu0 0
        %2373 = vmatprep.subr.bf16.mxu0 0
        %2374 = vmatpush1.bf16.msra.mxu0 0
        %2375 = vmatprep.subr.bf16.mxu0 0
        %2376 = vmatpush1.bf16.msra.mxu0 0
        %2377 = vmatprep.subr.bf16.mxu0 %v2361
        %2378 = vmatpush1.bf16.msra.mxu0 %v2358
        %2379 = vmatprep.subr.bf16.mxu0 0
        %2380 = vmatpush2.bf16.msra.mxu0 0
        %2381 = vmatprep.subr.bf16.mxu0 0
        %2382 = vmatpush2.bf16.msra.mxu0 0
        %2383 = vmatprep.subr.bf16.mxu0 0
        %2384 = vmatpush2.bf16.msra.mxu0 0
        %2385 = vmatprep.subr.bf16.mxu0 0
        %2386 = vmatpush2.bf16.msra.mxu0 0
        %2387 = vmatprep.subr.bf16.mxu0 0
        %2388 = vmatpush2.bf16.msra.mxu0 0
        %2389 = vmatprep.subr.bf16.mxu0 0
        %2390 = vmatpush2.bf16.msra.mxu0 0
        %2391 = vmatprep.subr.bf16.mxu0 0
        %2392 = vmatpush2.bf16.msra.mxu0 0
        %2393 = vmatprep.subr.bf16.mxu0 0
        %2394 = vmatpush2.bf16.msra.mxu0 0
        %2395 = vmatprep.mubr.bf16.mxu0 0
        %2396 = vmatmul.mubr.bf16.gmra.mxu0 %v2355
        %v2397 = vpop.f32.mrf.mxu0
        %v2398 = vadd.f32 0.0, %v2397
        %v2399 = vpop.f32.mrf.mxu0
        %v2400 = vadd.f32 0.0, %v2399
        %v2401 = vpop.f32.mrf.mxu0
        %v2402 = vpop.f32.mrf.mxu0
        %2403 = vdwg.mxu0
        %v2404 = vadd.f32 %v2325, %v2398
        %v2405 = vadd.f32 %v2326, %v2400
        %2406 = vrot.lane.b32.xlu0 %v1973, 32
        %v2407 = vpop.permute.xlu0 %2406
        %2408 = vrot.lane.b32.xlu0 %v1974, 32
        %v2409 = vpop.permute.xlu0 %2408
        %v2410 = vsel %vm1711, %v2407, %v2409
        %v2414 = vmul.f32 %v1978, %v2407
        %v2415 = vmul.f32 %v1979, %v2410
        %v2416 = vmul.f32 %v1986, %v2409
        %s2417 = scalar_lea.vmem %s9, 96
        %v2418 = vld [vmem:[%s2417] sm:$0xf]
        %v2419 = vpack.c.bf16 %v2414, %v2414
        %v2420 = vpack.c.bf16 %v2415, %v2415
        %v2421 = vpack.c.bf16 %v2416, %v2416
        %2425 = vrot.lane.b32.xlu0 %v2419, 96
        %v2426 = vpop.permute.xlu0 %2425
        %2427 = vrot.lane.b32.xlu0 %v2420, 96
        %v2428 = vpop.permute.xlu0 %2427
        %2429 = vrot.lane.b32.xlu0 %v2421, 96
        %v2430 = vpop.permute.xlu0 %2429
        %v2431 = vsel %vm1733, %v2426, %v2428
        %v2432 = vsel %vm1733, %v2428, %v2430
        %v2434 = vsel %vm652, %v2418, 0
        %v2437 = vsel %vm656, %v2431, 0
        %v2440 = vsel %vm656, %v2432, 0
        %2442 = vmatprep.subr.bf16.mxu0 0
        %2443 = vmatpush1.bf16.msra.mxu0 0
        %2444 = vmatprep.subr.bf16.mxu0 0
        %2445 = vmatpush1.bf16.msra.mxu0 0
        %2446 = vmatprep.subr.bf16.mxu0 0
        %2447 = vmatpush1.bf16.msra.mxu0 0
        %2448 = vmatprep.subr.bf16.mxu0 0
        %2449 = vmatpush1.bf16.msra.mxu0 0
        %2450 = vmatprep.subr.bf16.mxu0 0
        %2451 = vmatpush1.bf16.msra.mxu0 0
        %2452 = vmatprep.subr.bf16.mxu0 0
        %2453 = vmatpush1.bf16.msra.mxu0 0
        %2454 = vmatprep.subr.bf16.mxu0 0
        %2455 = vmatpush1.bf16.msra.mxu0 0
        %2456 = vmatprep.subr.bf16.mxu0 %v2440
        %2457 = vmatpush1.bf16.msra.mxu0 %v2437
        %2458 = vmatprep.subr.bf16.mxu0 0
        %2459 = vmatpush2.bf16.msra.mxu0 0
        %2460 = vmatprep.subr.bf16.mxu0 0
        %2461 = vmatpush2.bf16.msra.mxu0 0
        %2462 = vmatprep.subr.bf16.mxu0 0
        %2463 = vmatpush2.bf16.msra.mxu0 0
        %2464 = vmatprep.subr.bf16.mxu0 0
        %2465 = vmatpush2.bf16.msra.mxu0 0
        %2466 = vmatprep.subr.bf16.mxu0 0
        %2467 = vmatpush2.bf16.msra.mxu0 0
        %2468 = vmatprep.subr.bf16.mxu0 0
        %2469 = vmatpush2.bf16.msra.mxu0 0
        %2470 = vmatprep.subr.bf16.mxu0 0
        %2471 = vmatpush2.bf16.msra.mxu0 0
        %2472 = vmatprep.subr.bf16.mxu0 0
        %2473 = vmatpush2.bf16.msra.mxu0 0
        %2474 = vmatprep.mubr.bf16.mxu0 0
        %2475 = vmatmul.mubr.bf16.gmra.mxu0 %v2434
        %v2476 = vpop.f32.mrf.mxu0
        %v2477 = vadd.f32 0.0, %v2476
        %v2478 = vpop.f32.mrf.mxu0
        %v2479 = vadd.f32 0.0, %v2478
        %v2480 = vpop.f32.mrf.mxu0
        %v2481 = vpop.f32.mrf.mxu0
        %2482 = vdwg.mxu0
        %v2483 = vadd.f32 %v2404, %v2477
        %v2484 = vadd.f32 %v2405, %v2479
        %s2485 = scalar_lea.vmem %s9, 100
        %v2486 = vld [vmem:[%s2485] sm:$0xf]
        %2487 = vrot.lane.b32.xlu0 %v1989, 95
        %v2488 = vpop.permute.xlu0 %2487
        %2489 = vrot.lane.b32.xlu0 %v1990, 95
        %v2490 = vpop.permute.xlu0 %2489
        %2491 = vrot.lane.b32.xlu0 %v1991, 95
        %v2492 = vpop.permute.xlu0 %2491
        %v2493 = vsel %vm1796, %v2488, %v2490
        %v2494 = vsel %vm1796, %v2490, %v2492
        %v2496 = vsel %vm652, %v2486, 0
        %v2499 = vsel %vm656, %v2493, 0
        %v2502 = vsel %vm656, %v2494, 0
        %2504 = vmatprep.subr.bf16.mxu0 0
        %2505 = vmatpush1.bf16.msra.mxu0 0
        %2506 = vmatprep.subr.bf16.mxu0 0
        %2507 = vmatpush1.bf16.msra.mxu0 0
        %2508 = vmatprep.subr.bf16.mxu0 0
        %2509 = vmatpush1.bf16.msra.mxu0 0
        %2510 = vmatprep.subr.bf16.mxu0 0
        %2511 = vmatpush1.bf16.msra.mxu0 0
        %2512 = vmatprep.subr.bf16.mxu0 0
        %2513 = vmatpush1.bf16.msra.mxu0 0
        %2514 = vmatprep.subr.bf16.mxu0 0
        %2515 = vmatpush1.bf16.msra.mxu0 0
        %2516 = vmatprep.subr.bf16.mxu0 0
        %2517 = vmatpush1.bf16.msra.mxu0 0
        %2518 = vmatprep.subr.bf16.mxu0 %v2502
        %2519 = vmatpush1.bf16.msra.mxu0 %v2499
        %2520 = vmatprep.subr.bf16.mxu0 0
        %2521 = vmatpush2.bf16.msra.mxu0 0
        %2522 = vmatprep.subr.bf16.mxu0 0
        %2523 = vmatpush2.bf16.msra.mxu0 0
        %2524 = vmatprep.subr.bf16.mxu0 0
        %2525 = vmatpush2.bf16.msra.mxu0 0
        %2526 = vmatprep.subr.bf16.mxu0 0
        %2527 = vmatpush2.bf16.msra.mxu0 0
        %2528 = vmatprep.subr.bf16.mxu0 0
        %2529 = vmatpush2.bf16.msra.mxu0 0
        %2530 = vmatprep.subr.bf16.mxu0 0
        %2531 = vmatpush2.bf16.msra.mxu0 0
        %2532 = vmatprep.subr.bf16.mxu0 0
        %2533 = vmatpush2.bf16.msra.mxu0 0
        %2534 = vmatprep.subr.bf16.mxu0 0
        %2535 = vmatpush2.bf16.msra.mxu0 0
        %2536 = vmatprep.mubr.bf16.mxu0 0
        %2537 = vmatmul.mubr.bf16.gmra.mxu0 %v2496
        %v2538 = vpop.f32.mrf.mxu0
        %v2539 = vadd.f32 0.0, %v2538
        %v2540 = vpop.f32.mrf.mxu0
        %v2541 = vadd.f32 0.0, %v2540
        %v2542 = vpop.f32.mrf.mxu0
        %v2543 = vpop.f32.mrf.mxu0
        %2544 = vdwg.mxu0
        %v2545 = vadd.f32 %v2483, %v2539
        %v2546 = vadd.f32 %v2484, %v2541
        %2547 = vrot.lane.b32.xlu0 %v1976, 34
        %v2548 = vpop.permute.xlu0 %2547
        %2549 = vrot.lane.b32.xlu0 %v1977, 34
        %v2550 = vpop.permute.xlu0 %2549
        %v2551 = vsel %vm574, %v2548, %v2550
        %v2555 = vmul.f32 %v1978, %v2548
        %v2556 = vmul.f32 %v1979, %v2551
        %v2557 = vmul.f32 %v1986, %v2550
        %s2558 = scalar_lea.vmem %s9, 104
        %v2559 = vld [vmem:[%s2558] sm:$0xf]
        %v2560 = vpack.c.bf16 %v2555, %v2555
        %v2561 = vpack.c.bf16 %v2556, %v2556
        %v2562 = vpack.c.bf16 %v2557, %v2557
        %2566 = vrot.lane.b32.xlu0 %v2560, 94
        %v2567 = vpop.permute.xlu0 %2566
        %2568 = vrot.lane.b32.xlu0 %v2561, 94
        %v2569 = vpop.permute.xlu0 %2568
        %2570 = vrot.lane.b32.xlu0 %v2562, 94
        %v2571 = vpop.permute.xlu0 %2570
        %v2572 = vsel %vm1876, %v2567, %v2569
        %v2573 = vsel %vm1876, %v2569, %v2571
        %v2575 = vsel %vm652, %v2559, 0
        %v2578 = vsel %vm656, %v2572, 0
        %v2581 = vsel %vm656, %v2573, 0
        %2583 = vmatprep.subr.bf16.mxu0 0
        %2584 = vmatpush1.bf16.msra.mxu0 0
        %2585 = vmatprep.subr.bf16.mxu0 0
        %2586 = vmatpush1.bf16.msra.mxu0 0
        %2587 = vmatprep.subr.bf16.mxu0 0
        %2588 = vmatpush1.bf16.msra.mxu0 0
        %2589 = vmatprep.subr.bf16.mxu0 0
        %2590 = vmatpush1.bf16.msra.mxu0 0
        %2591 = vmatprep.subr.bf16.mxu0 0
        %2592 = vmatpush1.bf16.msra.mxu0 0
        %2593 = vmatprep.subr.bf16.mxu0 0
        %2594 = vmatpush1.bf16.msra.mxu0 0
        %2595 = vmatprep.subr.bf16.mxu0 0
        %2596 = vmatpush1.bf16.msra.mxu0 0
        %2597 = vmatprep.subr.bf16.mxu0 %v2581
        %2598 = vmatpush1.bf16.msra.mxu0 %v2578
        %2599 = vmatprep.subr.bf16.mxu0 0
        %2600 = vmatpush2.bf16.msra.mxu0 0
        %2601 = vmatprep.subr.bf16.mxu0 0
        %2602 = vmatpush2.bf16.msra.mxu0 0
        %2603 = vmatprep.subr.bf16.mxu0 0
        %2604 = vmatpush2.bf16.msra.mxu0 0
        %2605 = vmatprep.subr.bf16.mxu0 0
        %2606 = vmatpush2.bf16.msra.mxu0 0
        %2607 = vmatprep.subr.bf16.mxu0 0
        %2608 = vmatpush2.bf16.msra.mxu0 0
        %2609 = vmatprep.subr.bf16.mxu0 0
        %2610 = vmatpush2.bf16.msra.mxu0 0
        %2611 = vmatprep.subr.bf16.mxu0 0
        %2612 = vmatpush2.bf16.msra.mxu0 0
        %2613 = vmatprep.subr.bf16.mxu0 0
        %2614 = vmatpush2.bf16.msra.mxu0 0
        %2615 = vmatprep.mubr.bf16.mxu0 0
        %2616 = vmatmul.mubr.bf16.gmra.mxu0 %v2575
        %v2617 = vpop.f32.mrf.mxu0
        %v2618 = vadd.f32 0.0, %v2617
        %v2619 = vpop.f32.mrf.mxu0
        %v2620 = vadd.f32 0.0, %v2619
        %v2621 = vpop.f32.mrf.mxu0
        %v2622 = vpop.f32.mrf.mxu0
        %2623 = vdwg.mxu0
        %v2624 = vadd.f32 %v2545, %v2618
        %v2625 = vadd.f32 %v2546, %v2620
        %s2626 = scalar_lea.vmem %s10, 16
        %v2627 = vld [vmem:[%s2626] sm:$0xff]
        %2629 = vset.pattern.permute.xlu0 0
        %2630 = vperm.xlu0 %2629, %v2627
        %v2631 = vpop.permute.xlu0 %2630
        %v2633 = vadd.f32 %v2624, %v2631
        %v2634 = vadd.f32 %v2625, %v2631
        %v2635 = vmax.f32 %v2633, 0.0
        %v2636 = vmax.f32 %v2634, 0.0
        %v2637 = vld [vmem:[%s13] sm:$0xf]
        %v2638 = vpack.c.bf16 %v2635, %v2635
        %v2639 = vpack.c.bf16 %v2636, %v2636
        %v2640 = vld [vmem:[%s14] sm:$0xff]
        %2642 = vset.pattern.permute.xlu0 0
        %2643 = vperm.xlu0 %2642, %v2640
        %v2644 = vpop.permute.xlu0 %2643
        %v2647 = vsel %vm652, %v2637, 0
        %v2650 = vsel %vm656, %v2638, 0
        %v2653 = vsel %vm656, %v2639, 0
        %2655 = vmatprep.subr.bf16.mxu0 0
        %2656 = vmatpush1.bf16.msra.mxu0 0
        %2657 = vmatprep.subr.bf16.mxu0 0
        %2658 = vmatpush1.bf16.msra.mxu0 0
        %2659 = vmatprep.subr.bf16.mxu0 0
        %2660 = vmatpush1.bf16.msra.mxu0 0
        %2661 = vmatprep.subr.bf16.mxu0 0
        %2662 = vmatpush1.bf16.msra.mxu0 0
        %2663 = vmatprep.subr.bf16.mxu0 0
        %2664 = vmatpush1.bf16.msra.mxu0 0
        %2665 = vmatprep.subr.bf16.mxu0 0
        %2666 = vmatpush1.bf16.msra.mxu0 0
        %2667 = vmatprep.subr.bf16.mxu0 0
        %2668 = vmatpush1.bf16.msra.mxu0 0
        %2669 = vmatprep.subr.bf16.mxu0 %v2653
        %2670 = vmatpush1.bf16.msra.mxu0 %v2650
        %2671 = vmatprep.subr.bf16.mxu0 0
        %2672 = vmatpush2.bf16.msra.mxu0 0
        %2673 = vmatprep.subr.bf16.mxu0 0
        %2674 = vmatpush2.bf16.msra.mxu0 0
        %2675 = vmatprep.subr.bf16.mxu0 0
        %2676 = vmatpush2.bf16.msra.mxu0 0
        %2677 = vmatprep.subr.bf16.mxu0 0
        %2678 = vmatpush2.bf16.msra.mxu0 0
        %2679 = vmatprep.subr.bf16.mxu0 0
        %2680 = vmatpush2.bf16.msra.mxu0 0
        %2681 = vmatprep.subr.bf16.mxu0 0
        %2682 = vmatpush2.bf16.msra.mxu0 0
        %2683 = vmatprep.subr.bf16.mxu0 0
        %2684 = vmatpush2.bf16.msra.mxu0 0
        %2685 = vmatprep.subr.bf16.mxu0 0
        %2686 = vmatpush2.bf16.msra.mxu0 0
        %2687 = vmatprep.mubr.bf16.mxu0 0
        %2688 = vmatmul.mubr.bf16.gmra.mxu0 %v2647
        %v2689 = vpop.f32.mrf.mxu0
        %v2690 = vadd.f32 %v2644, %v2689
        %v2691 = vpop.f32.mrf.mxu0
        %v2692 = vadd.f32 %v2644, %v2691
        %v2693 = vpop.f32.mrf.mxu0
        %v2694 = vpop.f32.mrf.mxu0
        %2695 = vdwg.mxu0
        %s2696 = sld [smem:[#allocation3]]
        %v2697 = vstv %s2696
        %v2698 = vmul.f32 %v2690, %v2697
        %v2699 = vmul.f32 %v2692, %v2697
        %2700 = vst [vmem:[%s486] sm:$0xff] %v2698
        %2701 = vst [vmem:[%s486 + $0x8] sm:$0xff] %v2699
        %s2702 = sand.u32 %s358, 1
        %s2703 = scalar_lea.sflag [#allocation5], %s2702
        %s2704 = sand.u32 %s358, 1
        %s2705 = smul.addr %s2704, 16
        %s2706 = scalar_lea.vmem [#allocation4], %s2705
        // Predicated region
        $region81: #{tpu_custom_call.1} parent=79 // pred_check
          %p2707 = pneg %p368
        $region82: #{tpu_custom_call.1} parent=79 // pred_check_branch
          %2709 = sbr.rel (%p2707) target = $region84
        $region83: #{tpu_custom_call.1} parent=79 // pred_region
          %s2711 = ssub.s32 256, 256
          %2712 = vsyncadd %s2703, %s2711
          %s2713 = smul.addr %s30, 2
          %s2714 = smul.addr %s2713, 128
          %s2715 = scalar_lea.hbm %s15, %s2714
          %s2717 = sshll.u32 %s2706, 4
          %s2718 = int_to_ptr.vmem [resolvable:$true] %s2717
          %2720 = dma.vmem_to_hbm [thread:$0]  %s2718, 256, %s2715, %s2703
        $region84: #{tpu_custom_call.1} parent=79 // pred_fallthru
          _
      $region80: #{tpu_custom_call.1} parent=5 // pred_fallthru
        _
      %p2721 = scmp.le.s32.totalorder 2, %s25
      // Predicated region
      $region85: #{tpu_custom_call.1} parent=5 // pred_check
        %p2722 = pneg %p2721
      $region86: #{tpu_custom_call.1} parent=5 // pred_check_branch
        %2724 = sbr.rel (%p2722) target = $region88
      $region87: #{tpu_custom_call.1} parent=5 // pred_region
        %s2725 = ssub.s32 %s25, 2
        // Predicated region
        $region89: #{tpu_custom_call.1} parent=87 // pred_check
          %p2726 = pneg %p374
        $region90: #{tpu_custom_call.1} parent=87 // pred_check_branch
          %2728 = sbr.rel (%p2726) target = $region92
        $region91: #{tpu_custom_call.1} parent=87 // pred_region
          %s2729 = sand.u32 %s359, 1
          %s2730 = scalar_lea.sflag [#allocation5], %s2729
          %s2731 = sand.u32 %s359, 1
          %s2732 = smul.addr %s2731, 16
          %s2733 = scalar_lea.vmem [#allocation4], %s2732
          %2734 = dma.done %s2730, 256
        $region92: #{tpu_custom_call.1} parent=87 // pred_fallthru
          _
      $region88: #{tpu_custom_call.1} parent=5 // pred_fallthru
        _
    $region6: #{tpu_custom_call.1} parent=1 // loop_footer
      %s29 = sadd.s32 1, %s25
    $region7: #{tpu_custom_call.1} parent=1 // loop_footer_branch
      %24 = sbr.rel target = $region3
    $region8: #{tpu_custom_call.1} parent=1 // loop_exit
      _
    %2735 = vsyncpa [#allocation5], 1
    %s2736 = scalar_lea.sflag [#allocation5], 1
    %2737 = vsyncpa %s2736, 1

</llo_original>
